<compile_context>
chip_gen: v5e
topology: v5e:2x2
jax: 0.10.0
libtpu: 0.0.40
codegen_flags: <defaults>
</compile_context>

<pallas_src>
import functools

import jax
import jax.numpy as jnp
import numpy as np
from jax.experimental import pallas as pl
from jax.experimental.pallas import tpu as pltpu

SEQ_CLIP = 77          # CLIP sequence length
SEQ_CAT = 81           # 77 + 4 after concat
HID = 1024             # hidden size == pooled spatial size (32 * 32)
VAE_C = 4              # VAE latent channels
VAE_HW = 64            # pre-pool spatial size
MAX_BT = 16            # batch-tile cap (guarded by the VMEM budget below)
_VMEM_BUDGET = 24 * 1024 * 1024          # headroom under the 32 MiB scoped limit
_MULTI_TC_MARKERS = ("v7", "tpu7", "v4", "v5p")   # chips with 2 TensorCores


@functools.lru_cache(maxsize=None)
def _has_two_tensorcores() -> bool:
    try:
        kind = jax.devices()[0].device_kind.lower()
    except Exception:
        return False
    return any(m in kind for m in _MULTI_TC_MARKERS)


def _pick_batch_tile(batch: int, out_itemsize: int) -> int:
    """Largest batch tile that divides B, fits the VMEM budget and keeps the
    pooled (bt*4, 1024) block 8-row aligned (even bt, or bt == B)."""
    def fits(bt):
        # Double-buffered clip (bf16) + output + pooled (bf16) blocks, plus the
        # double-buffered (worst-case unsplit) w1t weight block.
        need = 2 * (bt * SEQ_CLIP * HID * 2
                    + bt * SEQ_CLIP * HID * out_itemsize
                    + bt * VAE_C * HID * 2) + 2 * HID * HID * 2
        return need <= _VMEM_BUDGET

    for bt in range(min(batch, MAX_BT), 0, -1):       # prefer even divisors
        if batch % bt == 0 and bt % 2 == 0 and fits(bt):
            return bt
    if fits(batch):                                   # whole batch = full block
        return batch
    for bt in range(min(batch, MAX_BT), 0, -1):       # odd-divisor fallback
        if batch % bt == 0 and fits(bt):
            return bt
    return 1


def adapter_kernel(bt, clip_ref, pooled_ref, w1t_ref, b1_ref, w2a_ref,
                   w2b_ref, b2_ref, out_ref):
    """One (hidden-block, batch-tile) grid step.

    clip_ref   : (bt, 77, hblk)   bf16
    pooled_ref : (bt*4, 1024)     bf16   max-pooled VAE latent, row = b*4 + c
    w1t_ref    : (1024, hblk)     bf16   vae2clip weight, pre-transposed
    b1_ref     : (1, hblk)        f32
    w2a_ref    : (77, 77)         bf16   Linear(81,77) cols 0..76  (clip part)
    w2b_ref    : (77, 4)          bf16   Linear(81,77) cols 77..80 (vae part)
    b2_ref     : (77, 1)          f32
    out_ref    : (bt, 77, hblk)   out dtype
    """
    hblk = clip_ref.shape[-1]

    # vae2clip for all bt*4 pooled rows at once (M = 4*bt rows on the MXU).
    vproj = jnp.dot(pooled_ref[...], w1t_ref[...],
                    preferred_element_type=jnp.float32)        # (bt*4, hblk)
    vproj = (vproj + b1_ref[...]).astype(jnp.bfloat16)

    # Loop-invariant operands: load / broadcast exactly once (JAX does not
    # CSE broadcast_in_dim, so the b2 broadcast must stay out of the loop).
    w2a = w2a_ref[...]
    w2b = w2b_ref[...]
    b2 = jnp.broadcast_to(b2_ref[...], (SEQ_CLIP, hblk))

    for b in range(bt):                                        # static unroll
        acc = jnp.dot(w2a, clip_ref[b],
                      preferred_element_type=jnp.float32)      # (77, hblk)
        # K=4 vae columns of Linear(81,77) as one tiny MXU matmul (frees the
        # VPU/XLU slots; the MXU has plenty of slack in this mem-bound kernel).
        acc += jnp.dot(w2b, vproj[VAE_C * b:VAE_C * (b + 1), :],
                       preferred_element_type=jnp.float32)
        out_ref[b] = (acc + b2).astype(out_ref.dtype)


def prepare_params(w1, b1, w2, b2):
    """One-time parameter preprocessing (run at load time, NOT per call)."""
    w2 = jnp.asarray(w2, jnp.float32)
    return (
        jnp.asarray(w1).T.astype(jnp.bfloat16),             # (1024,1024) in->out
        jnp.asarray(b1, jnp.float32).reshape(1, HID),       # (1, 1024)
        w2[:, :SEQ_CLIP].astype(jnp.bfloat16),              # (77, 77)  clip part
        w2[:, SEQ_CLIP:].astype(jnp.bfloat16),              # (77, 4)   vae part
        jnp.asarray(b2, jnp.float32).reshape(SEQ_CLIP, 1),  # (77, 1)
    )


@functools.partial(jax.jit, static_argnames=("out_dtype",))
def dream_pose_adapter(clip_embedding, vae_embedding, w1t, b1r, w2a, w2b, b2r,
                       *, out_dtype=jnp.float32):
    B, C, H, W = vae_embedding.shape
    assert C == VAE_C and H == VAE_HW and W == VAE_HW
    assert clip_embedding.shape == (B, SEQ_CLIP, HID)
    out_itemsize = np.dtype(out_dtype).itemsize

    # MaxPool2d(2) + flatten in the wrapper (cheap XLA reduce):
    # (B, 4, 64, 64) -> (B*4, 1024) bf16  (4x less VAE traffic into the kernel).
    pooled = vae_embedding.reshape(B, C, H // 2, 2, W // 2, 2).max(axis=(3, 5))
    pooled = pooled.reshape(B * C, (H // 2) * (W // 2)).astype(jnp.bfloat16)

    # clip is the largest HBM stream -> stream it in bf16; all matmuls still
    # accumulate in f32 via preferred_element_type.
    clip_bf16 = clip_embedding.astype(jnp.bfloat16)

    bt = _pick_batch_tile(B, out_itemsize)
    n_bt = B // bt
    # Split the hidden/lane axis only when a single batch tile would otherwise
    # leave the second TensorCore idle (v7x / megacore chips).  On single-TC
    # v5e / v6e the split is pure grid-step overhead, so keep 1024 lanes.
    n_hid = 2 if (n_bt == 1 and _has_two_tensorcores()) else 1
    hblk = HID // n_hid

    # Hidden-block axis OUTER (slow): w1t's block index never changes during
    # the inner batch sweep, so each half is DMA'd exactly once.
    grid = (n_hid, n_bt)

    pooled_fetches = n_hid if n_bt > 1 else 1
    cost = pl.CostEstimate(
        flops=2 * B * (VAE_C * HID * HID
                       + SEQ_CLIP * SEQ_CLIP * HID
                       + SEQ_CLIP * VAE_C * HID),
        transcendentals=0,
        bytes_accessed=(B * SEQ_CLIP * HID * 2                   # clip in (bf16)
                        + B * SEQ_CLIP * HID * out_itemsize      # output
                        + pooled_fetches * B * VAE_C * HID * 2   # pooled vae
                        + HID * HID * 2                          # w1t (once)
                        + HID * 4                                # b1
                        + (SEQ_CLIP * SEQ_CLIP + SEQ_CLIP * VAE_C) * 2
                        + SEQ_CLIP * 4))                         # w2a/w2b/b2

    grid_spec = pltpu.PrefetchScalarGridSpec(
        num_scalar_prefetch=0,
        grid=grid,
        in_specs=[
            pl.BlockSpec((bt, SEQ_CLIP, hblk), lambda j, i: (i, 0, j)),
            pl.BlockSpec((bt * VAE_C, HID), lambda j, i: (i, 0)),
            pl.BlockSpec((HID, hblk), lambda j, i: (0, j)),
            pl.BlockSpec((1, hblk), lambda j, i: (0, j)),
            pl.BlockSpec((SEQ_CLIP, SEQ_CLIP), lambda j, i: (0, 0)),
            pl.BlockSpec((SEQ_CLIP, VAE_C), lambda j, i: (0, 0)),
            pl.BlockSpec((SEQ_CLIP, 1), lambda j, i: (0, 0)),
        ],
        out_specs=pl.BlockSpec((bt, SEQ_CLIP, hblk), lambda j, i: (i, 0, j)),
    )

    return pl.pallas_call(
        functools.partial(adapter_kernel, bt),
        out_shape=jax.ShapeDtypeStruct((B, SEQ_CLIP, HID), out_dtype),
        grid_spec=grid_spec,
        compiler_params=pltpu.CompilerParams(
            dimension_semantics=("parallel", "parallel"),
            vmem_limit_bytes=32 * 1024 * 1024),
        cost_estimate=cost,
    )(clip_bf16, pooled, w1t, b1r, w2a, w2b, b2r)


def reference(clip_embedding, vae_embedding, w1, b1, w2, b2):
    """Pure-JAX f32 reference mirroring the PyTorch forward."""
    B, C, H, W = vae_embedding.shape
    pooled = vae_embedding.reshape(B, C, H // 2, 2, W // 2, 2).max(axis=(3, 5))
    v = pooled.reshape(B, C, -1)                              # (B, 4, 1024)
    v = jnp.einsum("bcd,ed->bce", v, w1,
                   precision=jax.lax.Precision.HIGHEST) + b1  # vae2clip
    cat = jnp.concatenate([clip_embedding, v], axis=1)        # (B, 81, 1024)
    x = jnp.swapaxes(cat, 1, 2)                               # (B, 1024, 81)
    x = jnp.einsum("bdc,jc->bdj", x, w2,
                   precision=jax.lax.Precision.HIGHEST) + b2  # Linear(81,77)
    return jnp.swapaxes(x, 1, 2)                              # (B, 77, 1024)


if __name__ == "__main__":
    B = 2
    key = jax.random.PRNGKey(0)
    k1, k2, k3, k4, k5, k6 = jax.random.split(key, 6)

    # Deterministic synthetic parameters (shapes from the module __init__).
    # vae2clip = nn.Linear(1024, 1024): PyTorch-style uniform(+-1/sqrt(1024)).
    w1 = jax.random.uniform(k1, (HID, HID), jnp.float32, -1 / 32, 1 / 32)
    b1 = jax.random.uniform(k2, (HID,), jnp.float32, -1 / 32, 1 / 32)
    # linear = nn.Linear(81, 77) with weight = eye(77, 81); a small
    # deterministic perturbation is added so the vae branch is exercised.
    w2 = jnp.eye(SEQ_CLIP, SEQ_CAT, dtype=jnp.float32) + \
        0.01 * jax.random.normal(k3, (SEQ_CLIP, SEQ_CAT), jnp.float32)
    b2 = jax.random.uniform(k4, (SEQ_CLIP,), jnp.float32, -1 / 9, 1 / 9)

    clip_embedding = jax.random.normal(k5, (B, SEQ_CLIP, HID), jnp.float32)
    vae_embedding = jax.random.normal(k6, (B, VAE_C, VAE_HW, VAE_HW),
                                      jnp.float32)

    # One-time parameter prep (transpose / bf16 casts / W2 split) outside jit.
    params = prepare_params(w1, b1, w2, b2)

    out = dream_pose_adapter(clip_embedding, vae_embedding, *params)
    out = jax.block_until_ready(out)

    ref = reference(clip_embedding, vae_embedding, w1, b1, w2, b2)
    # bf16 activation/weight streams (f32 accumulation) -> 2e-2 tolerance.
    np.testing.assert_allclose(np.asarray(out), np.asarray(ref),
                               rtol=2e-2, atol=2e-2)

    print("KERNEL_OK")
</pallas_src>

<mosaic_0001>
module attributes {stable_mosaic.version = 11 : i64} {
  func.func @adapter_kernel(%arg0: i32, %arg1: i32, %arg2: memref<2x77x1024xbf16, #tpu.memory_space<vmem>>, %arg3: memref<8x1024xbf16, #tpu.memory_space<vmem>>, %arg4: memref<1024x1024xbf16, #tpu.memory_space<vmem>>, %arg5: memref<1x1024xf32, #tpu.memory_space<vmem>>, %arg6: memref<77x77xbf16, #tpu.memory_space<vmem>>, %arg7: memref<77x4xbf16, #tpu.memory_space<vmem>>, %arg8: memref<77x1xf32, #tpu.memory_space<vmem>>, %arg9: memref<2x77x1024xf32, #tpu.memory_space<vmem>>) attributes {dimension_semantics = [#tpu.dimension_semantics<parallel>, #tpu.dimension_semantics<parallel>], iteration_bounds = array<i64: 1, 1>, scalar_prefetch = 0 : i64, scratch_operands = 0 : i64, tpu.core_type = #tpu.core_type<tc>, window_params = [{transform_indices = @transform_0, window_bounds = array<i64: 2, 77, 1024>}, {transform_indices = @transform_1, window_bounds = array<i64: 8, 1024>}, {transform_indices = @transform_2, window_bounds = array<i64: 1024, 1024>}, {transform_indices = @transform_3, window_bounds = array<i64: 1, 1024>}, {pipeline_mode = #tpu.pipeline_mode<synchronous>, transform_indices = @transform_4, window_bounds = array<i64: 77, 77>}, {pipeline_mode = #tpu.pipeline_mode<synchronous>, transform_indices = @transform_5, window_bounds = array<i64: 77, 4>}, {pipeline_mode = #tpu.pipeline_mode<synchronous>, transform_indices = @transform_6, window_bounds = array<i64: 77, 1>}, {transform_indices = @transform_7, window_bounds = array<i64: 2, 77, 1024>}]} {
    %c0 = arith.constant 0 : index
    %c0_0 = arith.constant 0 : index
    %0 = vector.load %arg3[%c0, %c0_0] : memref<8x1024xbf16, #tpu.memory_space<vmem>>, vector<8x1024xbf16>
    %c0_1 = arith.constant 0 : index
    %c0_2 = arith.constant 0 : index
    %1 = vector.load %arg4[%c0_1, %c0_2] : memref<1024x1024xbf16, #tpu.memory_space<vmem>>, vector<1024x1024xbf16>
    %cst = arith.constant dense<0.000000e+00> : vector<8x1024xf32>
    %2 = tpu.matmul %0, %1, %cst {dimension_numbers = #tpu.dot_dimension_numbers<[1], [0], [0], [1], [0, 0, 1, 1], [], []>} : vector<8x1024xbf16>, vector<1024x1024xbf16>, vector<8x1024xf32> -> vector<8x1024xf32>
    %c0_3 = arith.constant 0 : index
    %c0_4 = arith.constant 0 : index
    %3 = vector.load %arg5[%c0_3, %c0_4] : memref<1x1024xf32, #tpu.memory_space<vmem>>, vector<1x1024xf32>
    %4 = vector.broadcast %3 : vector<1x1024xf32> to vector<8x1024xf32>
    %5 = arith.addf %2, %4 : vector<8x1024xf32>
    %6 = arith.truncf %5 : vector<8x1024xf32> to vector<8x1024xbf16>
    %c0_5 = arith.constant 0 : index
    %c0_6 = arith.constant 0 : index
    %7 = vector.load %arg6[%c0_5, %c0_6] : memref<77x77xbf16, #tpu.memory_space<vmem>>, vector<77x77xbf16>
    %c0_7 = arith.constant 0 : index
    %c0_8 = arith.constant 0 : index
    %8 = vector.load %arg7[%c0_7, %c0_8] : memref<77x4xbf16, #tpu.memory_space<vmem>>, vector<77x4xbf16>
    %c0_9 = arith.constant 0 : index
    %c0_10 = arith.constant 0 : index
    %9 = vector.load %arg8[%c0_9, %c0_10] : memref<77x1xf32, #tpu.memory_space<vmem>>, vector<77x1xf32>
    %10 = vector.shape_cast %9 : vector<77x1xf32> to vector<77x1xf32>
    %11 = vector.broadcast %10 : vector<77x1xf32> to vector<77x1024xf32>
    %c0_11 = arith.constant 0 : index
    %c0_12 = arith.constant 0 : index
    %c0_13 = arith.constant 0 : index
    %12 = vector.load %arg2[%c0_11, %c0_12, %c0_13] : memref<2x77x1024xbf16, #tpu.memory_space<vmem>>, vector<1x77x1024xbf16>
    %13 = vector.shape_cast %12 : vector<1x77x1024xbf16> to vector<77x1024xbf16>
    %cst_14 = arith.constant dense<0.000000e+00> : vector<77x1024xf32>
    %14 = tpu.matmul %7, %13, %cst_14 {dimension_numbers = #tpu.dot_dimension_numbers<[1], [0], [0], [1], [0, 0, 1, 1], [], []>} : vector<77x77xbf16>, vector<77x1024xbf16>, vector<77x1024xf32> -> vector<77x1024xf32>
    %15 = vector.extract_strided_slice %6 {offsets = [0, 0], sizes = [4, 1024], strides = [1, 1]} : vector<8x1024xbf16> to vector<4x1024xbf16>
    %cst_15 = arith.constant dense<0.000000e+00> : vector<77x1024xf32>
    %16 = tpu.matmul %8, %15, %cst_15 {dimension_numbers = #tpu.dot_dimension_numbers<[1], [0], [0], [1], [0, 0, 1, 1], [], []>} : vector<77x4xbf16>, vector<4x1024xbf16>, vector<77x1024xf32> -> vector<77x1024xf32>
    %17 = arith.addf %14, %16 : vector<77x1024xf32>
    %18 = arith.addf %17, %11 : vector<77x1024xf32>
    %c0_16 = arith.constant 0 : index
    %c0_17 = arith.constant 0 : index
    %c0_18 = arith.constant 0 : index
    %19 = vector.load %arg9[%c0_16, %c0_17, %c0_18] : memref<2x77x1024xf32, #tpu.memory_space<vmem>>, vector<1x77x1024xf32>
    %20 = vector.shape_cast %19 : vector<1x77x1024xf32> to vector<77x1024xf32>
    %21 = vector.shape_cast %18 : vector<77x1024xf32> to vector<1x77x1024xf32>
    tpu.vector_store %arg9[%c0_16, %c0_17, %c0_18], %21 {strides = array<i32>} : memref<2x77x1024xf32, #tpu.memory_space<vmem>>, vector<1x77x1024xf32>,
    %c1 = arith.constant 1 : index
    %c0_19 = arith.constant 0 : index
    %c0_20 = arith.constant 0 : index
    %22 = vector.load %arg2[%c1, %c0_19, %c0_20] : memref<2x77x1024xbf16, #tpu.memory_space<vmem>>, vector<1x77x1024xbf16>
    %23 = vector.shape_cast %22 : vector<1x77x1024xbf16> to vector<77x1024xbf16>
    %cst_21 = arith.constant dense<0.000000e+00> : vector<77x1024xf32>
    %24 = tpu.matmul %7, %23, %cst_21 {dimension_numbers = #tpu.dot_dimension_numbers<[1], [0], [0], [1], [0, 0, 1, 1], [], []>} : vector<77x77xbf16>, vector<77x1024xbf16>, vector<77x1024xf32> -> vector<77x1024xf32>
    %25 = vector.extract_strided_slice %6 {offsets = [4, 0], sizes = [4, 1024], strides = [1, 1]} : vector<8x1024xbf16> to vector<4x1024xbf16>
    %cst_22 = arith.constant dense<0.000000e+00> : vector<77x1024xf32>
    %26 = tpu.matmul %8, %25, %cst_22 {dimension_numbers = #tpu.dot_dimension_numbers<[1], [0], [0], [1], [0, 0, 1, 1], [], []>} : vector<77x4xbf16>, vector<4x1024xbf16>, vector<77x1024xf32> -> vector<77x1024xf32>
    %27 = arith.addf %24, %26 : vector<77x1024xf32>
    %28 = arith.addf %27, %11 : vector<77x1024xf32>
    %c1_23 = arith.constant 1 : index
    %c0_24 = arith.constant 0 : index
    %c0_25 = arith.constant 0 : index
    %29 = vector.load %arg9[%c1_23, %c0_24, %c0_25] : memref<2x77x1024xf32, #tpu.memory_space<vmem>>, vector<1x77x1024xf32>
    %30 = vector.shape_cast %29 : vector<1x77x1024xf32> to vector<77x1024xf32>
    %31 = vector.shape_cast %28 : vector<77x1024xf32> to vector<1x77x1024xf32>
    tpu.vector_store %arg9[%c1_23, %c0_24, %c0_25], %31 {strides = array<i32>} : memref<2x77x1024xf32, #tpu.memory_space<vmem>>, vector<1x77x1024xf32>,
    return
  }
  func.func @transform_0(%arg0: i32, %arg1: i32) -> (i32, i32, i32) {
    %c0_i32 = arith.constant 0 : i32
    %c0_i32_0 = arith.constant 0 : i32
    return %arg1, %c0_i32, %arg0 : i32, i32, i32
  }
  func.func @transform_1(%arg0: i32, %arg1: i32) -> (i32, i32) {
    %c0_i32 = arith.constant 0 : i32
    %c0_i32_0 = arith.constant 0 : i32
    return %arg1, %c0_i32 : i32, i32
  }
  func.func @transform_2(%arg0: i32, %arg1: i32) -> (i32, i32) {
    %c0_i32 = arith.constant 0 : i32
    %c0_i32_0 = arith.constant 0 : i32
    return %c0_i32, %arg0 : i32, i32
  }
  func.func @transform_3(%arg0: i32, %arg1: i32) -> (i32, i32) {
    %c0_i32 = arith.constant 0 : i32
    %c0_i32_0 = arith.constant 0 : i32
    return %c0_i32, %arg0 : i32, i32
  }
  func.func @transform_4(%arg0: i32, %arg1: i32) -> (i32, i32) {
    %c0_i32 = arith.constant 0 : i32
    %c0_i32_0 = arith.constant 0 : i32
    %c0_i32_1 = arith.constant 0 : i32
    return %c0_i32, %c0_i32_0 : i32, i32
  }
  func.func @transform_5(%arg0: i32, %arg1: i32) -> (i32, i32) {
    %c0_i32 = arith.constant 0 : i32
    %c0_i32_0 = arith.constant 0 : i32
    %c0_i32_1 = arith.constant 0 : i32
    return %c0_i32, %c0_i32_0 : i32, i32
  }
  func.func @transform_6(%arg0: i32, %arg1: i32) -> (i32, i32) {
    %c0_i32 = arith.constant 0 : i32
    %c0_i32_0 = arith.constant 0 : i32
    %c0_i32_1 = arith.constant 0 : i32
    return %c0_i32, %c0_i32_0 : i32, i32
  }
  func.func @transform_7(%arg0: i32, %arg1: i32) -> (i32, i32, i32) {
    %c0_i32 = arith.constant 0 : i32
    %c0_i32_0 = arith.constant 0 : i32
    return %arg1, %c0_i32, %arg0 : i32, i32, i32
  }
}

</mosaic_0001>

<llo_original>
// kernel: dream_pose_adapter.1
$region0: #{dream_pose_adapter.1}
  #allocation0 [shape = 'u32[]', space=smem, size = 0x4, offset = 0x4, fixed_abs, tag = 'smem constant byte address 0x4 - core index']
  #allocation1 [shape = 'u32[72,128]{1,0:T(1,128)}', space=vmem, size = 0x9000, scoped, tag = 'internal scratch']
  %s0 = inlined_call_operand.vmem [shape: bf16[2,77,1024], index: 0, kind: input, shape index: {}]
  %s1 = inlined_call_operand.vmem [shape: bf16[8,1024], index: 1, kind: input, shape index: {}]
  %s2 = inlined_call_operand.vmem [shape: bf16[1024,1024], index: 2, kind: input, shape index: {}]
  %s3 = inlined_call_operand.vmem [shape: f32[1,1024], index: 3, kind: input, shape index: {}]
  %s4 = inlined_call_operand.vmem [shape: bf16[77,77], index: 4, kind: input, shape index: {}]
  %s5 = inlined_call_operand.vmem [shape: bf16[77,4], index: 5, kind: input, shape index: {}]
  %s6 = inlined_call_operand.vmem [shape: f32[77,1], index: 6, kind: input, shape index: {}]
  %s7 = inlined_call_operand.vmem [shape: f32[2,77,1024], index: 7, kind: output, shape index: {}]
  %s8 = sld [smem:[#allocation0]]
  $region38: #{dream_pose_adapter.1} parent=0
    _
  %s10 = ssub.s32 1, %s8
  %s11 = scalar_select 0, %s10, %s8
  // Predicated region
  $region2: #{dream_pose_adapter.1} parent=0 // pred_check
    _
  $region3: #{dream_pose_adapter.1} parent=0 // pred_check_branch
    %13 = sbr.rel (0) target = $region5
  $region4: #{dream_pose_adapter.1} parent=0 // pred_region
    _
  $region5: #{dream_pose_adapter.1} parent=0 // pred_fallthru
    _
  // Predicated region
  $region6: #{dream_pose_adapter.1} parent=0 // pred_check
    _
  $region7: #{dream_pose_adapter.1} parent=0 // pred_check_branch
    %15 = sbr.rel (0) target = $region9
  $region8: #{dream_pose_adapter.1} parent=0 // pred_region
    _
  $region9: #{dream_pose_adapter.1} parent=0 // pred_fallthru
    _
  // Predicated region
  $region10: #{dream_pose_adapter.1} parent=0 // pred_check
    _
  $region11: #{dream_pose_adapter.1} parent=0 // pred_check_branch
    %17 = sbr.rel (0) target = $region13
  $region12: #{dream_pose_adapter.1} parent=0 // pred_region
    _
  $region13: #{dream_pose_adapter.1} parent=0 // pred_fallthru
    _
  // Predicated region
  $region14: #{dream_pose_adapter.1} parent=0 // pred_check
    _
  $region15: #{dream_pose_adapter.1} parent=0 // pred_check_branch
    %19 = sbr.rel (0) target = $region17
  $region16: #{dream_pose_adapter.1} parent=0 // pred_region
    _
  $region17: #{dream_pose_adapter.1} parent=0 // pred_fallthru
    _
  // Predicated region
  $region18: #{dream_pose_adapter.1} parent=0 // pred_check
    _
  $region19: #{dream_pose_adapter.1} parent=0 // pred_check_branch
    %21 = sbr.rel (0) target = $region21
  $region20: #{dream_pose_adapter.1} parent=0 // pred_region
    _
  $region21: #{dream_pose_adapter.1} parent=0 // pred_fallthru
    _
  // Predicated region
  $region22: #{dream_pose_adapter.1} parent=0 // pred_check
    _
  $region23: #{dream_pose_adapter.1} parent=0 // pred_check_branch
    %23 = sbr.rel (0) target = $region25
  $region24: #{dream_pose_adapter.1} parent=0 // pred_region
    _
  $region25: #{dream_pose_adapter.1} parent=0 // pred_fallthru
    _
  // Predicated region
  $region26: #{dream_pose_adapter.1} parent=0 // pred_check
    _
  $region27: #{dream_pose_adapter.1} parent=0 // pred_check_branch
    %25 = sbr.rel (0) target = $region29
  $region28: #{dream_pose_adapter.1} parent=0 // pred_region
    _
  $region29: #{dream_pose_adapter.1} parent=0 // pred_fallthru
    _
  %v27 = vld [vmem:[%s1] sm:$0xff]
  %v28 = vld [vmem:[%s1 + $0x8] sm:$0xff]
  %v29 = vld [vmem:[%s1 + $0x10] sm:$0xff]
  %v30 = vld [vmem:[%s1 + $0x18] sm:$0xff]
  %v31 = vld [vmem:[%s2] sm:$0xff]
  %v32 = vld [vmem:[%s2 + $0x8] sm:$0xff]
  %v33 = vld [vmem:[%s2 + $0x10] sm:$0xff]
  %v34 = vld [vmem:[%s2 + $0x18] sm:$0xff]
  %v35 = vld [vmem:[%s2 + $0x20] sm:$0xff]
  %v36 = vld [vmem:[%s2 + $0x28] sm:$0xff]
  %v37 = vld [vmem:[%s2 + $0x30] sm:$0xff]
  %v38 = vld [vmem:[%s2 + $0x38] sm:$0xff]
  %v39 = vld [vmem:[%s2 + $0x40] sm:$0xff]
  %v40 = vld [vmem:[%s2 + $0x48] sm:$0xff]
  %v41 = vld [vmem:[%s2 + $0x50] sm:$0xff]
  %v42 = vld [vmem:[%s2 + $0x58] sm:$0xff]
  %v43 = vld [vmem:[%s2 + $0x60] sm:$0xff]
  %v44 = vld [vmem:[%s2 + $0x68] sm:$0xff]
  %v45 = vld [vmem:[%s2 + $0x70] sm:$0xff]
  %v46 = vld [vmem:[%s2 + $0x78] sm:$0xff]
  %v47 = vld [vmem:[%s2 + $0x80] sm:$0xff]
  %v48 = vld [vmem:[%s2 + $0x88] sm:$0xff]
  %v49 = vld [vmem:[%s2 + $0x90] sm:$0xff]
  %v50 = vld [vmem:[%s2 + $0x98] sm:$0xff]
  %v51 = vld [vmem:[%s2 + $0xa0] sm:$0xff]
  %v52 = vld [vmem:[%s2 + $0xa8] sm:$0xff]
  %v53 = vld [vmem:[%s2 + $0xb0] sm:$0xff]
  %v54 = vld [vmem:[%s2 + $0xb8] sm:$0xff]
  %v55 = vld [vmem:[%s2 + $0xc0] sm:$0xff]
  %v56 = vld [vmem:[%s2 + $0xc8] sm:$0xff]
  %v57 = vld [vmem:[%s2 + $0xd0] sm:$0xff]
  %v58 = vld [vmem:[%s2 + $0xd8] sm:$0xff]
  %v59 = vld [vmem:[%s2 + $0xe0] sm:$0xff]
  %v60 = vld [vmem:[%s2 + $0xe8] sm:$0xff]
  %v61 = vld [vmem:[%s2 + $0xf0] sm:$0xff]
  %v62 = vld [vmem:[%s2 + $0xf8] sm:$0xff]
  %v63 = vld [vmem:[%s2 + $0x100] sm:$0xff]
  %v64 = vld [vmem:[%s2 + $0x108] sm:$0xff]
  %v65 = vld [vmem:[%s2 + $0x110] sm:$0xff]
  %v66 = vld [vmem:[%s2 + $0x118] sm:$0xff]
  %v67 = vld [vmem:[%s2 + $0x120] sm:$0xff]
  %v68 = vld [vmem:[%s2 + $0x128] sm:$0xff]
  %v69 = vld [vmem:[%s2 + $0x130] sm:$0xff]
  %v70 = vld [vmem:[%s2 + $0x138] sm:$0xff]
  %v71 = vld [vmem:[%s2 + $0x140] sm:$0xff]
  %v72 = vld [vmem:[%s2 + $0x148] sm:$0xff]
  %v73 = vld [vmem:[%s2 + $0x150] sm:$0xff]
  %v74 = vld [vmem:[%s2 + $0x158] sm:$0xff]
  %v75 = vld [vmem:[%s2 + $0x160] sm:$0xff]
  %v76 = vld [vmem:[%s2 + $0x168] sm:$0xff]
  %v77 = vld [vmem:[%s2 + $0x170] sm:$0xff]
  %v78 = vld [vmem:[%s2 + $0x178] sm:$0xff]
  %v79 = vld [vmem:[%s2 + $0x180] sm:$0xff]
  %v80 = vld [vmem:[%s2 + $0x188] sm:$0xff]
  %v81 = vld [vmem:[%s2 + $0x190] sm:$0xff]
  %v82 = vld [vmem:[%s2 + $0x198] sm:$0xff]
  %v83 = vld [vmem:[%s2 + $0x1a0] sm:$0xff]
  %v84 = vld [vmem:[%s2 + $0x1a8] sm:$0xff]
  %v85 = vld [vmem:[%s2 + $0x1b0] sm:$0xff]
  %v86 = vld [vmem:[%s2 + $0x1b8] sm:$0xff]
  %v87 = vld [vmem:[%s2 + $0x1c0] sm:$0xff]
  %v88 = vld [vmem:[%s2 + $0x1c8] sm:$0xff]
  %v89 = vld [vmem:[%s2 + $0x1d0] sm:$0xff]
  %v90 = vld [vmem:[%s2 + $0x1d8] sm:$0xff]
  %v91 = vld [vmem:[%s2 + $0x1e0] sm:$0xff]
  %v92 = vld [vmem:[%s2 + $0x1e8] sm:$0xff]
  %v93 = vld [vmem:[%s2 + $0x1f0] sm:$0xff]
  %v94 = vld [vmem:[%s2 + $0x1f8] sm:$0xff]
  %v95 = vld [vmem:[%s2 + $0x200] sm:$0xff]
  %v96 = vld [vmem:[%s2 + $0x208] sm:$0xff]
  %v97 = vld [vmem:[%s2 + $0x210] sm:$0xff]
  %v98 = vld [vmem:[%s2 + $0x218] sm:$0xff]
  %v99 = vld [vmem:[%s2 + $0x220] sm:$0xff]
  %v100 = vld [vmem:[%s2 + $0x228] sm:$0xff]
  %v101 = vld [vmem:[%s2 + $0x230] sm:$0xff]
  %v102 = vld [vmem:[%s2 + $0x238] sm:$0xff]
  %v103 = vld [vmem:[%s2 + $0x240] sm:$0xff]
  %v104 = vld [vmem:[%s2 + $0x248] sm:$0xff]
  %v105 = vld [vmem:[%s2 + $0x250] sm:$0xff]
  %v106 = vld [vmem:[%s2 + $0x258] sm:$0xff]
  %v107 = vld [vmem:[%s2 + $0x260] sm:$0xff]
  %v108 = vld [vmem:[%s2 + $0x268] sm:$0xff]
  %v109 = vld [vmem:[%s2 + $0x270] sm:$0xff]
  %v110 = vld [vmem:[%s2 + $0x278] sm:$0xff]
  %v111 = vld [vmem:[%s2 + $0x280] sm:$0xff]
  %v112 = vld [vmem:[%s2 + $0x288] sm:$0xff]
  %v113 = vld [vmem:[%s2 + $0x290] sm:$0xff]
  %v114 = vld [vmem:[%s2 + $0x298] sm:$0xff]
  %v115 = vld [vmem:[%s2 + $0x2a0] sm:$0xff]
  %v116 = vld [vmem:[%s2 + $0x2a8] sm:$0xff]
  %v117 = vld [vmem:[%s2 + $0x2b0] sm:$0xff]
  %v118 = vld [vmem:[%s2 + $0x2b8] sm:$0xff]
  %v119 = vld [vmem:[%s2 + $0x2c0] sm:$0xff]
  %v120 = vld [vmem:[%s2 + $0x2c8] sm:$0xff]
  %v121 = vld [vmem:[%s2 + $0x2d0] sm:$0xff]
  %v122 = vld [vmem:[%s2 + $0x2d8] sm:$0xff]
  %v123 = vld [vmem:[%s2 + $0x2e0] sm:$0xff]
  %v124 = vld [vmem:[%s2 + $0x2e8] sm:$0xff]
  %v125 = vld [vmem:[%s2 + $0x2f0] sm:$0xff]
  %v126 = vld [vmem:[%s2 + $0x2f8] sm:$0xff]
  %v127 = vld [vmem:[%s2 + $0x300] sm:$0xff]
  %v128 = vld [vmem:[%s2 + $0x308] sm:$0xff]
  %v129 = vld [vmem:[%s2 + $0x310] sm:$0xff]
  %v130 = vld [vmem:[%s2 + $0x318] sm:$0xff]
  %v131 = vld [vmem:[%s2 + $0x320] sm:$0xff]
  %v132 = vld [vmem:[%s2 + $0x328] sm:$0xff]
  %v133 = vld [vmem:[%s2 + $0x330] sm:$0xff]
  %v134 = vld [vmem:[%s2 + $0x338] sm:$0xff]
  %v135 = vld [vmem:[%s2 + $0x340] sm:$0xff]
  %v136 = vld [vmem:[%s2 + $0x348] sm:$0xff]
  %v137 = vld [vmem:[%s2 + $0x350] sm:$0xff]
  %v138 = vld [vmem:[%s2 + $0x358] sm:$0xff]
  %v139 = vld [vmem:[%s2 + $0x360] sm:$0xff]
  %v140 = vld [vmem:[%s2 + $0x368] sm:$0xff]
  %v141 = vld [vmem:[%s2 + $0x370] sm:$0xff]
  %v142 = vld [vmem:[%s2 + $0x378] sm:$0xff]
  %v143 = vld [vmem:[%s2 + $0x380] sm:$0xff]
  %v144 = vld [vmem:[%s2 + $0x388] sm:$0xff]
  %v145 = vld [vmem:[%s2 + $0x390] sm:$0xff]
  %v146 = vld [vmem:[%s2 + $0x398] sm:$0xff]
  %v147 = vld [vmem:[%s2 + $0x3a0] sm:$0xff]
  %v148 = vld [vmem:[%s2 + $0x3a8] sm:$0xff]
  %v149 = vld [vmem:[%s2 + $0x3b0] sm:$0xff]
  %v150 = vld [vmem:[%s2 + $0x3b8] sm:$0xff]
  %v151 = vld [vmem:[%s2 + $0x3c0] sm:$0xff]
  %v152 = vld [vmem:[%s2 + $0x3c8] sm:$0xff]
  %v153 = vld [vmem:[%s2 + $0x3d0] sm:$0xff]
  %v154 = vld [vmem:[%s2 + $0x3d8] sm:$0xff]
  %v155 = vld [vmem:[%s2 + $0x3e0] sm:$0xff]
  %v156 = vld [vmem:[%s2 + $0x3e8] sm:$0xff]
  %v157 = vld [vmem:[%s2 + $0x3f0] sm:$0xff]
  %v158 = vld [vmem:[%s2 + $0x3f8] sm:$0xff]
  %v159 = vld [vmem:[%s2 + $0x400] sm:$0xff]
  %v160 = vld [vmem:[%s2 + $0x408] sm:$0xff]
  %v161 = vld [vmem:[%s2 + $0x410] sm:$0xff]
  %v162 = vld [vmem:[%s2 + $0x418] sm:$0xff]
  %v163 = vld [vmem:[%s2 + $0x420] sm:$0xff]
  %v164 = vld [vmem:[%s2 + $0x428] sm:$0xff]
  %v165 = vld [vmem:[%s2 + $0x430] sm:$0xff]
  %v166 = vld [vmem:[%s2 + $0x438] sm:$0xff]
  %v167 = vld [vmem:[%s2 + $0x440] sm:$0xff]
  %v168 = vld [vmem:[%s2 + $0x448] sm:$0xff]
  %v169 = vld [vmem:[%s2 + $0x450] sm:$0xff]
  %v170 = vld [vmem:[%s2 + $0x458] sm:$0xff]
  %v171 = vld [vmem:[%s2 + $0x460] sm:$0xff]
  %v172 = vld [vmem:[%s2 + $0x468] sm:$0xff]
  %v173 = vld [vmem:[%s2 + $0x470] sm:$0xff]
  %v174 = vld [vmem:[%s2 + $0x478] sm:$0xff]
  %v175 = vld [vmem:[%s2 + $0x480] sm:$0xff]
  %v176 = vld [vmem:[%s2 + $0x488] sm:$0xff]
  %v177 = vld [vmem:[%s2 + $0x490] sm:$0xff]
  %v178 = vld [vmem:[%s2 + $0x498] sm:$0xff]
  %v179 = vld [vmem:[%s2 + $0x4a0] sm:$0xff]
  %v180 = vld [vmem:[%s2 + $0x4a8] sm:$0xff]
  %v181 = vld [vmem:[%s2 + $0x4b0] sm:$0xff]
  %v182 = vld [vmem:[%s2 + $0x4b8] sm:$0xff]
  %v183 = vld [vmem:[%s2 + $0x4c0] sm:$0xff]
  %v184 = vld [vmem:[%s2 + $0x4c8] sm:$0xff]
  %v185 = vld [vmem:[%s2 + $0x4d0] sm:$0xff]
  %v186 = vld [vmem:[%s2 + $0x4d8] sm:$0xff]
  %v187 = vld [vmem:[%s2 + $0x4e0] sm:$0xff]
  %v188 = vld [vmem:[%s2 + $0x4e8] sm:$0xff]
  %v189 = vld [vmem:[%s2 + $0x4f0] sm:$0xff]
  %v190 = vld [vmem:[%s2 + $0x4f8] sm:$0xff]
  %v191 = vld [vmem:[%s2 + $0x500] sm:$0xff]
  %v192 = vld [vmem:[%s2 + $0x508] sm:$0xff]
  %v193 = vld [vmem:[%s2 + $0x510] sm:$0xff]
  %v194 = vld [vmem:[%s2 + $0x518] sm:$0xff]
  %v195 = vld [vmem:[%s2 + $0x520] sm:$0xff]
  %v196 = vld [vmem:[%s2 + $0x528] sm:$0xff]
  %v197 = vld [vmem:[%s2 + $0x530] sm:$0xff]
  %v198 = vld [vmem:[%s2 + $0x538] sm:$0xff]
  %v199 = vld [vmem:[%s2 + $0x540] sm:$0xff]
  %v200 = vld [vmem:[%s2 + $0x548] sm:$0xff]
  %v201 = vld [vmem:[%s2 + $0x550] sm:$0xff]
  %v202 = vld [vmem:[%s2 + $0x558] sm:$0xff]
  %v203 = vld [vmem:[%s2 + $0x560] sm:$0xff]
  %v204 = vld [vmem:[%s2 + $0x568] sm:$0xff]
  %v205 = vld [vmem:[%s2 + $0x570] sm:$0xff]
  %v206 = vld [vmem:[%s2 + $0x578] sm:$0xff]
  %v207 = vld [vmem:[%s2 + $0x580] sm:$0xff]
  %v208 = vld [vmem:[%s2 + $0x588] sm:$0xff]
  %v209 = vld [vmem:[%s2 + $0x590] sm:$0xff]
  %v210 = vld [vmem:[%s2 + $0x598] sm:$0xff]
  %v211 = vld [vmem:[%s2 + $0x5a0] sm:$0xff]
  %v212 = vld [vmem:[%s2 + $0x5a8] sm:$0xff]
  %v213 = vld [vmem:[%s2 + $0x5b0] sm:$0xff]
  %v214 = vld [vmem:[%s2 + $0x5b8] sm:$0xff]
  %v215 = vld [vmem:[%s2 + $0x5c0] sm:$0xff]
  %v216 = vld [vmem:[%s2 + $0x5c8] sm:$0xff]
  %v217 = vld [vmem:[%s2 + $0x5d0] sm:$0xff]
  %v218 = vld [vmem:[%s2 + $0x5d8] sm:$0xff]
  %v219 = vld [vmem:[%s2 + $0x5e0] sm:$0xff]
  %v220 = vld [vmem:[%s2 + $0x5e8] sm:$0xff]
  %v221 = vld [vmem:[%s2 + $0x5f0] sm:$0xff]
  %v222 = vld [vmem:[%s2 + $0x5f8] sm:$0xff]
  %v223 = vld [vmem:[%s2 + $0x600] sm:$0xff]
  %v224 = vld [vmem:[%s2 + $0x608] sm:$0xff]
  %v225 = vld [vmem:[%s2 + $0x610] sm:$0xff]
  %v226 = vld [vmem:[%s2 + $0x618] sm:$0xff]
  %v227 = vld [vmem:[%s2 + $0x620] sm:$0xff]
  %v228 = vld [vmem:[%s2 + $0x628] sm:$0xff]
  %v229 = vld [vmem:[%s2 + $0x630] sm:$0xff]
  %v230 = vld [vmem:[%s2 + $0x638] sm:$0xff]
  %v231 = vld [vmem:[%s2 + $0x640] sm:$0xff]
  %v232 = vld [vmem:[%s2 + $0x648] sm:$0xff]
  %v233 = vld [vmem:[%s2 + $0x650] sm:$0xff]
  %v234 = vld [vmem:[%s2 + $0x658] sm:$0xff]
  %v235 = vld [vmem:[%s2 + $0x660] sm:$0xff]
  %v236 = vld [vmem:[%s2 + $0x668] sm:$0xff]
  %v237 = vld [vmem:[%s2 + $0x670] sm:$0xff]
  %v238 = vld [vmem:[%s2 + $0x678] sm:$0xff]
  %v239 = vld [vmem:[%s2 + $0x680] sm:$0xff]
  %v240 = vld [vmem:[%s2 + $0x688] sm:$0xff]
  %v241 = vld [vmem:[%s2 + $0x690] sm:$0xff]
  %v242 = vld [vmem:[%s2 + $0x698] sm:$0xff]
  %v243 = vld [vmem:[%s2 + $0x6a0] sm:$0xff]
  %v244 = vld [vmem:[%s2 + $0x6a8] sm:$0xff]
  %v245 = vld [vmem:[%s2 + $0x6b0] sm:$0xff]
  %v246 = vld [vmem:[%s2 + $0x6b8] sm:$0xff]
  %v247 = vld [vmem:[%s2 + $0x6c0] sm:$0xff]
  %v248 = vld [vmem:[%s2 + $0x6c8] sm:$0xff]
  %v249 = vld [vmem:[%s2 + $0x6d0] sm:$0xff]
  %v250 = vld [vmem:[%s2 + $0x6d8] sm:$0xff]
  %v251 = vld [vmem:[%s2 + $0x6e0] sm:$0xff]
  %v252 = vld [vmem:[%s2 + $0x6e8] sm:$0xff]
  %v253 = vld [vmem:[%s2 + $0x6f0] sm:$0xff]
  %v254 = vld [vmem:[%s2 + $0x6f8] sm:$0xff]
  %v255 = vld [vmem:[%s2 + $0x700] sm:$0xff]
  %v256 = vld [vmem:[%s2 + $0x708] sm:$0xff]
  %v257 = vld [vmem:[%s2 + $0x710] sm:$0xff]
  %v258 = vld [vmem:[%s2 + $0x718] sm:$0xff]
  %v259 = vld [vmem:[%s2 + $0x720] sm:$0xff]
  %v260 = vld [vmem:[%s2 + $0x728] sm:$0xff]
  %v261 = vld [vmem:[%s2 + $0x730] sm:$0xff]
  %v262 = vld [vmem:[%s2 + $0x738] sm:$0xff]
  %v263 = vld [vmem:[%s2 + $0x740] sm:$0xff]
  %v264 = vld [vmem:[%s2 + $0x748] sm:$0xff]
  %v265 = vld [vmem:[%s2 + $0x750] sm:$0xff]
  %v266 = vld [vmem:[%s2 + $0x758] sm:$0xff]
  %v267 = vld [vmem:[%s2 + $0x760] sm:$0xff]
  %v268 = vld [vmem:[%s2 + $0x768] sm:$0xff]
  %v269 = vld [vmem:[%s2 + $0x770] sm:$0xff]
  %v270 = vld [vmem:[%s2 + $0x778] sm:$0xff]
  %v271 = vld [vmem:[%s2 + $0x780] sm:$0xff]
  %v272 = vld [vmem:[%s2 + $0x788] sm:$0xff]
  %v273 = vld [vmem:[%s2 + $0x790] sm:$0xff]
  %v274 = vld [vmem:[%s2 + $0x798] sm:$0xff]
  %v275 = vld [vmem:[%s2 + $0x7a0] sm:$0xff]
  %v276 = vld [vmem:[%s2 + $0x7a8] sm:$0xff]
  %v277 = vld [vmem:[%s2 + $0x7b0] sm:$0xff]
  %v278 = vld [vmem:[%s2 + $0x7b8] sm:$0xff]
  %v279 = vld [vmem:[%s2 + $0x7c0] sm:$0xff]
  %v280 = vld [vmem:[%s2 + $0x7c8] sm:$0xff]
  %v281 = vld [vmem:[%s2 + $0x7d0] sm:$0xff]
  %v282 = vld [vmem:[%s2 + $0x7d8] sm:$0xff]
  %v283 = vld [vmem:[%s2 + $0x7e0] sm:$0xff]
  %v284 = vld [vmem:[%s2 + $0x7e8] sm:$0xff]
  %v285 = vld [vmem:[%s2 + $0x7f0] sm:$0xff]
  %v286 = vld [vmem:[%s2 + $0x7f8] sm:$0xff]
  %v287 = vld [vmem:[%s2 + $0x800] sm:$0xff]
  %v288 = vld [vmem:[%s2 + $0x808] sm:$0xff]
  %v289 = vld [vmem:[%s2 + $0x810] sm:$0xff]
  %v290 = vld [vmem:[%s2 + $0x818] sm:$0xff]
  %v291 = vld [vmem:[%s2 + $0x820] sm:$0xff]
  %v292 = vld [vmem:[%s2 + $0x828] sm:$0xff]
  %v293 = vld [vmem:[%s2 + $0x830] sm:$0xff]
  %v294 = vld [vmem:[%s2 + $0x838] sm:$0xff]
  %v295 = vld [vmem:[%s2 + $0x840] sm:$0xff]
  %v296 = vld [vmem:[%s2 + $0x848] sm:$0xff]
  %v297 = vld [vmem:[%s2 + $0x850] sm:$0xff]
  %v298 = vld [vmem:[%s2 + $0x858] sm:$0xff]
  %v299 = vld [vmem:[%s2 + $0x860] sm:$0xff]
  %v300 = vld [vmem:[%s2 + $0x868] sm:$0xff]
  %v301 = vld [vmem:[%s2 + $0x870] sm:$0xff]
  %v302 = vld [vmem:[%s2 + $0x878] sm:$0xff]
  %v303 = vld [vmem:[%s2 + $0x880] sm:$0xff]
  %v304 = vld [vmem:[%s2 + $0x888] sm:$0xff]
  %v305 = vld [vmem:[%s2 + $0x890] sm:$0xff]
  %v306 = vld [vmem:[%s2 + $0x898] sm:$0xff]
  %v307 = vld [vmem:[%s2 + $0x8a0] sm:$0xff]
  %v308 = vld [vmem:[%s2 + $0x8a8] sm:$0xff]
  %v309 = vld [vmem:[%s2 + $0x8b0] sm:$0xff]
  %v310 = vld [vmem:[%s2 + $0x8b8] sm:$0xff]
  %v311 = vld [vmem:[%s2 + $0x8c0] sm:$0xff]
  %v312 = vld [vmem:[%s2 + $0x8c8] sm:$0xff]
  %v313 = vld [vmem:[%s2 + $0x8d0] sm:$0xff]
  %v314 = vld [vmem:[%s2 + $0x8d8] sm:$0xff]
  %v315 = vld [vmem:[%s2 + $0x8e0] sm:$0xff]
  %v316 = vld [vmem:[%s2 + $0x8e8] sm:$0xff]
  %v317 = vld [vmem:[%s2 + $0x8f0] sm:$0xff]
  %v318 = vld [vmem:[%s2 + $0x8f8] sm:$0xff]
  %v319 = vld [vmem:[%s2 + $0x900] sm:$0xff]
  %v320 = vld [vmem:[%s2 + $0x908] sm:$0xff]
  %v321 = vld [vmem:[%s2 + $0x910] sm:$0xff]
  %v322 = vld [vmem:[%s2 + $0x918] sm:$0xff]
  %v323 = vld [vmem:[%s2 + $0x920] sm:$0xff]
  %v324 = vld [vmem:[%s2 + $0x928] sm:$0xff]
  %v325 = vld [vmem:[%s2 + $0x930] sm:$0xff]
  %v326 = vld [vmem:[%s2 + $0x938] sm:$0xff]
  %v327 = vld [vmem:[%s2 + $0x940] sm:$0xff]
  %v328 = vld [vmem:[%s2 + $0x948] sm:$0xff]
  %v329 = vld [vmem:[%s2 + $0x950] sm:$0xff]
  %v330 = vld [vmem:[%s2 + $0x958] sm:$0xff]
  %v331 = vld [vmem:[%s2 + $0x960] sm:$0xff]
  %v332 = vld [vmem:[%s2 + $0x968] sm:$0xff]
  %v333 = vld [vmem:[%s2 + $0x970] sm:$0xff]
  %v334 = vld [vmem:[%s2 + $0x978] sm:$0xff]
  %v335 = vld [vmem:[%s2 + $0x980] sm:$0xff]
  %v336 = vld [vmem:[%s2 + $0x988] sm:$0xff]
  %v337 = vld [vmem:[%s2 + $0x990] sm:$0xff]
  %v338 = vld [vmem:[%s2 + $0x998] sm:$0xff]
  %v339 = vld [vmem:[%s2 + $0x9a0] sm:$0xff]
  %v340 = vld [vmem:[%s2 + $0x9a8] sm:$0xff]
  %v341 = vld [vmem:[%s2 + $0x9b0] sm:$0xff]
  %v342 = vld [vmem:[%s2 + $0x9b8] sm:$0xff]
  %v343 = vld [vmem:[%s2 + $0x9c0] sm:$0xff]
  %v344 = vld [vmem:[%s2 + $0x9c8] sm:$0xff]
  %v345 = vld [vmem:[%s2 + $0x9d0] sm:$0xff]
  %v346 = vld [vmem:[%s2 + $0x9d8] sm:$0xff]
  %v347 = vld [vmem:[%s2 + $0x9e0] sm:$0xff]
  %v348 = vld [vmem:[%s2 + $0x9e8] sm:$0xff]
  %v349 = vld [vmem:[%s2 + $0x9f0] sm:$0xff]
  %v350 = vld [vmem:[%s2 + $0x9f8] sm:$0xff]
  %v351 = vld [vmem:[%s2 + $0xa00] sm:$0xff]
  %v352 = vld [vmem:[%s2 + $0xa08] sm:$0xff]
  %v353 = vld [vmem:[%s2 + $0xa10] sm:$0xff]
  %v354 = vld [vmem:[%s2 + $0xa18] sm:$0xff]
  %v355 = vld [vmem:[%s2 + $0xa20] sm:$0xff]
  %v356 = vld [vmem:[%s2 + $0xa28] sm:$0xff]
  %v357 = vld [vmem:[%s2 + $0xa30] sm:$0xff]
  %v358 = vld [vmem:[%s2 + $0xa38] sm:$0xff]
  %v359 = vld [vmem:[%s2 + $0xa40] sm:$0xff]
  %v360 = vld [vmem:[%s2 + $0xa48] sm:$0xff]
  %v361 = vld [vmem:[%s2 + $0xa50] sm:$0xff]
  %v362 = vld [vmem:[%s2 + $0xa58] sm:$0xff]
  %v363 = vld [vmem:[%s2 + $0xa60] sm:$0xff]
  %v364 = vld [vmem:[%s2 + $0xa68] sm:$0xff]
  %v365 = vld [vmem:[%s2 + $0xa70] sm:$0xff]
  %v366 = vld [vmem:[%s2 + $0xa78] sm:$0xff]
  %v367 = vld [vmem:[%s2 + $0xa80] sm:$0xff]
  %v368 = vld [vmem:[%s2 + $0xa88] sm:$0xff]
  %v369 = vld [vmem:[%s2 + $0xa90] sm:$0xff]
  %v370 = vld [vmem:[%s2 + $0xa98] sm:$0xff]
  %v371 = vld [vmem:[%s2 + $0xaa0] sm:$0xff]
  %v372 = vld [vmem:[%s2 + $0xaa8] sm:$0xff]
  %v373 = vld [vmem:[%s2 + $0xab0] sm:$0xff]
  %v374 = vld [vmem:[%s2 + $0xab8] sm:$0xff]
  %v375 = vld [vmem:[%s2 + $0xac0] sm:$0xff]
  %v376 = vld [vmem:[%s2 + $0xac8] sm:$0xff]
  %v377 = vld [vmem:[%s2 + $0xad0] sm:$0xff]
  %v378 = vld [vmem:[%s2 + $0xad8] sm:$0xff]
  %v379 = vld [vmem:[%s2 + $0xae0] sm:$0xff]
  %v380 = vld [vmem:[%s2 + $0xae8] sm:$0xff]
  %v381 = vld [vmem:[%s2 + $0xaf0] sm:$0xff]
  %v382 = vld [vmem:[%s2 + $0xaf8] sm:$0xff]
  %v383 = vld [vmem:[%s2 + $0xb00] sm:$0xff]
  %v384 = vld [vmem:[%s2 + $0xb08] sm:$0xff]
  %v385 = vld [vmem:[%s2 + $0xb10] sm:$0xff]
  %v386 = vld [vmem:[%s2 + $0xb18] sm:$0xff]
  %v387 = vld [vmem:[%s2 + $0xb20] sm:$0xff]
  %v388 = vld [vmem:[%s2 + $0xb28] sm:$0xff]
  %v389 = vld [vmem:[%s2 + $0xb30] sm:$0xff]
  %v390 = vld [vmem:[%s2 + $0xb38] sm:$0xff]
  %v391 = vld [vmem:[%s2 + $0xb40] sm:$0xff]
  %v392 = vld [vmem:[%s2 + $0xb48] sm:$0xff]
  %v393 = vld [vmem:[%s2 + $0xb50] sm:$0xff]
  %v394 = vld [vmem:[%s2 + $0xb58] sm:$0xff]
  %v395 = vld [vmem:[%s2 + $0xb60] sm:$0xff]
  %v396 = vld [vmem:[%s2 + $0xb68] sm:$0xff]
  %v397 = vld [vmem:[%s2 + $0xb70] sm:$0xff]
  %v398 = vld [vmem:[%s2 + $0xb78] sm:$0xff]
  %v399 = vld [vmem:[%s2 + $0xb80] sm:$0xff]
  %v400 = vld [vmem:[%s2 + $0xb88] sm:$0xff]
  %v401 = vld [vmem:[%s2 + $0xb90] sm:$0xff]
  %v402 = vld [vmem:[%s2 + $0xb98] sm:$0xff]
  %v403 = vld [vmem:[%s2 + $0xba0] sm:$0xff]
  %v404 = vld [vmem:[%s2 + $0xba8] sm:$0xff]
  %v405 = vld [vmem:[%s2 + $0xbb0] sm:$0xff]
  %v406 = vld [vmem:[%s2 + $0xbb8] sm:$0xff]
  %v407 = vld [vmem:[%s2 + $0xbc0] sm:$0xff]
  %v408 = vld [vmem:[%s2 + $0xbc8] sm:$0xff]
  %v409 = vld [vmem:[%s2 + $0xbd0] sm:$0xff]
  %v410 = vld [vmem:[%s2 + $0xbd8] sm:$0xff]
  %v411 = vld [vmem:[%s2 + $0xbe0] sm:$0xff]
  %v412 = vld [vmem:[%s2 + $0xbe8] sm:$0xff]
  %v413 = vld [vmem:[%s2 + $0xbf0] sm:$0xff]
  %v414 = vld [vmem:[%s2 + $0xbf8] sm:$0xff]
  %v415 = vld [vmem:[%s2 + $0xc00] sm:$0xff]
  %v416 = vld [vmem:[%s2 + $0xc08] sm:$0xff]
  %v417 = vld [vmem:[%s2 + $0xc10] sm:$0xff]
  %v418 = vld [vmem:[%s2 + $0xc18] sm:$0xff]
  %v419 = vld [vmem:[%s2 + $0xc20] sm:$0xff]
  %v420 = vld [vmem:[%s2 + $0xc28] sm:$0xff]
  %v421 = vld [vmem:[%s2 + $0xc30] sm:$0xff]
  %v422 = vld [vmem:[%s2 + $0xc38] sm:$0xff]
  %v423 = vld [vmem:[%s2 + $0xc40] sm:$0xff]
  %v424 = vld [vmem:[%s2 + $0xc48] sm:$0xff]
  %v425 = vld [vmem:[%s2 + $0xc50] sm:$0xff]
  %v426 = vld [vmem:[%s2 + $0xc58] sm:$0xff]
  %v427 = vld [vmem:[%s2 + $0xc60] sm:$0xff]
  %v428 = vld [vmem:[%s2 + $0xc68] sm:$0xff]
  %v429 = vld [vmem:[%s2 + $0xc70] sm:$0xff]
  %v430 = vld [vmem:[%s2 + $0xc78] sm:$0xff]
  %v431 = vld [vmem:[%s2 + $0xc80] sm:$0xff]
  %v432 = vld [vmem:[%s2 + $0xc88] sm:$0xff]
  %v433 = vld [vmem:[%s2 + $0xc90] sm:$0xff]
  %v434 = vld [vmem:[%s2 + $0xc98] sm:$0xff]
  %v435 = vld [vmem:[%s2 + $0xca0] sm:$0xff]
  %v436 = vld [vmem:[%s2 + $0xca8] sm:$0xff]
  %v437 = vld [vmem:[%s2 + $0xcb0] sm:$0xff]
  %v438 = vld [vmem:[%s2 + $0xcb8] sm:$0xff]
  %v439 = vld [vmem:[%s2 + $0xcc0] sm:$0xff]
  %v440 = vld [vmem:[%s2 + $0xcc8] sm:$0xff]
  %v441 = vld [vmem:[%s2 + $0xcd0] sm:$0xff]
  %v442 = vld [vmem:[%s2 + $0xcd8] sm:$0xff]
  %v443 = vld [vmem:[%s2 + $0xce0] sm:$0xff]
  %v444 = vld [vmem:[%s2 + $0xce8] sm:$0xff]
  %v445 = vld [vmem:[%s2 + $0xcf0] sm:$0xff]
  %v446 = vld [vmem:[%s2 + $0xcf8] sm:$0xff]
  %v447 = vld [vmem:[%s2 + $0xd00] sm:$0xff]
  %v448 = vld [vmem:[%s2 + $0xd08] sm:$0xff]
  %v449 = vld [vmem:[%s2 + $0xd10] sm:$0xff]
  %v450 = vld [vmem:[%s2 + $0xd18] sm:$0xff]
  %v451 = vld [vmem:[%s2 + $0xd20] sm:$0xff]
  %v452 = vld [vmem:[%s2 + $0xd28] sm:$0xff]
  %v453 = vld [vmem:[%s2 + $0xd30] sm:$0xff]
  %v454 = vld [vmem:[%s2 + $0xd38] sm:$0xff]
  %v455 = vld [vmem:[%s2 + $0xd40] sm:$0xff]
  %v456 = vld [vmem:[%s2 + $0xd48] sm:$0xff]
  %v457 = vld [vmem:[%s2 + $0xd50] sm:$0xff]
  %v458 = vld [vmem:[%s2 + $0xd58] sm:$0xff]
  %v459 = vld [vmem:[%s2 + $0xd60] sm:$0xff]
  %v460 = vld [vmem:[%s2 + $0xd68] sm:$0xff]
  %v461 = vld [vmem:[%s2 + $0xd70] sm:$0xff]
  %v462 = vld [vmem:[%s2 + $0xd78] sm:$0xff]
  %v463 = vld [vmem:[%s2 + $0xd80] sm:$0xff]
  %v464 = vld [vmem:[%s2 + $0xd88] sm:$0xff]
  %v465 = vld [vmem:[%s2 + $0xd90] sm:$0xff]
  %v466 = vld [vmem:[%s2 + $0xd98] sm:$0xff]
  %v467 = vld [vmem:[%s2 + $0xda0] sm:$0xff]
  %v468 = vld [vmem:[%s2 + $0xda8] sm:$0xff]
  %v469 = vld [vmem:[%s2 + $0xdb0] sm:$0xff]
  %v470 = vld [vmem:[%s2 + $0xdb8] sm:$0xff]
  %v471 = vld [vmem:[%s2 + $0xdc0] sm:$0xff]
  %v472 = vld [vmem:[%s2 + $0xdc8] sm:$0xff]
  %v473 = vld [vmem:[%s2 + $0xdd0] sm:$0xff]
  %v474 = vld [vmem:[%s2 + $0xdd8] sm:$0xff]
  %v475 = vld [vmem:[%s2 + $0xde0] sm:$0xff]
  %v476 = vld [vmem:[%s2 + $0xde8] sm:$0xff]
  %v477 = vld [vmem:[%s2 + $0xdf0] sm:$0xff]
  %v478 = vld [vmem:[%s2 + $0xdf8] sm:$0xff]
  %v479 = vld [vmem:[%s2 + $0xe00] sm:$0xff]
  %v480 = vld [vmem:[%s2 + $0xe08] sm:$0xff]
  %v481 = vld [vmem:[%s2 + $0xe10] sm:$0xff]
  %v482 = vld [vmem:[%s2 + $0xe18] sm:$0xff]
  %v483 = vld [vmem:[%s2 + $0xe20] sm:$0xff]
  %v484 = vld [vmem:[%s2 + $0xe28] sm:$0xff]
  %v485 = vld [vmem:[%s2 + $0xe30] sm:$0xff]
  %v486 = vld [vmem:[%s2 + $0xe38] sm:$0xff]
  %v487 = vld [vmem:[%s2 + $0xe40] sm:$0xff]
  %v488 = vld [vmem:[%s2 + $0xe48] sm:$0xff]
  %v489 = vld [vmem:[%s2 + $0xe50] sm:$0xff]
  %v490 = vld [vmem:[%s2 + $0xe58] sm:$0xff]
  %v491 = vld [vmem:[%s2 + $0xe60] sm:$0xff]
  %v492 = vld [vmem:[%s2 + $0xe68] sm:$0xff]
  %v493 = vld [vmem:[%s2 + $0xe70] sm:$0xff]
  %v494 = vld [vmem:[%s2 + $0xe78] sm:$0xff]
  %v495 = vld [vmem:[%s2 + $0xe80] sm:$0xff]
  %v496 = vld [vmem:[%s2 + $0xe88] sm:$0xff]
  %v497 = vld [vmem:[%s2 + $0xe90] sm:$0xff]
  %v498 = vld [vmem:[%s2 + $0xe98] sm:$0xff]
  %v499 = vld [vmem:[%s2 + $0xea0] sm:$0xff]
  %v500 = vld [vmem:[%s2 + $0xea8] sm:$0xff]
  %v501 = vld [vmem:[%s2 + $0xeb0] sm:$0xff]
  %v502 = vld [vmem:[%s2 + $0xeb8] sm:$0xff]
  %v503 = vld [vmem:[%s2 + $0xec0] sm:$0xff]
  %v504 = vld [vmem:[%s2 + $0xec8] sm:$0xff]
  %v505 = vld [vmem:[%s2 + $0xed0] sm:$0xff]
  %v506 = vld [vmem:[%s2 + $0xed8] sm:$0xff]
  %v507 = vld [vmem:[%s2 + $0xee0] sm:$0xff]
  %v508 = vld [vmem:[%s2 + $0xee8] sm:$0xff]
  %v509 = vld [vmem:[%s2 + $0xef0] sm:$0xff]
  %v510 = vld [vmem:[%s2 + $0xef8] sm:$0xff]
  %v511 = vld [vmem:[%s2 + $0xf00] sm:$0xff]
  %v512 = vld [vmem:[%s2 + $0xf08] sm:$0xff]
  %v513 = vld [vmem:[%s2 + $0xf10] sm:$0xff]
  %v514 = vld [vmem:[%s2 + $0xf18] sm:$0xff]
  %v515 = vld [vmem:[%s2 + $0xf20] sm:$0xff]
  %v516 = vld [vmem:[%s2 + $0xf28] sm:$0xff]
  %v517 = vld [vmem:[%s2 + $0xf30] sm:$0xff]
  %v518 = vld [vmem:[%s2 + $0xf38] sm:$0xff]
  %v519 = vld [vmem:[%s2 + $0xf40] sm:$0xff]
  %v520 = vld [vmem:[%s2 + $0xf48] sm:$0xff]
  %v521 = vld [vmem:[%s2 + $0xf50] sm:$0xff]
  %v522 = vld [vmem:[%s2 + $0xf58] sm:$0xff]
  %v523 = vld [vmem:[%s2 + $0xf60] sm:$0xff]
  %v524 = vld [vmem:[%s2 + $0xf68] sm:$0xff]
  %v525 = vld [vmem:[%s2 + $0xf70] sm:$0xff]
  %v526 = vld [vmem:[%s2 + $0xf78] sm:$0xff]
  %v527 = vld [vmem:[%s2 + $0xf80] sm:$0xff]
  %v528 = vld [vmem:[%s2 + $0xf88] sm:$0xff]
  %v529 = vld [vmem:[%s2 + $0xf90] sm:$0xff]
  %v530 = vld [vmem:[%s2 + $0xf98] sm:$0xff]
  %v531 = vld [vmem:[%s2 + $0xfa0] sm:$0xff]
  %v532 = vld [vmem:[%s2 + $0xfa8] sm:$0xff]
  %v533 = vld [vmem:[%s2 + $0xfb0] sm:$0xff]
  %v534 = vld [vmem:[%s2 + $0xfb8] sm:$0xff]
  %v535 = vld [vmem:[%s2 + $0xfc0] sm:$0xff]
  %v536 = vld [vmem:[%s2 + $0xfc8] sm:$0xff]
  %v537 = vld [vmem:[%s2 + $0xfd0] sm:$0xff]
  %v538 = vld [vmem:[%s2 + $0xfd8] sm:$0xff]
  %v539 = vld [vmem:[%s2 + $0xfe0] sm:$0xff]
  %v540 = vld [vmem:[%s2 + $0xfe8] sm:$0xff]
  %v541 = vld [vmem:[%s2 + $0xff0] sm:$0xff]
  %v542 = vld [vmem:[%s2 + $0xff8] sm:$0xff]
  %v543 = vld [vmem:[%s3] sm:$0xff]
  %v545 = vperm.slane %v543, 0
  %v546 = vperm.slane %v543, 1
  %v547 = vperm.slane %v543, 2
  %v548 = vperm.slane %v543, 3
  %v549 = vperm.slane %v543, 4
  %v550 = vperm.slane %v543, 5
  %v551 = vperm.slane %v543, 6
  %v552 = vperm.slane %v543, 7
  %v565 = vunpack.c.l.b16 %v27
  %v566 = vunpack.c.h.b16 %v27
  %v567 = vunpack.c.l.b16 %v28
  %v568 = vunpack.c.h.b16 %v28
  %v569 = vunpack.c.l.b16 %v29
  %v570 = vunpack.c.h.b16 %v29
  %v571 = vunpack.c.l.b16 %v30
  %v572 = vunpack.c.h.b16 %v30
  %v573 = vpack.c.b16 %v565, %v565
  %v574 = vpack.c.b16 %v566, %v566
  %v575 = vpack.c.b16 %v567, %v567
  %v576 = vpack.c.b16 %v568, %v568
  %v577 = vpack.c.b16 %v569, %v569
  %v578 = vpack.c.b16 %v570, %v570
  %v579 = vpack.c.b16 %v571, %v571
  %v580 = vpack.c.b16 %v572, %v572
  %v1101 = vunpack.c.l.b16 %v31
  %v1102 = vunpack.c.h.b16 %v31
  %v1103 = vunpack.c.l.b16 %v32
  %v1104 = vunpack.c.h.b16 %v32
  %v1105 = vunpack.c.l.b16 %v33
  %v1106 = vunpack.c.h.b16 %v33
  %v1107 = vunpack.c.l.b16 %v34
  %v1108 = vunpack.c.h.b16 %v34
  %v1109 = vunpack.c.l.b16 %v35
  %v1110 = vunpack.c.h.b16 %v35
  %v1111 = vunpack.c.l.b16 %v36
  %v1112 = vunpack.c.h.b16 %v36
  %v1113 = vunpack.c.l.b16 %v37
  %v1114 = vunpack.c.h.b16 %v37
  %v1115 = vunpack.c.l.b16 %v38
  %v1116 = vunpack.c.h.b16 %v38
  %v1117 = vunpack.c.l.b16 %v39
  %v1118 = vunpack.c.h.b16 %v39
  %v1119 = vunpack.c.l.b16 %v40
  %v1120 = vunpack.c.h.b16 %v40
  %v1121 = vunpack.c.l.b16 %v41
  %v1122 = vunpack.c.h.b16 %v41
  %v1123 = vunpack.c.l.b16 %v42
  %v1124 = vunpack.c.h.b16 %v42
  %v1125 = vunpack.c.l.b16 %v43
  %v1126 = vunpack.c.h.b16 %v43
  %v1127 = vunpack.c.l.b16 %v44
  %v1128 = vunpack.c.h.b16 %v44
  %v1129 = vunpack.c.l.b16 %v45
  %v1130 = vunpack.c.h.b16 %v45
  %v1131 = vunpack.c.l.b16 %v46
  %v1132 = vunpack.c.h.b16 %v46
  %v1133 = vunpack.c.l.b16 %v47
  %v1134 = vunpack.c.h.b16 %v47
  %v1135 = vunpack.c.l.b16 %v48
  %v1136 = vunpack.c.h.b16 %v48
  %v1137 = vunpack.c.l.b16 %v49
  %v1138 = vunpack.c.h.b16 %v49
  %v1139 = vunpack.c.l.b16 %v50
  %v1140 = vunpack.c.h.b16 %v50
  %v1141 = vunpack.c.l.b16 %v51
  %v1142 = vunpack.c.h.b16 %v51
  %v1143 = vunpack.c.l.b16 %v52
  %v1144 = vunpack.c.h.b16 %v52
  %v1145 = vunpack.c.l.b16 %v53
  %v1146 = vunpack.c.h.b16 %v53
  %v1147 = vunpack.c.l.b16 %v54
  %v1148 = vunpack.c.h.b16 %v54
  %v1149 = vunpack.c.l.b16 %v55
  %v1150 = vunpack.c.h.b16 %v55
  %v1151 = vunpack.c.l.b16 %v56
  %v1152 = vunpack.c.h.b16 %v56
  %v1153 = vunpack.c.l.b16 %v57
  %v1154 = vunpack.c.h.b16 %v57
  %v1155 = vunpack.c.l.b16 %v58
  %v1156 = vunpack.c.h.b16 %v58
  %v1157 = vunpack.c.l.b16 %v59
  %v1158 = vunpack.c.h.b16 %v59
  %v1159 = vunpack.c.l.b16 %v60
  %v1160 = vunpack.c.h.b16 %v60
  %v1161 = vunpack.c.l.b16 %v61
  %v1162 = vunpack.c.h.b16 %v61
  %v1163 = vunpack.c.l.b16 %v62
  %v1164 = vunpack.c.h.b16 %v62
  %v1165 = vunpack.c.l.b16 %v63
  %v1166 = vunpack.c.h.b16 %v63
  %v1167 = vunpack.c.l.b16 %v64
  %v1168 = vunpack.c.h.b16 %v64
  %v1169 = vunpack.c.l.b16 %v65
  %v1170 = vunpack.c.h.b16 %v65
  %v1171 = vunpack.c.l.b16 %v66
  %v1172 = vunpack.c.h.b16 %v66
  %v1173 = vunpack.c.l.b16 %v67
  %v1174 = vunpack.c.h.b16 %v67
  %v1175 = vunpack.c.l.b16 %v68
  %v1176 = vunpack.c.h.b16 %v68
  %v1177 = vunpack.c.l.b16 %v69
  %v1178 = vunpack.c.h.b16 %v69
  %v1179 = vunpack.c.l.b16 %v70
  %v1180 = vunpack.c.h.b16 %v70
  %v1181 = vunpack.c.l.b16 %v71
  %v1182 = vunpack.c.h.b16 %v71
  %v1183 = vunpack.c.l.b16 %v72
  %v1184 = vunpack.c.h.b16 %v72
  %v1185 = vunpack.c.l.b16 %v73
  %v1186 = vunpack.c.h.b16 %v73
  %v1187 = vunpack.c.l.b16 %v74
  %v1188 = vunpack.c.h.b16 %v74
  %v1189 = vunpack.c.l.b16 %v75
  %v1190 = vunpack.c.h.b16 %v75
  %v1191 = vunpack.c.l.b16 %v76
  %v1192 = vunpack.c.h.b16 %v76
  %v1193 = vunpack.c.l.b16 %v77
  %v1194 = vunpack.c.h.b16 %v77
  %v1195 = vunpack.c.l.b16 %v78
  %v1196 = vunpack.c.h.b16 %v78
  %v1197 = vunpack.c.l.b16 %v79
  %v1198 = vunpack.c.h.b16 %v79
  %v1199 = vunpack.c.l.b16 %v80
  %v1200 = vunpack.c.h.b16 %v80
  %v1201 = vunpack.c.l.b16 %v81
  %v1202 = vunpack.c.h.b16 %v81
  %v1203 = vunpack.c.l.b16 %v82
  %v1204 = vunpack.c.h.b16 %v82
  %v1205 = vunpack.c.l.b16 %v83
  %v1206 = vunpack.c.h.b16 %v83
  %v1207 = vunpack.c.l.b16 %v84
  %v1208 = vunpack.c.h.b16 %v84
  %v1209 = vunpack.c.l.b16 %v85
  %v1210 = vunpack.c.h.b16 %v85
  %v1211 = vunpack.c.l.b16 %v86
  %v1212 = vunpack.c.h.b16 %v86
  %v1213 = vunpack.c.l.b16 %v87
  %v1214 = vunpack.c.h.b16 %v87
  %v1215 = vunpack.c.l.b16 %v88
  %v1216 = vunpack.c.h.b16 %v88
  %v1217 = vunpack.c.l.b16 %v89
  %v1218 = vunpack.c.h.b16 %v89
  %v1219 = vunpack.c.l.b16 %v90
  %v1220 = vunpack.c.h.b16 %v90
  %v1221 = vunpack.c.l.b16 %v91
  %v1222 = vunpack.c.h.b16 %v91
  %v1223 = vunpack.c.l.b16 %v92
  %v1224 = vunpack.c.h.b16 %v92
  %v1225 = vunpack.c.l.b16 %v93
  %v1226 = vunpack.c.h.b16 %v93
  %v1227 = vunpack.c.l.b16 %v94
  %v1228 = vunpack.c.h.b16 %v94
  %v1229 = vunpack.c.l.b16 %v95
  %v1230 = vunpack.c.h.b16 %v95
  %v1231 = vunpack.c.l.b16 %v96
  %v1232 = vunpack.c.h.b16 %v96
  %v1233 = vunpack.c.l.b16 %v97
  %v1234 = vunpack.c.h.b16 %v97
  %v1235 = vunpack.c.l.b16 %v98
  %v1236 = vunpack.c.h.b16 %v98
  %v1237 = vunpack.c.l.b16 %v99
  %v1238 = vunpack.c.h.b16 %v99
  %v1239 = vunpack.c.l.b16 %v100
  %v1240 = vunpack.c.h.b16 %v100
  %v1241 = vunpack.c.l.b16 %v101
  %v1242 = vunpack.c.h.b16 %v101
  %v1243 = vunpack.c.l.b16 %v102
  %v1244 = vunpack.c.h.b16 %v102
  %v1245 = vunpack.c.l.b16 %v103
  %v1246 = vunpack.c.h.b16 %v103
  %v1247 = vunpack.c.l.b16 %v104
  %v1248 = vunpack.c.h.b16 %v104
  %v1249 = vunpack.c.l.b16 %v105
  %v1250 = vunpack.c.h.b16 %v105
  %v1251 = vunpack.c.l.b16 %v106
  %v1252 = vunpack.c.h.b16 %v106
  %v1253 = vunpack.c.l.b16 %v107
  %v1254 = vunpack.c.h.b16 %v107
  %v1255 = vunpack.c.l.b16 %v108
  %v1256 = vunpack.c.h.b16 %v108
  %v1257 = vunpack.c.l.b16 %v109
  %v1258 = vunpack.c.h.b16 %v109
  %v1259 = vunpack.c.l.b16 %v110
  %v1260 = vunpack.c.h.b16 %v110
  %v1261 = vunpack.c.l.b16 %v111
  %v1262 = vunpack.c.h.b16 %v111
  %v1263 = vunpack.c.l.b16 %v112
  %v1264 = vunpack.c.h.b16 %v112
  %v1265 = vunpack.c.l.b16 %v113
  %v1266 = vunpack.c.h.b16 %v113
  %v1267 = vunpack.c.l.b16 %v114
  %v1268 = vunpack.c.h.b16 %v114
  %v1269 = vunpack.c.l.b16 %v115
  %v1270 = vunpack.c.h.b16 %v115
  %v1271 = vunpack.c.l.b16 %v116
  %v1272 = vunpack.c.h.b16 %v116
  %v1273 = vunpack.c.l.b16 %v117
  %v1274 = vunpack.c.h.b16 %v117
  %v1275 = vunpack.c.l.b16 %v118
  %v1276 = vunpack.c.h.b16 %v118
  %v1277 = vunpack.c.l.b16 %v119
  %v1278 = vunpack.c.h.b16 %v119
  %v1279 = vunpack.c.l.b16 %v120
  %v1280 = vunpack.c.h.b16 %v120
  %v1281 = vunpack.c.l.b16 %v121
  %v1282 = vunpack.c.h.b16 %v121
  %v1283 = vunpack.c.l.b16 %v122
  %v1284 = vunpack.c.h.b16 %v122
  %v1285 = vunpack.c.l.b16 %v123
  %v1286 = vunpack.c.h.b16 %v123
  %v1287 = vunpack.c.l.b16 %v124
  %v1288 = vunpack.c.h.b16 %v124
  %v1289 = vunpack.c.l.b16 %v125
  %v1290 = vunpack.c.h.b16 %v125
  %v1291 = vunpack.c.l.b16 %v126
  %v1292 = vunpack.c.h.b16 %v126
  %v1293 = vunpack.c.l.b16 %v127
  %v1294 = vunpack.c.h.b16 %v127
  %v1295 = vunpack.c.l.b16 %v128
  %v1296 = vunpack.c.h.b16 %v128
  %v1297 = vunpack.c.l.b16 %v129
  %v1298 = vunpack.c.h.b16 %v129
  %v1299 = vunpack.c.l.b16 %v130
  %v1300 = vunpack.c.h.b16 %v130
  %v1301 = vunpack.c.l.b16 %v131
  %v1302 = vunpack.c.h.b16 %v131
  %v1303 = vunpack.c.l.b16 %v132
  %v1304 = vunpack.c.h.b16 %v132
  %v1305 = vunpack.c.l.b16 %v133
  %v1306 = vunpack.c.h.b16 %v133
  %v1307 = vunpack.c.l.b16 %v134
  %v1308 = vunpack.c.h.b16 %v134
  %v1309 = vunpack.c.l.b16 %v135
  %v1310 = vunpack.c.h.b16 %v135
  %v1311 = vunpack.c.l.b16 %v136
  %v1312 = vunpack.c.h.b16 %v136
  %v1313 = vunpack.c.l.b16 %v137
  %v1314 = vunpack.c.h.b16 %v137
  %v1315 = vunpack.c.l.b16 %v138
  %v1316 = vunpack.c.h.b16 %v138
  %v1317 = vunpack.c.l.b16 %v139
  %v1318 = vunpack.c.h.b16 %v139
  %v1319 = vunpack.c.l.b16 %v140
  %v1320 = vunpack.c.h.b16 %v140
  %v1321 = vunpack.c.l.b16 %v141
  %v1322 = vunpack.c.h.b16 %v141
  %v1323 = vunpack.c.l.b16 %v142
  %v1324 = vunpack.c.h.b16 %v142
  %v1325 = vunpack.c.l.b16 %v143
  %v1326 = vunpack.c.h.b16 %v143
  %v1327 = vunpack.c.l.b16 %v144
  %v1328 = vunpack.c.h.b16 %v144
  %v1329 = vunpack.c.l.b16 %v145
  %v1330 = vunpack.c.h.b16 %v145
  %v1331 = vunpack.c.l.b16 %v146
  %v1332 = vunpack.c.h.b16 %v146
  %v1333 = vunpack.c.l.b16 %v147
  %v1334 = vunpack.c.h.b16 %v147
  %v1335 = vunpack.c.l.b16 %v148
  %v1336 = vunpack.c.h.b16 %v148
  %v1337 = vunpack.c.l.b16 %v149
  %v1338 = vunpack.c.h.b16 %v149
  %v1339 = vunpack.c.l.b16 %v150
  %v1340 = vunpack.c.h.b16 %v150
  %v1341 = vunpack.c.l.b16 %v151
  %v1342 = vunpack.c.h.b16 %v151
  %v1343 = vunpack.c.l.b16 %v152
  %v1344 = vunpack.c.h.b16 %v152
  %v1345 = vunpack.c.l.b16 %v153
  %v1346 = vunpack.c.h.b16 %v153
  %v1347 = vunpack.c.l.b16 %v154
  %v1348 = vunpack.c.h.b16 %v154
  %v1349 = vunpack.c.l.b16 %v155
  %v1350 = vunpack.c.h.b16 %v155
  %v1351 = vunpack.c.l.b16 %v156
  %v1352 = vunpack.c.h.b16 %v156
  %v1353 = vunpack.c.l.b16 %v157
  %v1354 = vunpack.c.h.b16 %v157
  %v1355 = vunpack.c.l.b16 %v158
  %v1356 = vunpack.c.h.b16 %v158
  %v1357 = vunpack.c.l.b16 %v159
  %v1358 = vunpack.c.h.b16 %v159
  %v1359 = vunpack.c.l.b16 %v160
  %v1360 = vunpack.c.h.b16 %v160
  %v1361 = vunpack.c.l.b16 %v161
  %v1362 = vunpack.c.h.b16 %v161
  %v1363 = vunpack.c.l.b16 %v162
  %v1364 = vunpack.c.h.b16 %v162
  %v1365 = vunpack.c.l.b16 %v163
  %v1366 = vunpack.c.h.b16 %v163
  %v1367 = vunpack.c.l.b16 %v164
  %v1368 = vunpack.c.h.b16 %v164
  %v1369 = vunpack.c.l.b16 %v165
  %v1370 = vunpack.c.h.b16 %v165
  %v1371 = vunpack.c.l.b16 %v166
  %v1372 = vunpack.c.h.b16 %v166
  %v1373 = vunpack.c.l.b16 %v167
  %v1374 = vunpack.c.h.b16 %v167
  %v1375 = vunpack.c.l.b16 %v168
  %v1376 = vunpack.c.h.b16 %v168
  %v1377 = vunpack.c.l.b16 %v169
  %v1378 = vunpack.c.h.b16 %v169
  %v1379 = vunpack.c.l.b16 %v170
  %v1380 = vunpack.c.h.b16 %v170
  %v1381 = vunpack.c.l.b16 %v171
  %v1382 = vunpack.c.h.b16 %v171
  %v1383 = vunpack.c.l.b16 %v172
  %v1384 = vunpack.c.h.b16 %v172
  %v1385 = vunpack.c.l.b16 %v173
  %v1386 = vunpack.c.h.b16 %v173
  %v1387 = vunpack.c.l.b16 %v174
  %v1388 = vunpack.c.h.b16 %v174
  %v1389 = vunpack.c.l.b16 %v175
  %v1390 = vunpack.c.h.b16 %v175
  %v1391 = vunpack.c.l.b16 %v176
  %v1392 = vunpack.c.h.b16 %v176
  %v1393 = vunpack.c.l.b16 %v177
  %v1394 = vunpack.c.h.b16 %v177
  %v1395 = vunpack.c.l.b16 %v178
  %v1396 = vunpack.c.h.b16 %v178
  %v1397 = vunpack.c.l.b16 %v179
  %v1398 = vunpack.c.h.b16 %v179
  %v1399 = vunpack.c.l.b16 %v180
  %v1400 = vunpack.c.h.b16 %v180
  %v1401 = vunpack.c.l.b16 %v181
  %v1402 = vunpack.c.h.b16 %v181
  %v1403 = vunpack.c.l.b16 %v182
  %v1404 = vunpack.c.h.b16 %v182
  %v1405 = vunpack.c.l.b16 %v183
  %v1406 = vunpack.c.h.b16 %v183
  %v1407 = vunpack.c.l.b16 %v184
  %v1408 = vunpack.c.h.b16 %v184
  %v1409 = vunpack.c.l.b16 %v185
  %v1410 = vunpack.c.h.b16 %v185
  %v1411 = vunpack.c.l.b16 %v186
  %v1412 = vunpack.c.h.b16 %v186
  %v1413 = vunpack.c.l.b16 %v187
  %v1414 = vunpack.c.h.b16 %v187
  %v1415 = vunpack.c.l.b16 %v188
  %v1416 = vunpack.c.h.b16 %v188
  %v1417 = vunpack.c.l.b16 %v189
  %v1418 = vunpack.c.h.b16 %v189
  %v1419 = vunpack.c.l.b16 %v190
  %v1420 = vunpack.c.h.b16 %v190
  %v1421 = vunpack.c.l.b16 %v191
  %v1422 = vunpack.c.h.b16 %v191
  %v1423 = vunpack.c.l.b16 %v192
  %v1424 = vunpack.c.h.b16 %v192
  %v1425 = vunpack.c.l.b16 %v193
  %v1426 = vunpack.c.h.b16 %v193
  %v1427 = vunpack.c.l.b16 %v194
  %v1428 = vunpack.c.h.b16 %v194
  %v1429 = vunpack.c.l.b16 %v195
  %v1430 = vunpack.c.h.b16 %v195
  %v1431 = vunpack.c.l.b16 %v196
  %v1432 = vunpack.c.h.b16 %v196
  %v1433 = vunpack.c.l.b16 %v197
  %v1434 = vunpack.c.h.b16 %v197
  %v1435 = vunpack.c.l.b16 %v198
  %v1436 = vunpack.c.h.b16 %v198
  %v1437 = vunpack.c.l.b16 %v199
  %v1438 = vunpack.c.h.b16 %v199
  %v1439 = vunpack.c.l.b16 %v200
  %v1440 = vunpack.c.h.b16 %v200
  %v1441 = vunpack.c.l.b16 %v201
  %v1442 = vunpack.c.h.b16 %v201
  %v1443 = vunpack.c.l.b16 %v202
  %v1444 = vunpack.c.h.b16 %v202
  %v1445 = vunpack.c.l.b16 %v203
  %v1446 = vunpack.c.h.b16 %v203
  %v1447 = vunpack.c.l.b16 %v204
  %v1448 = vunpack.c.h.b16 %v204
  %v1449 = vunpack.c.l.b16 %v205
  %v1450 = vunpack.c.h.b16 %v205
  %v1451 = vunpack.c.l.b16 %v206
  %v1452 = vunpack.c.h.b16 %v206
  %v1453 = vunpack.c.l.b16 %v207
  %v1454 = vunpack.c.h.b16 %v207
  %v1455 = vunpack.c.l.b16 %v208
  %v1456 = vunpack.c.h.b16 %v208
  %v1457 = vunpack.c.l.b16 %v209
  %v1458 = vunpack.c.h.b16 %v209
  %v1459 = vunpack.c.l.b16 %v210
  %v1460 = vunpack.c.h.b16 %v210
  %v1461 = vunpack.c.l.b16 %v211
  %v1462 = vunpack.c.h.b16 %v211
  %v1463 = vunpack.c.l.b16 %v212
  %v1464 = vunpack.c.h.b16 %v212
  %v1465 = vunpack.c.l.b16 %v213
  %v1466 = vunpack.c.h.b16 %v213
  %v1467 = vunpack.c.l.b16 %v214
  %v1468 = vunpack.c.h.b16 %v214
  %v1469 = vunpack.c.l.b16 %v215
  %v1470 = vunpack.c.h.b16 %v215
  %v1471 = vunpack.c.l.b16 %v216
  %v1472 = vunpack.c.h.b16 %v216
  %v1473 = vunpack.c.l.b16 %v217
  %v1474 = vunpack.c.h.b16 %v217
  %v1475 = vunpack.c.l.b16 %v218
  %v1476 = vunpack.c.h.b16 %v218
  %v1477 = vunpack.c.l.b16 %v219
  %v1478 = vunpack.c.h.b16 %v219
  %v1479 = vunpack.c.l.b16 %v220
  %v1480 = vunpack.c.h.b16 %v220
  %v1481 = vunpack.c.l.b16 %v221
  %v1482 = vunpack.c.h.b16 %v221
  %v1483 = vunpack.c.l.b16 %v222
  %v1484 = vunpack.c.h.b16 %v222
  %v1485 = vunpack.c.l.b16 %v223
  %v1486 = vunpack.c.h.b16 %v223
  %v1487 = vunpack.c.l.b16 %v224
  %v1488 = vunpack.c.h.b16 %v224
  %v1489 = vunpack.c.l.b16 %v225
  %v1490 = vunpack.c.h.b16 %v225
  %v1491 = vunpack.c.l.b16 %v226
  %v1492 = vunpack.c.h.b16 %v226
  %v1493 = vunpack.c.l.b16 %v227
  %v1494 = vunpack.c.h.b16 %v227
  %v1495 = vunpack.c.l.b16 %v228
  %v1496 = vunpack.c.h.b16 %v228
  %v1497 = vunpack.c.l.b16 %v229
  %v1498 = vunpack.c.h.b16 %v229
  %v1499 = vunpack.c.l.b16 %v230
  %v1500 = vunpack.c.h.b16 %v230
  %v1501 = vunpack.c.l.b16 %v231
  %v1502 = vunpack.c.h.b16 %v231
  %v1503 = vunpack.c.l.b16 %v232
  %v1504 = vunpack.c.h.b16 %v232
  %v1505 = vunpack.c.l.b16 %v233
  %v1506 = vunpack.c.h.b16 %v233
  %v1507 = vunpack.c.l.b16 %v234
  %v1508 = vunpack.c.h.b16 %v234
  %v1509 = vunpack.c.l.b16 %v235
  %v1510 = vunpack.c.h.b16 %v235
  %v1511 = vunpack.c.l.b16 %v236
  %v1512 = vunpack.c.h.b16 %v236
  %v1513 = vunpack.c.l.b16 %v237
  %v1514 = vunpack.c.h.b16 %v237
  %v1515 = vunpack.c.l.b16 %v238
  %v1516 = vunpack.c.h.b16 %v238
  %v1517 = vunpack.c.l.b16 %v239
  %v1518 = vunpack.c.h.b16 %v239
  %v1519 = vunpack.c.l.b16 %v240
  %v1520 = vunpack.c.h.b16 %v240
  %v1521 = vunpack.c.l.b16 %v241
  %v1522 = vunpack.c.h.b16 %v241
  %v1523 = vunpack.c.l.b16 %v242
  %v1524 = vunpack.c.h.b16 %v242
  %v1525 = vunpack.c.l.b16 %v243
  %v1526 = vunpack.c.h.b16 %v243
  %v1527 = vunpack.c.l.b16 %v244
  %v1528 = vunpack.c.h.b16 %v244
  %v1529 = vunpack.c.l.b16 %v245
  %v1530 = vunpack.c.h.b16 %v245
  %v1531 = vunpack.c.l.b16 %v246
  %v1532 = vunpack.c.h.b16 %v246
  %v1533 = vunpack.c.l.b16 %v247
  %v1534 = vunpack.c.h.b16 %v247
  %v1535 = vunpack.c.l.b16 %v248
  %v1536 = vunpack.c.h.b16 %v248
  %v1537 = vunpack.c.l.b16 %v249
  %v1538 = vunpack.c.h.b16 %v249
  %v1539 = vunpack.c.l.b16 %v250
  %v1540 = vunpack.c.h.b16 %v250
  %v1541 = vunpack.c.l.b16 %v251
  %v1542 = vunpack.c.h.b16 %v251
  %v1543 = vunpack.c.l.b16 %v252
  %v1544 = vunpack.c.h.b16 %v252
  %v1545 = vunpack.c.l.b16 %v253
  %v1546 = vunpack.c.h.b16 %v253
  %v1547 = vunpack.c.l.b16 %v254
  %v1548 = vunpack.c.h.b16 %v254
  %v1549 = vunpack.c.l.b16 %v255
  %v1550 = vunpack.c.h.b16 %v255
  %v1551 = vunpack.c.l.b16 %v256
  %v1552 = vunpack.c.h.b16 %v256
  %v1553 = vunpack.c.l.b16 %v257
  %v1554 = vunpack.c.h.b16 %v257
  %v1555 = vunpack.c.l.b16 %v258
  %v1556 = vunpack.c.h.b16 %v258
  %v1557 = vunpack.c.l.b16 %v259
  %v1558 = vunpack.c.h.b16 %v259
  %v1559 = vunpack.c.l.b16 %v260
  %v1560 = vunpack.c.h.b16 %v260
  %v1561 = vunpack.c.l.b16 %v261
  %v1562 = vunpack.c.h.b16 %v261
  %v1563 = vunpack.c.l.b16 %v262
  %v1564 = vunpack.c.h.b16 %v262
  %v1565 = vunpack.c.l.b16 %v263
  %v1566 = vunpack.c.h.b16 %v263
  %v1567 = vunpack.c.l.b16 %v264
  %v1568 = vunpack.c.h.b16 %v264
  %v1569 = vunpack.c.l.b16 %v265
  %v1570 = vunpack.c.h.b16 %v265
  %v1571 = vunpack.c.l.b16 %v266
  %v1572 = vunpack.c.h.b16 %v266
  %v1573 = vunpack.c.l.b16 %v267
  %v1574 = vunpack.c.h.b16 %v267
  %v1575 = vunpack.c.l.b16 %v268
  %v1576 = vunpack.c.h.b16 %v268
  %v1577 = vunpack.c.l.b16 %v269
  %v1578 = vunpack.c.h.b16 %v269
  %v1579 = vunpack.c.l.b16 %v270
  %v1580 = vunpack.c.h.b16 %v270
  %v1581 = vunpack.c.l.b16 %v271
  %v1582 = vunpack.c.h.b16 %v271
  %v1583 = vunpack.c.l.b16 %v272
  %v1584 = vunpack.c.h.b16 %v272
  %v1585 = vunpack.c.l.b16 %v273
  %v1586 = vunpack.c.h.b16 %v273
  %v1587 = vunpack.c.l.b16 %v274
  %v1588 = vunpack.c.h.b16 %v274
  %v1589 = vunpack.c.l.b16 %v275
  %v1590 = vunpack.c.h.b16 %v275
  %v1591 = vunpack.c.l.b16 %v276
  %v1592 = vunpack.c.h.b16 %v276
  %v1593 = vunpack.c.l.b16 %v277
  %v1594 = vunpack.c.h.b16 %v277
  %v1595 = vunpack.c.l.b16 %v278
  %v1596 = vunpack.c.h.b16 %v278
  %v1597 = vunpack.c.l.b16 %v279
  %v1598 = vunpack.c.h.b16 %v279
  %v1599 = vunpack.c.l.b16 %v280
  %v1600 = vunpack.c.h.b16 %v280
  %v1601 = vunpack.c.l.b16 %v281
  %v1602 = vunpack.c.h.b16 %v281
  %v1603 = vunpack.c.l.b16 %v282
  %v1604 = vunpack.c.h.b16 %v282
  %v1605 = vunpack.c.l.b16 %v283
  %v1606 = vunpack.c.h.b16 %v283
  %v1607 = vunpack.c.l.b16 %v284
  %v1608 = vunpack.c.h.b16 %v284
  %v1609 = vunpack.c.l.b16 %v285
  %v1610 = vunpack.c.h.b16 %v285
  %v1611 = vunpack.c.l.b16 %v286
  %v1612 = vunpack.c.h.b16 %v286
  %v1613 = vunpack.c.l.b16 %v287
  %v1614 = vunpack.c.h.b16 %v287
  %v1615 = vunpack.c.l.b16 %v288
  %v1616 = vunpack.c.h.b16 %v288
  %v1617 = vunpack.c.l.b16 %v289
  %v1618 = vunpack.c.h.b16 %v289
  %v1619 = vunpack.c.l.b16 %v290
  %v1620 = vunpack.c.h.b16 %v290
  %v1621 = vunpack.c.l.b16 %v291
  %v1622 = vunpack.c.h.b16 %v291
  %v1623 = vunpack.c.l.b16 %v292
  %v1624 = vunpack.c.h.b16 %v292
  %v1625 = vunpack.c.l.b16 %v293
  %v1626 = vunpack.c.h.b16 %v293
  %v1627 = vunpack.c.l.b16 %v294
  %v1628 = vunpack.c.h.b16 %v294
  %v1629 = vunpack.c.l.b16 %v295
  %v1630 = vunpack.c.h.b16 %v295
  %v1631 = vunpack.c.l.b16 %v296
  %v1632 = vunpack.c.h.b16 %v296
  %v1633 = vunpack.c.l.b16 %v297
  %v1634 = vunpack.c.h.b16 %v297
  %v1635 = vunpack.c.l.b16 %v298
  %v1636 = vunpack.c.h.b16 %v298
  %v1637 = vunpack.c.l.b16 %v299
  %v1638 = vunpack.c.h.b16 %v299
  %v1639 = vunpack.c.l.b16 %v300
  %v1640 = vunpack.c.h.b16 %v300
  %v1641 = vunpack.c.l.b16 %v301
  %v1642 = vunpack.c.h.b16 %v301
  %v1643 = vunpack.c.l.b16 %v302
  %v1644 = vunpack.c.h.b16 %v302
  %v1645 = vunpack.c.l.b16 %v303
  %v1646 = vunpack.c.h.b16 %v303
  %v1647 = vunpack.c.l.b16 %v304
  %v1648 = vunpack.c.h.b16 %v304
  %v1649 = vunpack.c.l.b16 %v305
  %v1650 = vunpack.c.h.b16 %v305
  %v1651 = vunpack.c.l.b16 %v306
  %v1652 = vunpack.c.h.b16 %v306
  %v1653 = vunpack.c.l.b16 %v307
  %v1654 = vunpack.c.h.b16 %v307
  %v1655 = vunpack.c.l.b16 %v308
  %v1656 = vunpack.c.h.b16 %v308
  %v1657 = vunpack.c.l.b16 %v309
  %v1658 = vunpack.c.h.b16 %v309
  %v1659 = vunpack.c.l.b16 %v310
  %v1660 = vunpack.c.h.b16 %v310
  %v1661 = vunpack.c.l.b16 %v311
  %v1662 = vunpack.c.h.b16 %v311
  %v1663 = vunpack.c.l.b16 %v312
  %v1664 = vunpack.c.h.b16 %v312
  %v1665 = vunpack.c.l.b16 %v313
  %v1666 = vunpack.c.h.b16 %v313
  %v1667 = vunpack.c.l.b16 %v314
  %v1668 = vunpack.c.h.b16 %v314
  %v1669 = vunpack.c.l.b16 %v315
  %v1670 = vunpack.c.h.b16 %v315
  %v1671 = vunpack.c.l.b16 %v316
  %v1672 = vunpack.c.h.b16 %v316
  %v1673 = vunpack.c.l.b16 %v317
  %v1674 = vunpack.c.h.b16 %v317
  %v1675 = vunpack.c.l.b16 %v318
  %v1676 = vunpack.c.h.b16 %v318
  %v1677 = vunpack.c.l.b16 %v319
  %v1678 = vunpack.c.h.b16 %v319
  %v1679 = vunpack.c.l.b16 %v320
  %v1680 = vunpack.c.h.b16 %v320
  %v1681 = vunpack.c.l.b16 %v321
  %v1682 = vunpack.c.h.b16 %v321
  %v1683 = vunpack.c.l.b16 %v322
  %v1684 = vunpack.c.h.b16 %v322
  %v1685 = vunpack.c.l.b16 %v323
  %v1686 = vunpack.c.h.b16 %v323
  %v1687 = vunpack.c.l.b16 %v324
  %v1688 = vunpack.c.h.b16 %v324
  %v1689 = vunpack.c.l.b16 %v325
  %v1690 = vunpack.c.h.b16 %v325
  %v1691 = vunpack.c.l.b16 %v326
  %v1692 = vunpack.c.h.b16 %v326
  %v1693 = vunpack.c.l.b16 %v327
  %v1694 = vunpack.c.h.b16 %v327
  %v1695 = vunpack.c.l.b16 %v328
  %v1696 = vunpack.c.h.b16 %v328
  %v1697 = vunpack.c.l.b16 %v329
  %v1698 = vunpack.c.h.b16 %v329
  %v1699 = vunpack.c.l.b16 %v330
  %v1700 = vunpack.c.h.b16 %v330
  %v1701 = vunpack.c.l.b16 %v331
  %v1702 = vunpack.c.h.b16 %v331
  %v1703 = vunpack.c.l.b16 %v332
  %v1704 = vunpack.c.h.b16 %v332
  %v1705 = vunpack.c.l.b16 %v333
  %v1706 = vunpack.c.h.b16 %v333
  %v1707 = vunpack.c.l.b16 %v334
  %v1708 = vunpack.c.h.b16 %v334
  %v1709 = vunpack.c.l.b16 %v335
  %v1710 = vunpack.c.h.b16 %v335
  %v1711 = vunpack.c.l.b16 %v336
  %v1712 = vunpack.c.h.b16 %v336
  %v1713 = vunpack.c.l.b16 %v337
  %v1714 = vunpack.c.h.b16 %v337
  %v1715 = vunpack.c.l.b16 %v338
  %v1716 = vunpack.c.h.b16 %v338
  %v1717 = vunpack.c.l.b16 %v339
  %v1718 = vunpack.c.h.b16 %v339
  %v1719 = vunpack.c.l.b16 %v340
  %v1720 = vunpack.c.h.b16 %v340
  %v1721 = vunpack.c.l.b16 %v341
  %v1722 = vunpack.c.h.b16 %v341
  %v1723 = vunpack.c.l.b16 %v342
  %v1724 = vunpack.c.h.b16 %v342
  %v1725 = vunpack.c.l.b16 %v343
  %v1726 = vunpack.c.h.b16 %v343
  %v1727 = vunpack.c.l.b16 %v344
  %v1728 = vunpack.c.h.b16 %v344
  %v1729 = vunpack.c.l.b16 %v345
  %v1730 = vunpack.c.h.b16 %v345
  %v1731 = vunpack.c.l.b16 %v346
  %v1732 = vunpack.c.h.b16 %v346
  %v1733 = vunpack.c.l.b16 %v347
  %v1734 = vunpack.c.h.b16 %v347
  %v1735 = vunpack.c.l.b16 %v348
  %v1736 = vunpack.c.h.b16 %v348
  %v1737 = vunpack.c.l.b16 %v349
  %v1738 = vunpack.c.h.b16 %v349
  %v1739 = vunpack.c.l.b16 %v350
  %v1740 = vunpack.c.h.b16 %v350
  %v1741 = vunpack.c.l.b16 %v351
  %v1742 = vunpack.c.h.b16 %v351
  %v1743 = vunpack.c.l.b16 %v352
  %v1744 = vunpack.c.h.b16 %v352
  %v1745 = vunpack.c.l.b16 %v353
  %v1746 = vunpack.c.h.b16 %v353
  %v1747 = vunpack.c.l.b16 %v354
  %v1748 = vunpack.c.h.b16 %v354
  %v1749 = vunpack.c.l.b16 %v355
  %v1750 = vunpack.c.h.b16 %v355
  %v1751 = vunpack.c.l.b16 %v356
  %v1752 = vunpack.c.h.b16 %v356
  %v1753 = vunpack.c.l.b16 %v357
  %v1754 = vunpack.c.h.b16 %v357
  %v1755 = vunpack.c.l.b16 %v358
  %v1756 = vunpack.c.h.b16 %v358
  %v1757 = vunpack.c.l.b16 %v359
  %v1758 = vunpack.c.h.b16 %v359
  %v1759 = vunpack.c.l.b16 %v360
  %v1760 = vunpack.c.h.b16 %v360
  %v1761 = vunpack.c.l.b16 %v361
  %v1762 = vunpack.c.h.b16 %v361
  %v1763 = vunpack.c.l.b16 %v362
  %v1764 = vunpack.c.h.b16 %v362
  %v1765 = vunpack.c.l.b16 %v363
  %v1766 = vunpack.c.h.b16 %v363
  %v1767 = vunpack.c.l.b16 %v364
  %v1768 = vunpack.c.h.b16 %v364
  %v1769 = vunpack.c.l.b16 %v365
  %v1770 = vunpack.c.h.b16 %v365
  %v1771 = vunpack.c.l.b16 %v366
  %v1772 = vunpack.c.h.b16 %v366
  %v1773 = vunpack.c.l.b16 %v367
  %v1774 = vunpack.c.h.b16 %v367
  %v1775 = vunpack.c.l.b16 %v368
  %v1776 = vunpack.c.h.b16 %v368
  %v1777 = vunpack.c.l.b16 %v369
  %v1778 = vunpack.c.h.b16 %v369
  %v1779 = vunpack.c.l.b16 %v370
  %v1780 = vunpack.c.h.b16 %v370
  %v1781 = vunpack.c.l.b16 %v371
  %v1782 = vunpack.c.h.b16 %v371
  %v1783 = vunpack.c.l.b16 %v372
  %v1784 = vunpack.c.h.b16 %v372
  %v1785 = vunpack.c.l.b16 %v373
  %v1786 = vunpack.c.h.b16 %v373
  %v1787 = vunpack.c.l.b16 %v374
  %v1788 = vunpack.c.h.b16 %v374
  %v1789 = vunpack.c.l.b16 %v375
  %v1790 = vunpack.c.h.b16 %v375
  %v1791 = vunpack.c.l.b16 %v376
  %v1792 = vunpack.c.h.b16 %v376
  %v1793 = vunpack.c.l.b16 %v377
  %v1794 = vunpack.c.h.b16 %v377
  %v1795 = vunpack.c.l.b16 %v378
  %v1796 = vunpack.c.h.b16 %v378
  %v1797 = vunpack.c.l.b16 %v379
  %v1798 = vunpack.c.h.b16 %v379
  %v1799 = vunpack.c.l.b16 %v380
  %v1800 = vunpack.c.h.b16 %v380
  %v1801 = vunpack.c.l.b16 %v381
  %v1802 = vunpack.c.h.b16 %v381
  %v1803 = vunpack.c.l.b16 %v382
  %v1804 = vunpack.c.h.b16 %v382
  %v1805 = vunpack.c.l.b16 %v383
  %v1806 = vunpack.c.h.b16 %v383
  %v1807 = vunpack.c.l.b16 %v384
  %v1808 = vunpack.c.h.b16 %v384
  %v1809 = vunpack.c.l.b16 %v385
  %v1810 = vunpack.c.h.b16 %v385
  %v1811 = vunpack.c.l.b16 %v386
  %v1812 = vunpack.c.h.b16 %v386
  %v1813 = vunpack.c.l.b16 %v387
  %v1814 = vunpack.c.h.b16 %v387
  %v1815 = vunpack.c.l.b16 %v388
  %v1816 = vunpack.c.h.b16 %v388
  %v1817 = vunpack.c.l.b16 %v389
  %v1818 = vunpack.c.h.b16 %v389
  %v1819 = vunpack.c.l.b16 %v390
  %v1820 = vunpack.c.h.b16 %v390
  %v1821 = vunpack.c.l.b16 %v391
  %v1822 = vunpack.c.h.b16 %v391
  %v1823 = vunpack.c.l.b16 %v392
  %v1824 = vunpack.c.h.b16 %v392
  %v1825 = vunpack.c.l.b16 %v393
  %v1826 = vunpack.c.h.b16 %v393
  %v1827 = vunpack.c.l.b16 %v394
  %v1828 = vunpack.c.h.b16 %v394
  %v1829 = vunpack.c.l.b16 %v395
  %v1830 = vunpack.c.h.b16 %v395
  %v1831 = vunpack.c.l.b16 %v396
  %v1832 = vunpack.c.h.b16 %v396
  %v1833 = vunpack.c.l.b16 %v397
  %v1834 = vunpack.c.h.b16 %v397
  %v1835 = vunpack.c.l.b16 %v398
  %v1836 = vunpack.c.h.b16 %v398
  %v1837 = vunpack.c.l.b16 %v399
  %v1838 = vunpack.c.h.b16 %v399
  %v1839 = vunpack.c.l.b16 %v400
  %v1840 = vunpack.c.h.b16 %v400
  %v1841 = vunpack.c.l.b16 %v401
  %v1842 = vunpack.c.h.b16 %v401
  %v1843 = vunpack.c.l.b16 %v402
  %v1844 = vunpack.c.h.b16 %v402
  %v1845 = vunpack.c.l.b16 %v403
  %v1846 = vunpack.c.h.b16 %v403
  %v1847 = vunpack.c.l.b16 %v404
  %v1848 = vunpack.c.h.b16 %v404
  %v1849 = vunpack.c.l.b16 %v405
  %v1850 = vunpack.c.h.b16 %v405
  %v1851 = vunpack.c.l.b16 %v406
  %v1852 = vunpack.c.h.b16 %v406
  %v1853 = vunpack.c.l.b16 %v407
  %v1854 = vunpack.c.h.b16 %v407
  %v1855 = vunpack.c.l.b16 %v408
  %v1856 = vunpack.c.h.b16 %v408
  %v1857 = vunpack.c.l.b16 %v409
  %v1858 = vunpack.c.h.b16 %v409
  %v1859 = vunpack.c.l.b16 %v410
  %v1860 = vunpack.c.h.b16 %v410
  %v1861 = vunpack.c.l.b16 %v411
  %v1862 = vunpack.c.h.b16 %v411
  %v1863 = vunpack.c.l.b16 %v412
  %v1864 = vunpack.c.h.b16 %v412
  %v1865 = vunpack.c.l.b16 %v413
  %v1866 = vunpack.c.h.b16 %v413
  %v1867 = vunpack.c.l.b16 %v414
  %v1868 = vunpack.c.h.b16 %v414
  %v1869 = vunpack.c.l.b16 %v415
  %v1870 = vunpack.c.h.b16 %v415
  %v1871 = vunpack.c.l.b16 %v416
  %v1872 = vunpack.c.h.b16 %v416
  %v1873 = vunpack.c.l.b16 %v417
  %v1874 = vunpack.c.h.b16 %v417
  %v1875 = vunpack.c.l.b16 %v418
  %v1876 = vunpack.c.h.b16 %v418
  %v1877 = vunpack.c.l.b16 %v419
  %v1878 = vunpack.c.h.b16 %v419
  %v1879 = vunpack.c.l.b16 %v420
  %v1880 = vunpack.c.h.b16 %v420
  %v1881 = vunpack.c.l.b16 %v421
  %v1882 = vunpack.c.h.b16 %v421
  %v1883 = vunpack.c.l.b16 %v422
  %v1884 = vunpack.c.h.b16 %v422
  %v1885 = vunpack.c.l.b16 %v423
  %v1886 = vunpack.c.h.b16 %v423
  %v1887 = vunpack.c.l.b16 %v424
  %v1888 = vunpack.c.h.b16 %v424
  %v1889 = vunpack.c.l.b16 %v425
  %v1890 = vunpack.c.h.b16 %v425
  %v1891 = vunpack.c.l.b16 %v426
  %v1892 = vunpack.c.h.b16 %v426
  %v1893 = vunpack.c.l.b16 %v427
  %v1894 = vunpack.c.h.b16 %v427
  %v1895 = vunpack.c.l.b16 %v428
  %v1896 = vunpack.c.h.b16 %v428
  %v1897 = vunpack.c.l.b16 %v429
  %v1898 = vunpack.c.h.b16 %v429
  %v1899 = vunpack.c.l.b16 %v430
  %v1900 = vunpack.c.h.b16 %v430
  %v1901 = vunpack.c.l.b16 %v431
  %v1902 = vunpack.c.h.b16 %v431
  %v1903 = vunpack.c.l.b16 %v432
  %v1904 = vunpack.c.h.b16 %v432
  %v1905 = vunpack.c.l.b16 %v433
  %v1906 = vunpack.c.h.b16 %v433
  %v1907 = vunpack.c.l.b16 %v434
  %v1908 = vunpack.c.h.b16 %v434
  %v1909 = vunpack.c.l.b16 %v435
  %v1910 = vunpack.c.h.b16 %v435
  %v1911 = vunpack.c.l.b16 %v436
  %v1912 = vunpack.c.h.b16 %v436
  %v1913 = vunpack.c.l.b16 %v437
  %v1914 = vunpack.c.h.b16 %v437
  %v1915 = vunpack.c.l.b16 %v438
  %v1916 = vunpack.c.h.b16 %v438
  %v1917 = vunpack.c.l.b16 %v439
  %v1918 = vunpack.c.h.b16 %v439
  %v1919 = vunpack.c.l.b16 %v440
  %v1920 = vunpack.c.h.b16 %v440
  %v1921 = vunpack.c.l.b16 %v441
  %v1922 = vunpack.c.h.b16 %v441
  %v1923 = vunpack.c.l.b16 %v442
  %v1924 = vunpack.c.h.b16 %v442
  %v1925 = vunpack.c.l.b16 %v443
  %v1926 = vunpack.c.h.b16 %v443
  %v1927 = vunpack.c.l.b16 %v444
  %v1928 = vunpack.c.h.b16 %v444
  %v1929 = vunpack.c.l.b16 %v445
  %v1930 = vunpack.c.h.b16 %v445
  %v1931 = vunpack.c.l.b16 %v446
  %v1932 = vunpack.c.h.b16 %v446
  %v1933 = vunpack.c.l.b16 %v447
  %v1934 = vunpack.c.h.b16 %v447
  %v1935 = vunpack.c.l.b16 %v448
  %v1936 = vunpack.c.h.b16 %v448
  %v1937 = vunpack.c.l.b16 %v449
  %v1938 = vunpack.c.h.b16 %v449
  %v1939 = vunpack.c.l.b16 %v450
  %v1940 = vunpack.c.h.b16 %v450
  %v1941 = vunpack.c.l.b16 %v451
  %v1942 = vunpack.c.h.b16 %v451
  %v1943 = vunpack.c.l.b16 %v452
  %v1944 = vunpack.c.h.b16 %v452
  %v1945 = vunpack.c.l.b16 %v453
  %v1946 = vunpack.c.h.b16 %v453
  %v1947 = vunpack.c.l.b16 %v454
  %v1948 = vunpack.c.h.b16 %v454
  %v1949 = vunpack.c.l.b16 %v455
  %v1950 = vunpack.c.h.b16 %v455
  %v1951 = vunpack.c.l.b16 %v456
  %v1952 = vunpack.c.h.b16 %v456
  %v1953 = vunpack.c.l.b16 %v457
  %v1954 = vunpack.c.h.b16 %v457
  %v1955 = vunpack.c.l.b16 %v458
  %v1956 = vunpack.c.h.b16 %v458
  %v1957 = vunpack.c.l.b16 %v459
  %v1958 = vunpack.c.h.b16 %v459
  %v1959 = vunpack.c.l.b16 %v460
  %v1960 = vunpack.c.h.b16 %v460
  %v1961 = vunpack.c.l.b16 %v461
  %v1962 = vunpack.c.h.b16 %v461
  %v1963 = vunpack.c.l.b16 %v462
  %v1964 = vunpack.c.h.b16 %v462
  %v1965 = vunpack.c.l.b16 %v463
  %v1966 = vunpack.c.h.b16 %v463
  %v1967 = vunpack.c.l.b16 %v464
  %v1968 = vunpack.c.h.b16 %v464
  %v1969 = vunpack.c.l.b16 %v465
  %v1970 = vunpack.c.h.b16 %v465
  %v1971 = vunpack.c.l.b16 %v466
  %v1972 = vunpack.c.h.b16 %v466
  %v1973 = vunpack.c.l.b16 %v467
  %v1974 = vunpack.c.h.b16 %v467
  %v1975 = vunpack.c.l.b16 %v468
  %v1976 = vunpack.c.h.b16 %v468
  %v1977 = vunpack.c.l.b16 %v469
  %v1978 = vunpack.c.h.b16 %v469
  %v1979 = vunpack.c.l.b16 %v470
  %v1980 = vunpack.c.h.b16 %v470
  %v1981 = vunpack.c.l.b16 %v471
  %v1982 = vunpack.c.h.b16 %v471
  %v1983 = vunpack.c.l.b16 %v472
  %v1984 = vunpack.c.h.b16 %v472
  %v1985 = vunpack.c.l.b16 %v473
  %v1986 = vunpack.c.h.b16 %v473
  %v1987 = vunpack.c.l.b16 %v474
  %v1988 = vunpack.c.h.b16 %v474
  %v1989 = vunpack.c.l.b16 %v475
  %v1990 = vunpack.c.h.b16 %v475
  %v1991 = vunpack.c.l.b16 %v476
  %v1992 = vunpack.c.h.b16 %v476
  %v1993 = vunpack.c.l.b16 %v477
  %v1994 = vunpack.c.h.b16 %v477
  %v1995 = vunpack.c.l.b16 %v478
  %v1996 = vunpack.c.h.b16 %v478
  %v1997 = vunpack.c.l.b16 %v479
  %v1998 = vunpack.c.h.b16 %v479
  %v1999 = vunpack.c.l.b16 %v480
  %v2000 = vunpack.c.h.b16 %v480
  %v2001 = vunpack.c.l.b16 %v481
  %v2002 = vunpack.c.h.b16 %v481
  %v2003 = vunpack.c.l.b16 %v482
  %v2004 = vunpack.c.h.b16 %v482
  %v2005 = vunpack.c.l.b16 %v483
  %v2006 = vunpack.c.h.b16 %v483
  %v2007 = vunpack.c.l.b16 %v484
  %v2008 = vunpack.c.h.b16 %v484
  %v2009 = vunpack.c.l.b16 %v485
  %v2010 = vunpack.c.h.b16 %v485
  %v2011 = vunpack.c.l.b16 %v486
  %v2012 = vunpack.c.h.b16 %v486
  %v2013 = vunpack.c.l.b16 %v487
  %v2014 = vunpack.c.h.b16 %v487
  %v2015 = vunpack.c.l.b16 %v488
  %v2016 = vunpack.c.h.b16 %v488
  %v2017 = vunpack.c.l.b16 %v489
  %v2018 = vunpack.c.h.b16 %v489
  %v2019 = vunpack.c.l.b16 %v490
  %v2020 = vunpack.c.h.b16 %v490
  %v2021 = vunpack.c.l.b16 %v491
  %v2022 = vunpack.c.h.b16 %v491
  %v2023 = vunpack.c.l.b16 %v492
  %v2024 = vunpack.c.h.b16 %v492
  %v2025 = vunpack.c.l.b16 %v493
  %v2026 = vunpack.c.h.b16 %v493
  %v2027 = vunpack.c.l.b16 %v494
  %v2028 = vunpack.c.h.b16 %v494
  %v2029 = vunpack.c.l.b16 %v495
  %v2030 = vunpack.c.h.b16 %v495
  %v2031 = vunpack.c.l.b16 %v496
  %v2032 = vunpack.c.h.b16 %v496
  %v2033 = vunpack.c.l.b16 %v497
  %v2034 = vunpack.c.h.b16 %v497
  %v2035 = vunpack.c.l.b16 %v498
  %v2036 = vunpack.c.h.b16 %v498
  %v2037 = vunpack.c.l.b16 %v499
  %v2038 = vunpack.c.h.b16 %v499
  %v2039 = vunpack.c.l.b16 %v500
  %v2040 = vunpack.c.h.b16 %v500
  %v2041 = vunpack.c.l.b16 %v501
  %v2042 = vunpack.c.h.b16 %v501
  %v2043 = vunpack.c.l.b16 %v502
  %v2044 = vunpack.c.h.b16 %v502
  %v2045 = vunpack.c.l.b16 %v503
  %v2046 = vunpack.c.h.b16 %v503
  %v2047 = vunpack.c.l.b16 %v504
  %v2048 = vunpack.c.h.b16 %v504
  %v2049 = vunpack.c.l.b16 %v505
  %v2050 = vunpack.c.h.b16 %v505
  %v2051 = vunpack.c.l.b16 %v506
  %v2052 = vunpack.c.h.b16 %v506
  %v2053 = vunpack.c.l.b16 %v507
  %v2054 = vunpack.c.h.b16 %v507
  %v2055 = vunpack.c.l.b16 %v508
  %v2056 = vunpack.c.h.b16 %v508
  %v2057 = vunpack.c.l.b16 %v509
  %v2058 = vunpack.c.h.b16 %v509
  %v2059 = vunpack.c.l.b16 %v510
  %v2060 = vunpack.c.h.b16 %v510
  %v2061 = vunpack.c.l.b16 %v511
  %v2062 = vunpack.c.h.b16 %v511
  %v2063 = vunpack.c.l.b16 %v512
  %v2064 = vunpack.c.h.b16 %v512
  %v2065 = vunpack.c.l.b16 %v513
  %v2066 = vunpack.c.h.b16 %v513
  %v2067 = vunpack.c.l.b16 %v514
  %v2068 = vunpack.c.h.b16 %v514
  %v2069 = vunpack.c.l.b16 %v515
  %v2070 = vunpack.c.h.b16 %v515
  %v2071 = vunpack.c.l.b16 %v516
  %v2072 = vunpack.c.h.b16 %v516
  %v2073 = vunpack.c.l.b16 %v517
  %v2074 = vunpack.c.h.b16 %v517
  %v2075 = vunpack.c.l.b16 %v518
  %v2076 = vunpack.c.h.b16 %v518
  %v2077 = vunpack.c.l.b16 %v519
  %v2078 = vunpack.c.h.b16 %v519
  %v2079 = vunpack.c.l.b16 %v520
  %v2080 = vunpack.c.h.b16 %v520
  %v2081 = vunpack.c.l.b16 %v521
  %v2082 = vunpack.c.h.b16 %v521
  %v2083 = vunpack.c.l.b16 %v522
  %v2084 = vunpack.c.h.b16 %v522
  %v2085 = vunpack.c.l.b16 %v523
  %v2086 = vunpack.c.h.b16 %v523
  %v2087 = vunpack.c.l.b16 %v524
  %v2088 = vunpack.c.h.b16 %v524
  %v2089 = vunpack.c.l.b16 %v525
  %v2090 = vunpack.c.h.b16 %v525
  %v2091 = vunpack.c.l.b16 %v526
  %v2092 = vunpack.c.h.b16 %v526
  %v2093 = vunpack.c.l.b16 %v527
  %v2094 = vunpack.c.h.b16 %v527
  %v2095 = vunpack.c.l.b16 %v528
  %v2096 = vunpack.c.h.b16 %v528
  %v2097 = vunpack.c.l.b16 %v529
  %v2098 = vunpack.c.h.b16 %v529
  %v2099 = vunpack.c.l.b16 %v530
  %v2100 = vunpack.c.h.b16 %v530
  %v2101 = vunpack.c.l.b16 %v531
  %v2102 = vunpack.c.h.b16 %v531
  %v2103 = vunpack.c.l.b16 %v532
  %v2104 = vunpack.c.h.b16 %v532
  %v2105 = vunpack.c.l.b16 %v533
  %v2106 = vunpack.c.h.b16 %v533
  %v2107 = vunpack.c.l.b16 %v534
  %v2108 = vunpack.c.h.b16 %v534
  %v2109 = vunpack.c.l.b16 %v535
  %v2110 = vunpack.c.h.b16 %v535
  %v2111 = vunpack.c.l.b16 %v536
  %v2112 = vunpack.c.h.b16 %v536
  %v2113 = vunpack.c.l.b16 %v537
  %v2114 = vunpack.c.h.b16 %v537
  %v2115 = vunpack.c.l.b16 %v538
  %v2116 = vunpack.c.h.b16 %v538
  %v2117 = vunpack.c.l.b16 %v539
  %v2118 = vunpack.c.h.b16 %v539
  %v2119 = vunpack.c.l.b16 %v540
  %v2120 = vunpack.c.h.b16 %v540
  %v2121 = vunpack.c.l.b16 %v541
  %v2122 = vunpack.c.h.b16 %v541
  %v2123 = vunpack.c.l.b16 %v542
  %v2124 = vunpack.c.h.b16 %v542
  %v2125 = vpack.c.b16 %v1109, %v1101
  %v2126 = vpack.c.b16 %v1110, %v1102
  %v2127 = vpack.c.b16 %v1111, %v1103
  %v2128 = vpack.c.b16 %v1112, %v1104
  %v2129 = vpack.c.b16 %v1113, %v1105
  %v2130 = vpack.c.b16 %v1114, %v1106
  %v2131 = vpack.c.b16 %v1115, %v1107
  %v2132 = vpack.c.b16 %v1116, %v1108
  %v2133 = vpack.c.b16 %v1125, %v1117
  %v2134 = vpack.c.b16 %v1126, %v1118
  %v2135 = vpack.c.b16 %v1127, %v1119
  %v2136 = vpack.c.b16 %v1128, %v1120
  %v2137 = vpack.c.b16 %v1129, %v1121
  %v2138 = vpack.c.b16 %v1130, %v1122
  %v2139 = vpack.c.b16 %v1131, %v1123
  %v2140 = vpack.c.b16 %v1132, %v1124
  %v2141 = vpack.c.b16 %v1141, %v1133
  %v2142 = vpack.c.b16 %v1142, %v1134
  %v2143 = vpack.c.b16 %v1143, %v1135
  %v2144 = vpack.c.b16 %v1144, %v1136
  %v2145 = vpack.c.b16 %v1145, %v1137
  %v2146 = vpack.c.b16 %v1146, %v1138
  %v2147 = vpack.c.b16 %v1147, %v1139
  %v2148 = vpack.c.b16 %v1148, %v1140
  %v2149 = vpack.c.b16 %v1157, %v1149
  %v2150 = vpack.c.b16 %v1158, %v1150
  %v2151 = vpack.c.b16 %v1159, %v1151
  %v2152 = vpack.c.b16 %v1160, %v1152
  %v2153 = vpack.c.b16 %v1161, %v1153
  %v2154 = vpack.c.b16 %v1162, %v1154
  %v2155 = vpack.c.b16 %v1163, %v1155
  %v2156 = vpack.c.b16 %v1164, %v1156
  %v2157 = vpack.c.b16 %v1173, %v1165
  %v2158 = vpack.c.b16 %v1174, %v1166
  %v2159 = vpack.c.b16 %v1175, %v1167
  %v2160 = vpack.c.b16 %v1176, %v1168
  %v2161 = vpack.c.b16 %v1177, %v1169
  %v2162 = vpack.c.b16 %v1178, %v1170
  %v2163 = vpack.c.b16 %v1179, %v1171
  %v2164 = vpack.c.b16 %v1180, %v1172
  %v2165 = vpack.c.b16 %v1189, %v1181
  %v2166 = vpack.c.b16 %v1190, %v1182
  %v2167 = vpack.c.b16 %v1191, %v1183
  %v2168 = vpack.c.b16 %v1192, %v1184
  %v2169 = vpack.c.b16 %v1193, %v1185
  %v2170 = vpack.c.b16 %v1194, %v1186
  %v2171 = vpack.c.b16 %v1195, %v1187
  %v2172 = vpack.c.b16 %v1196, %v1188
  %v2173 = vpack.c.b16 %v1205, %v1197
  %v2174 = vpack.c.b16 %v1206, %v1198
  %v2175 = vpack.c.b16 %v1207, %v1199
  %v2176 = vpack.c.b16 %v1208, %v1200
  %v2177 = vpack.c.b16 %v1209, %v1201
  %v2178 = vpack.c.b16 %v1210, %v1202
  %v2179 = vpack.c.b16 %v1211, %v1203
  %v2180 = vpack.c.b16 %v1212, %v1204
  %v2181 = vpack.c.b16 %v1221, %v1213
  %v2182 = vpack.c.b16 %v1222, %v1214
  %v2183 = vpack.c.b16 %v1223, %v1215
  %v2184 = vpack.c.b16 %v1224, %v1216
  %v2185 = vpack.c.b16 %v1225, %v1217
  %v2186 = vpack.c.b16 %v1226, %v1218
  %v2187 = vpack.c.b16 %v1227, %v1219
  %v2188 = vpack.c.b16 %v1228, %v1220
  %v2189 = vpack.c.b16 %v1237, %v1229
  %v2190 = vpack.c.b16 %v1238, %v1230
  %v2191 = vpack.c.b16 %v1239, %v1231
  %v2192 = vpack.c.b16 %v1240, %v1232
  %v2193 = vpack.c.b16 %v1241, %v1233
  %v2194 = vpack.c.b16 %v1242, %v1234
  %v2195 = vpack.c.b16 %v1243, %v1235
  %v2196 = vpack.c.b16 %v1244, %v1236
  %v2197 = vpack.c.b16 %v1253, %v1245
  %v2198 = vpack.c.b16 %v1254, %v1246
  %v2199 = vpack.c.b16 %v1255, %v1247
  %v2200 = vpack.c.b16 %v1256, %v1248
  %v2201 = vpack.c.b16 %v1257, %v1249
  %v2202 = vpack.c.b16 %v1258, %v1250
  %v2203 = vpack.c.b16 %v1259, %v1251
  %v2204 = vpack.c.b16 %v1260, %v1252
  %v2205 = vpack.c.b16 %v1269, %v1261
  %v2206 = vpack.c.b16 %v1270, %v1262
  %v2207 = vpack.c.b16 %v1271, %v1263
  %v2208 = vpack.c.b16 %v1272, %v1264
  %v2209 = vpack.c.b16 %v1273, %v1265
  %v2210 = vpack.c.b16 %v1274, %v1266
  %v2211 = vpack.c.b16 %v1275, %v1267
  %v2212 = vpack.c.b16 %v1276, %v1268
  %v2213 = vpack.c.b16 %v1285, %v1277
  %v2214 = vpack.c.b16 %v1286, %v1278
  %v2215 = vpack.c.b16 %v1287, %v1279
  %v2216 = vpack.c.b16 %v1288, %v1280
  %v2217 = vpack.c.b16 %v1289, %v1281
  %v2218 = vpack.c.b16 %v1290, %v1282
  %v2219 = vpack.c.b16 %v1291, %v1283
  %v2220 = vpack.c.b16 %v1292, %v1284
  %v2221 = vpack.c.b16 %v1301, %v1293
  %v2222 = vpack.c.b16 %v1302, %v1294
  %v2223 = vpack.c.b16 %v1303, %v1295
  %v2224 = vpack.c.b16 %v1304, %v1296
  %v2225 = vpack.c.b16 %v1305, %v1297
  %v2226 = vpack.c.b16 %v1306, %v1298
  %v2227 = vpack.c.b16 %v1307, %v1299
  %v2228 = vpack.c.b16 %v1308, %v1300
  %v2229 = vpack.c.b16 %v1317, %v1309
  %v2230 = vpack.c.b16 %v1318, %v1310
  %v2231 = vpack.c.b16 %v1319, %v1311
  %v2232 = vpack.c.b16 %v1320, %v1312
  %v2233 = vpack.c.b16 %v1321, %v1313
  %v2234 = vpack.c.b16 %v1322, %v1314
  %v2235 = vpack.c.b16 %v1323, %v1315
  %v2236 = vpack.c.b16 %v1324, %v1316
  %v2237 = vpack.c.b16 %v1333, %v1325
  %v2238 = vpack.c.b16 %v1334, %v1326
  %v2239 = vpack.c.b16 %v1335, %v1327
  %v2240 = vpack.c.b16 %v1336, %v1328
  %v2241 = vpack.c.b16 %v1337, %v1329
  %v2242 = vpack.c.b16 %v1338, %v1330
  %v2243 = vpack.c.b16 %v1339, %v1331
  %v2244 = vpack.c.b16 %v1340, %v1332
  %v2245 = vpack.c.b16 %v1349, %v1341
  %v2246 = vpack.c.b16 %v1350, %v1342
  %v2247 = vpack.c.b16 %v1351, %v1343
  %v2248 = vpack.c.b16 %v1352, %v1344
  %v2249 = vpack.c.b16 %v1353, %v1345
  %v2250 = vpack.c.b16 %v1354, %v1346
  %v2251 = vpack.c.b16 %v1355, %v1347
  %v2252 = vpack.c.b16 %v1356, %v1348
  %v2253 = vpack.c.b16 %v1365, %v1357
  %v2254 = vpack.c.b16 %v1366, %v1358
  %v2255 = vpack.c.b16 %v1367, %v1359
  %v2256 = vpack.c.b16 %v1368, %v1360
  %v2257 = vpack.c.b16 %v1369, %v1361
  %v2258 = vpack.c.b16 %v1370, %v1362
  %v2259 = vpack.c.b16 %v1371, %v1363
  %v2260 = vpack.c.b16 %v1372, %v1364
  %v2261 = vpack.c.b16 %v1381, %v1373
  %v2262 = vpack.c.b16 %v1382, %v1374
  %v2263 = vpack.c.b16 %v1383, %v1375
  %v2264 = vpack.c.b16 %v1384, %v1376
  %v2265 = vpack.c.b16 %v1385, %v1377
  %v2266 = vpack.c.b16 %v1386, %v1378
  %v2267 = vpack.c.b16 %v1387, %v1379
  %v2268 = vpack.c.b16 %v1388, %v1380
  %v2269 = vpack.c.b16 %v1397, %v1389
  %v2270 = vpack.c.b16 %v1398, %v1390
  %v2271 = vpack.c.b16 %v1399, %v1391
  %v2272 = vpack.c.b16 %v1400, %v1392
  %v2273 = vpack.c.b16 %v1401, %v1393
  %v2274 = vpack.c.b16 %v1402, %v1394
  %v2275 = vpack.c.b16 %v1403, %v1395
  %v2276 = vpack.c.b16 %v1404, %v1396
  %v2277 = vpack.c.b16 %v1413, %v1405
  %v2278 = vpack.c.b16 %v1414, %v1406
  %v2279 = vpack.c.b16 %v1415, %v1407
  %v2280 = vpack.c.b16 %v1416, %v1408
  %v2281 = vpack.c.b16 %v1417, %v1409
  %v2282 = vpack.c.b16 %v1418, %v1410
  %v2283 = vpack.c.b16 %v1419, %v1411
  %v2284 = vpack.c.b16 %v1420, %v1412
  %v2285 = vpack.c.b16 %v1429, %v1421
  %v2286 = vpack.c.b16 %v1430, %v1422
  %v2287 = vpack.c.b16 %v1431, %v1423
  %v2288 = vpack.c.b16 %v1432, %v1424
  %v2289 = vpack.c.b16 %v1433, %v1425
  %v2290 = vpack.c.b16 %v1434, %v1426
  %v2291 = vpack.c.b16 %v1435, %v1427
  %v2292 = vpack.c.b16 %v1436, %v1428
  %v2293 = vpack.c.b16 %v1445, %v1437
  %v2294 = vpack.c.b16 %v1446, %v1438
  %v2295 = vpack.c.b16 %v1447, %v1439
  %v2296 = vpack.c.b16 %v1448, %v1440
  %v2297 = vpack.c.b16 %v1449, %v1441
  %v2298 = vpack.c.b16 %v1450, %v1442
  %v2299 = vpack.c.b16 %v1451, %v1443
  %v2300 = vpack.c.b16 %v1452, %v1444
  %v2301 = vpack.c.b16 %v1461, %v1453
  %v2302 = vpack.c.b16 %v1462, %v1454
  %v2303 = vpack.c.b16 %v1463, %v1455
  %v2304 = vpack.c.b16 %v1464, %v1456
  %v2305 = vpack.c.b16 %v1465, %v1457
  %v2306 = vpack.c.b16 %v1466, %v1458
  %v2307 = vpack.c.b16 %v1467, %v1459
  %v2308 = vpack.c.b16 %v1468, %v1460
  %v2309 = vpack.c.b16 %v1477, %v1469
  %v2310 = vpack.c.b16 %v1478, %v1470
  %v2311 = vpack.c.b16 %v1479, %v1471
  %v2312 = vpack.c.b16 %v1480, %v1472
  %v2313 = vpack.c.b16 %v1481, %v1473
  %v2314 = vpack.c.b16 %v1482, %v1474
  %v2315 = vpack.c.b16 %v1483, %v1475
  %v2316 = vpack.c.b16 %v1484, %v1476
  %v2317 = vpack.c.b16 %v1493, %v1485
  %v2318 = vpack.c.b16 %v1494, %v1486
  %v2319 = vpack.c.b16 %v1495, %v1487
  %v2320 = vpack.c.b16 %v1496, %v1488
  %v2321 = vpack.c.b16 %v1497, %v1489
  %v2322 = vpack.c.b16 %v1498, %v1490
  %v2323 = vpack.c.b16 %v1499, %v1491
  %v2324 = vpack.c.b16 %v1500, %v1492
  %v2325 = vpack.c.b16 %v1509, %v1501
  %v2326 = vpack.c.b16 %v1510, %v1502
  %v2327 = vpack.c.b16 %v1511, %v1503
  %v2328 = vpack.c.b16 %v1512, %v1504
  %v2329 = vpack.c.b16 %v1513, %v1505
  %v2330 = vpack.c.b16 %v1514, %v1506
  %v2331 = vpack.c.b16 %v1515, %v1507
  %v2332 = vpack.c.b16 %v1516, %v1508
  %v2333 = vpack.c.b16 %v1525, %v1517
  %v2334 = vpack.c.b16 %v1526, %v1518
  %v2335 = vpack.c.b16 %v1527, %v1519
  %v2336 = vpack.c.b16 %v1528, %v1520
  %v2337 = vpack.c.b16 %v1529, %v1521
  %v2338 = vpack.c.b16 %v1530, %v1522
  %v2339 = vpack.c.b16 %v1531, %v1523
  %v2340 = vpack.c.b16 %v1532, %v1524
  %v2341 = vpack.c.b16 %v1541, %v1533
  %v2342 = vpack.c.b16 %v1542, %v1534
  %v2343 = vpack.c.b16 %v1543, %v1535
  %v2344 = vpack.c.b16 %v1544, %v1536
  %v2345 = vpack.c.b16 %v1545, %v1537
  %v2346 = vpack.c.b16 %v1546, %v1538
  %v2347 = vpack.c.b16 %v1547, %v1539
  %v2348 = vpack.c.b16 %v1548, %v1540
  %v2349 = vpack.c.b16 %v1557, %v1549
  %v2350 = vpack.c.b16 %v1558, %v1550
  %v2351 = vpack.c.b16 %v1559, %v1551
  %v2352 = vpack.c.b16 %v1560, %v1552
  %v2353 = vpack.c.b16 %v1561, %v1553
  %v2354 = vpack.c.b16 %v1562, %v1554
  %v2355 = vpack.c.b16 %v1563, %v1555
  %v2356 = vpack.c.b16 %v1564, %v1556
  %v2357 = vpack.c.b16 %v1573, %v1565
  %v2358 = vpack.c.b16 %v1574, %v1566
  %v2359 = vpack.c.b16 %v1575, %v1567
  %v2360 = vpack.c.b16 %v1576, %v1568
  %v2361 = vpack.c.b16 %v1577, %v1569
  %v2362 = vpack.c.b16 %v1578, %v1570
  %v2363 = vpack.c.b16 %v1579, %v1571
  %v2364 = vpack.c.b16 %v1580, %v1572
  %v2365 = vpack.c.b16 %v1589, %v1581
  %v2366 = vpack.c.b16 %v1590, %v1582
  %v2367 = vpack.c.b16 %v1591, %v1583
  %v2368 = vpack.c.b16 %v1592, %v1584
  %v2369 = vpack.c.b16 %v1593, %v1585
  %v2370 = vpack.c.b16 %v1594, %v1586
  %v2371 = vpack.c.b16 %v1595, %v1587
  %v2372 = vpack.c.b16 %v1596, %v1588
  %v2373 = vpack.c.b16 %v1605, %v1597
  %v2374 = vpack.c.b16 %v1606, %v1598
  %v2375 = vpack.c.b16 %v1607, %v1599
  %v2376 = vpack.c.b16 %v1608, %v1600
  %v2377 = vpack.c.b16 %v1609, %v1601
  %v2378 = vpack.c.b16 %v1610, %v1602
  %v2379 = vpack.c.b16 %v1611, %v1603
  %v2380 = vpack.c.b16 %v1612, %v1604
  %v2381 = vpack.c.b16 %v1621, %v1613
  %v2382 = vpack.c.b16 %v1622, %v1614
  %v2383 = vpack.c.b16 %v1623, %v1615
  %v2384 = vpack.c.b16 %v1624, %v1616
  %v2385 = vpack.c.b16 %v1625, %v1617
  %v2386 = vpack.c.b16 %v1626, %v1618
  %v2387 = vpack.c.b16 %v1627, %v1619
  %v2388 = vpack.c.b16 %v1628, %v1620
  %v2389 = vpack.c.b16 %v1637, %v1629
  %v2390 = vpack.c.b16 %v1638, %v1630
  %v2391 = vpack.c.b16 %v1639, %v1631
  %v2392 = vpack.c.b16 %v1640, %v1632
  %v2393 = vpack.c.b16 %v1641, %v1633
  %v2394 = vpack.c.b16 %v1642, %v1634
  %v2395 = vpack.c.b16 %v1643, %v1635
  %v2396 = vpack.c.b16 %v1644, %v1636
  %v2397 = vpack.c.b16 %v1653, %v1645
  %v2398 = vpack.c.b16 %v1654, %v1646
  %v2399 = vpack.c.b16 %v1655, %v1647
  %v2400 = vpack.c.b16 %v1656, %v1648
  %v2401 = vpack.c.b16 %v1657, %v1649
  %v2402 = vpack.c.b16 %v1658, %v1650
  %v2403 = vpack.c.b16 %v1659, %v1651
  %v2404 = vpack.c.b16 %v1660, %v1652
  %v2405 = vpack.c.b16 %v1669, %v1661
  %v2406 = vpack.c.b16 %v1670, %v1662
  %v2407 = vpack.c.b16 %v1671, %v1663
  %v2408 = vpack.c.b16 %v1672, %v1664
  %v2409 = vpack.c.b16 %v1673, %v1665
  %v2410 = vpack.c.b16 %v1674, %v1666
  %v2411 = vpack.c.b16 %v1675, %v1667
  %v2412 = vpack.c.b16 %v1676, %v1668
  %v2413 = vpack.c.b16 %v1685, %v1677
  %v2414 = vpack.c.b16 %v1686, %v1678
  %v2415 = vpack.c.b16 %v1687, %v1679
  %v2416 = vpack.c.b16 %v1688, %v1680
  %v2417 = vpack.c.b16 %v1689, %v1681
  %v2418 = vpack.c.b16 %v1690, %v1682
  %v2419 = vpack.c.b16 %v1691, %v1683
  %v2420 = vpack.c.b16 %v1692, %v1684
  %v2421 = vpack.c.b16 %v1701, %v1693
  %v2422 = vpack.c.b16 %v1702, %v1694
  %v2423 = vpack.c.b16 %v1703, %v1695
  %v2424 = vpack.c.b16 %v1704, %v1696
  %v2425 = vpack.c.b16 %v1705, %v1697
  %v2426 = vpack.c.b16 %v1706, %v1698
  %v2427 = vpack.c.b16 %v1707, %v1699
  %v2428 = vpack.c.b16 %v1708, %v1700
  %v2429 = vpack.c.b16 %v1717, %v1709
  %v2430 = vpack.c.b16 %v1718, %v1710
  %v2431 = vpack.c.b16 %v1719, %v1711
  %v2432 = vpack.c.b16 %v1720, %v1712
  %v2433 = vpack.c.b16 %v1721, %v1713
  %v2434 = vpack.c.b16 %v1722, %v1714
  %v2435 = vpack.c.b16 %v1723, %v1715
  %v2436 = vpack.c.b16 %v1724, %v1716
  %v2437 = vpack.c.b16 %v1733, %v1725
  %v2438 = vpack.c.b16 %v1734, %v1726
  %v2439 = vpack.c.b16 %v1735, %v1727
  %v2440 = vpack.c.b16 %v1736, %v1728
  %v2441 = vpack.c.b16 %v1737, %v1729
  %v2442 = vpack.c.b16 %v1738, %v1730
  %v2443 = vpack.c.b16 %v1739, %v1731
  %v2444 = vpack.c.b16 %v1740, %v1732
  %v2445 = vpack.c.b16 %v1749, %v1741
  %v2446 = vpack.c.b16 %v1750, %v1742
  %v2447 = vpack.c.b16 %v1751, %v1743
  %v2448 = vpack.c.b16 %v1752, %v1744
  %v2449 = vpack.c.b16 %v1753, %v1745
  %v2450 = vpack.c.b16 %v1754, %v1746
  %v2451 = vpack.c.b16 %v1755, %v1747
  %v2452 = vpack.c.b16 %v1756, %v1748
  %v2453 = vpack.c.b16 %v1765, %v1757
  %v2454 = vpack.c.b16 %v1766, %v1758
  %v2455 = vpack.c.b16 %v1767, %v1759
  %v2456 = vpack.c.b16 %v1768, %v1760
  %v2457 = vpack.c.b16 %v1769, %v1761
  %v2458 = vpack.c.b16 %v1770, %v1762
  %v2459 = vpack.c.b16 %v1771, %v1763
  %v2460 = vpack.c.b16 %v1772, %v1764
  %v2461 = vpack.c.b16 %v1781, %v1773
  %v2462 = vpack.c.b16 %v1782, %v1774
  %v2463 = vpack.c.b16 %v1783, %v1775
  %v2464 = vpack.c.b16 %v1784, %v1776
  %v2465 = vpack.c.b16 %v1785, %v1777
  %v2466 = vpack.c.b16 %v1786, %v1778
  %v2467 = vpack.c.b16 %v1787, %v1779
  %v2468 = vpack.c.b16 %v1788, %v1780
  %v2469 = vpack.c.b16 %v1797, %v1789
  %v2470 = vpack.c.b16 %v1798, %v1790
  %v2471 = vpack.c.b16 %v1799, %v1791
  %v2472 = vpack.c.b16 %v1800, %v1792
  %v2473 = vpack.c.b16 %v1801, %v1793
  %v2474 = vpack.c.b16 %v1802, %v1794
  %v2475 = vpack.c.b16 %v1803, %v1795
  %v2476 = vpack.c.b16 %v1804, %v1796
  %v2477 = vpack.c.b16 %v1813, %v1805
  %v2478 = vpack.c.b16 %v1814, %v1806
  %v2479 = vpack.c.b16 %v1815, %v1807
  %v2480 = vpack.c.b16 %v1816, %v1808
  %v2481 = vpack.c.b16 %v1817, %v1809
  %v2482 = vpack.c.b16 %v1818, %v1810
  %v2483 = vpack.c.b16 %v1819, %v1811
  %v2484 = vpack.c.b16 %v1820, %v1812
  %v2485 = vpack.c.b16 %v1829, %v1821
  %v2486 = vpack.c.b16 %v1830, %v1822
  %v2487 = vpack.c.b16 %v1831, %v1823
  %v2488 = vpack.c.b16 %v1832, %v1824
  %v2489 = vpack.c.b16 %v1833, %v1825
  %v2490 = vpack.c.b16 %v1834, %v1826
  %v2491 = vpack.c.b16 %v1835, %v1827
  %v2492 = vpack.c.b16 %v1836, %v1828
  %v2493 = vpack.c.b16 %v1845, %v1837
  %v2494 = vpack.c.b16 %v1846, %v1838
  %v2495 = vpack.c.b16 %v1847, %v1839
  %v2496 = vpack.c.b16 %v1848, %v1840
  %v2497 = vpack.c.b16 %v1849, %v1841
  %v2498 = vpack.c.b16 %v1850, %v1842
  %v2499 = vpack.c.b16 %v1851, %v1843
  %v2500 = vpack.c.b16 %v1852, %v1844
  %v2501 = vpack.c.b16 %v1861, %v1853
  %v2502 = vpack.c.b16 %v1862, %v1854
  %v2503 = vpack.c.b16 %v1863, %v1855
  %v2504 = vpack.c.b16 %v1864, %v1856
  %v2505 = vpack.c.b16 %v1865, %v1857
  %v2506 = vpack.c.b16 %v1866, %v1858
  %v2507 = vpack.c.b16 %v1867, %v1859
  %v2508 = vpack.c.b16 %v1868, %v1860
  %v2509 = vpack.c.b16 %v1877, %v1869
  %v2510 = vpack.c.b16 %v1878, %v1870
  %v2511 = vpack.c.b16 %v1879, %v1871
  %v2512 = vpack.c.b16 %v1880, %v1872
  %v2513 = vpack.c.b16 %v1881, %v1873
  %v2514 = vpack.c.b16 %v1882, %v1874
  %v2515 = vpack.c.b16 %v1883, %v1875
  %v2516 = vpack.c.b16 %v1884, %v1876
  %v2517 = vpack.c.b16 %v1893, %v1885
  %v2518 = vpack.c.b16 %v1894, %v1886
  %v2519 = vpack.c.b16 %v1895, %v1887
  %v2520 = vpack.c.b16 %v1896, %v1888
  %v2521 = vpack.c.b16 %v1897, %v1889
  %v2522 = vpack.c.b16 %v1898, %v1890
  %v2523 = vpack.c.b16 %v1899, %v1891
  %v2524 = vpack.c.b16 %v1900, %v1892
  %v2525 = vpack.c.b16 %v1909, %v1901
  %v2526 = vpack.c.b16 %v1910, %v1902
  %v2527 = vpack.c.b16 %v1911, %v1903
  %v2528 = vpack.c.b16 %v1912, %v1904
  %v2529 = vpack.c.b16 %v1913, %v1905
  %v2530 = vpack.c.b16 %v1914, %v1906
  %v2531 = vpack.c.b16 %v1915, %v1907
  %v2532 = vpack.c.b16 %v1916, %v1908
  %v2533 = vpack.c.b16 %v1925, %v1917
  %v2534 = vpack.c.b16 %v1926, %v1918
  %v2535 = vpack.c.b16 %v1927, %v1919
  %v2536 = vpack.c.b16 %v1928, %v1920
  %v2537 = vpack.c.b16 %v1929, %v1921
  %v2538 = vpack.c.b16 %v1930, %v1922
  %v2539 = vpack.c.b16 %v1931, %v1923
  %v2540 = vpack.c.b16 %v1932, %v1924
  %v2541 = vpack.c.b16 %v1941, %v1933
  %v2542 = vpack.c.b16 %v1942, %v1934
  %v2543 = vpack.c.b16 %v1943, %v1935
  %v2544 = vpack.c.b16 %v1944, %v1936
  %v2545 = vpack.c.b16 %v1945, %v1937
  %v2546 = vpack.c.b16 %v1946, %v1938
  %v2547 = vpack.c.b16 %v1947, %v1939
  %v2548 = vpack.c.b16 %v1948, %v1940
  %v2549 = vpack.c.b16 %v1957, %v1949
  %v2550 = vpack.c.b16 %v1958, %v1950
  %v2551 = vpack.c.b16 %v1959, %v1951
  %v2552 = vpack.c.b16 %v1960, %v1952
  %v2553 = vpack.c.b16 %v1961, %v1953
  %v2554 = vpack.c.b16 %v1962, %v1954
  %v2555 = vpack.c.b16 %v1963, %v1955
  %v2556 = vpack.c.b16 %v1964, %v1956
  %v2557 = vpack.c.b16 %v1973, %v1965
  %v2558 = vpack.c.b16 %v1974, %v1966
  %v2559 = vpack.c.b16 %v1975, %v1967
  %v2560 = vpack.c.b16 %v1976, %v1968
  %v2561 = vpack.c.b16 %v1977, %v1969
  %v2562 = vpack.c.b16 %v1978, %v1970
  %v2563 = vpack.c.b16 %v1979, %v1971
  %v2564 = vpack.c.b16 %v1980, %v1972
  %v2565 = vpack.c.b16 %v1989, %v1981
  %v2566 = vpack.c.b16 %v1990, %v1982
  %v2567 = vpack.c.b16 %v1991, %v1983
  %v2568 = vpack.c.b16 %v1992, %v1984
  %v2569 = vpack.c.b16 %v1993, %v1985
  %v2570 = vpack.c.b16 %v1994, %v1986
  %v2571 = vpack.c.b16 %v1995, %v1987
  %v2572 = vpack.c.b16 %v1996, %v1988
  %v2573 = vpack.c.b16 %v2005, %v1997
  %v2574 = vpack.c.b16 %v2006, %v1998
  %v2575 = vpack.c.b16 %v2007, %v1999
  %v2576 = vpack.c.b16 %v2008, %v2000
  %v2577 = vpack.c.b16 %v2009, %v2001
  %v2578 = vpack.c.b16 %v2010, %v2002
  %v2579 = vpack.c.b16 %v2011, %v2003
  %v2580 = vpack.c.b16 %v2012, %v2004
  %v2581 = vpack.c.b16 %v2021, %v2013
  %v2582 = vpack.c.b16 %v2022, %v2014
  %v2583 = vpack.c.b16 %v2023, %v2015
  %v2584 = vpack.c.b16 %v2024, %v2016
  %v2585 = vpack.c.b16 %v2025, %v2017
  %v2586 = vpack.c.b16 %v2026, %v2018
  %v2587 = vpack.c.b16 %v2027, %v2019
  %v2588 = vpack.c.b16 %v2028, %v2020
  %v2589 = vpack.c.b16 %v2037, %v2029
  %v2590 = vpack.c.b16 %v2038, %v2030
  %v2591 = vpack.c.b16 %v2039, %v2031
  %v2592 = vpack.c.b16 %v2040, %v2032
  %v2593 = vpack.c.b16 %v2041, %v2033
  %v2594 = vpack.c.b16 %v2042, %v2034
  %v2595 = vpack.c.b16 %v2043, %v2035
  %v2596 = vpack.c.b16 %v2044, %v2036
  %v2597 = vpack.c.b16 %v2053, %v2045
  %v2598 = vpack.c.b16 %v2054, %v2046
  %v2599 = vpack.c.b16 %v2055, %v2047
  %v2600 = vpack.c.b16 %v2056, %v2048
  %v2601 = vpack.c.b16 %v2057, %v2049
  %v2602 = vpack.c.b16 %v2058, %v2050
  %v2603 = vpack.c.b16 %v2059, %v2051
  %v2604 = vpack.c.b16 %v2060, %v2052
  %v2605 = vpack.c.b16 %v2069, %v2061
  %v2606 = vpack.c.b16 %v2070, %v2062
  %v2607 = vpack.c.b16 %v2071, %v2063
  %v2608 = vpack.c.b16 %v2072, %v2064
  %v2609 = vpack.c.b16 %v2073, %v2065
  %v2610 = vpack.c.b16 %v2074, %v2066
  %v2611 = vpack.c.b16 %v2075, %v2067
  %v2612 = vpack.c.b16 %v2076, %v2068
  %v2613 = vpack.c.b16 %v2085, %v2077
  %v2614 = vpack.c.b16 %v2086, %v2078
  %v2615 = vpack.c.b16 %v2087, %v2079
  %v2616 = vpack.c.b16 %v2088, %v2080
  %v2617 = vpack.c.b16 %v2089, %v2081
  %v2618 = vpack.c.b16 %v2090, %v2082
  %v2619 = vpack.c.b16 %v2091, %v2083
  %v2620 = vpack.c.b16 %v2092, %v2084
  %v2621 = vpack.c.b16 %v2101, %v2093
  %v2622 = vpack.c.b16 %v2102, %v2094
  %v2623 = vpack.c.b16 %v2103, %v2095
  %v2624 = vpack.c.b16 %v2104, %v2096
  %v2625 = vpack.c.b16 %v2105, %v2097
  %v2626 = vpack.c.b16 %v2106, %v2098
  %v2627 = vpack.c.b16 %v2107, %v2099
  %v2628 = vpack.c.b16 %v2108, %v2100
  %v2629 = vpack.c.b16 %v2117, %v2109
  %v2630 = vpack.c.b16 %v2118, %v2110
  %v2631 = vpack.c.b16 %v2119, %v2111
  %v2632 = vpack.c.b16 %v2120, %v2112
  %v2633 = vpack.c.b16 %v2121, %v2113
  %v2634 = vpack.c.b16 %v2122, %v2114
  %v2635 = vpack.c.b16 %v2123, %v2115
  %v2636 = vpack.c.b16 %v2124, %v2116
  %3149 = vmatpush.bf16.msra.mxu0 %v2181
  %3150 = vmatpush.bf16.msra.mxu0 %v2173
  %3151 = vmatpush.bf16.msra.mxu0 %v2165
  %3152 = vmatpush.bf16.msra.mxu0 %v2157
  %3153 = vmatpush.bf16.msra.mxu0 %v2149
  %3154 = vmatpush.bf16.msra.mxu0 %v2141
  %3155 = vmatpush.bf16.msra.mxu0 %v2133
  %3156 = vmatpush.bf16.msra.mxu0 %v2125
  %3157 = vmatmul.bf16.gmra.mxu0 %v573
  %v3158 = vpop.f32.mrf.mxu0
  %v3159 = vadd.f32 %v545, %v3158
  %v3160 = vpop.f32.mrf.mxu0
  %3161 = vdwg.mxu0
  %3162 = vmatpush.bf16.msra.mxu0 %v2245
  %3163 = vmatpush.bf16.msra.mxu0 %v2237
  %3164 = vmatpush.bf16.msra.mxu0 %v2229
  %3165 = vmatpush.bf16.msra.mxu0 %v2221
  %3166 = vmatpush.bf16.msra.mxu0 %v2213
  %3167 = vmatpush.bf16.msra.mxu0 %v2205
  %3168 = vmatpush.bf16.msra.mxu0 %v2197
  %3169 = vmatpush.bf16.msra.mxu0 %v2189
  %3170 = vmatmul.bf16.gmra.mxu0 %v574
  %v3171 = vpop.f32.mrf.mxu0
  %v3172 = vadd.f32 %v3159, %v3171
  %v3173 = vpop.f32.mrf.mxu0
  %3174 = vdwg.mxu0
  %3175 = vmatpush.bf16.msra.mxu0 %v2309
  %3176 = vmatpush.bf16.msra.mxu0 %v2301
  %3177 = vmatpush.bf16.msra.mxu0 %v2293
  %3178 = vmatpush.bf16.msra.mxu0 %v2285
  %3179 = vmatpush.bf16.msra.mxu0 %v2277
  %3180 = vmatpush.bf16.msra.mxu0 %v2269
  %3181 = vmatpush.bf16.msra.mxu0 %v2261
  %3182 = vmatpush.bf16.msra.mxu0 %v2253
  %3183 = vmatmul.bf16.gmra.mxu0 %v575
  %v3184 = vpop.f32.mrf.mxu0
  %v3185 = vadd.f32 %v3172, %v3184
  %v3186 = vpop.f32.mrf.mxu0
  %3187 = vdwg.mxu0
  %3188 = vmatpush.bf16.msra.mxu0 %v2373
  %3189 = vmatpush.bf16.msra.mxu0 %v2365
  %3190 = vmatpush.bf16.msra.mxu0 %v2357
  %3191 = vmatpush.bf16.msra.mxu0 %v2349
  %3192 = vmatpush.bf16.msra.mxu0 %v2341
  %3193 = vmatpush.bf16.msra.mxu0 %v2333
  %3194 = vmatpush.bf16.msra.mxu0 %v2325
  %3195 = vmatpush.bf16.msra.mxu0 %v2317
  %3196 = vmatmul.bf16.gmra.mxu0 %v576
  %v3197 = vpop.f32.mrf.mxu0
  %v3198 = vadd.f32 %v3185, %v3197
  %v3199 = vpop.f32.mrf.mxu0
  %3200 = vdwg.mxu0
  %3201 = vmatpush.bf16.msra.mxu0 %v2437
  %3202 = vmatpush.bf16.msra.mxu0 %v2429
  %3203 = vmatpush.bf16.msra.mxu0 %v2421
  %3204 = vmatpush.bf16.msra.mxu0 %v2413
  %3205 = vmatpush.bf16.msra.mxu0 %v2405
  %3206 = vmatpush.bf16.msra.mxu0 %v2397
  %3207 = vmatpush.bf16.msra.mxu0 %v2389
  %3208 = vmatpush.bf16.msra.mxu0 %v2381
  %3209 = vmatmul.bf16.gmra.mxu0 %v577
  %v3210 = vpop.f32.mrf.mxu0
  %v3211 = vadd.f32 %v3198, %v3210
  %v3212 = vpop.f32.mrf.mxu0
  %3213 = vdwg.mxu0
  %3214 = vmatpush.bf16.msra.mxu0 %v2501
  %3215 = vmatpush.bf16.msra.mxu0 %v2493
  %3216 = vmatpush.bf16.msra.mxu0 %v2485
  %3217 = vmatpush.bf16.msra.mxu0 %v2477
  %3218 = vmatpush.bf16.msra.mxu0 %v2469
  %3219 = vmatpush.bf16.msra.mxu0 %v2461
  %3220 = vmatpush.bf16.msra.mxu0 %v2453
  %3221 = vmatpush.bf16.msra.mxu0 %v2445
  %3222 = vmatmul.bf16.gmra.mxu0 %v578
  %v3223 = vpop.f32.mrf.mxu0
  %v3224 = vadd.f32 %v3211, %v3223
  %v3225 = vpop.f32.mrf.mxu0
  %3226 = vdwg.mxu0
  %3227 = vmatpush.bf16.msra.mxu0 %v2565
  %3228 = vmatpush.bf16.msra.mxu0 %v2557
  %3229 = vmatpush.bf16.msra.mxu0 %v2549
  %3230 = vmatpush.bf16.msra.mxu0 %v2541
  %3231 = vmatpush.bf16.msra.mxu0 %v2533
  %3232 = vmatpush.bf16.msra.mxu0 %v2525
  %3233 = vmatpush.bf16.msra.mxu0 %v2517
  %3234 = vmatpush.bf16.msra.mxu0 %v2509
  %3235 = vmatmul.bf16.gmra.mxu0 %v579
  %v3236 = vpop.f32.mrf.mxu0
  %v3237 = vadd.f32 %v3224, %v3236
  %v3238 = vpop.f32.mrf.mxu0
  %3239 = vdwg.mxu0
  %3240 = vmatpush.bf16.msra.mxu0 %v2629
  %3241 = vmatpush.bf16.msra.mxu0 %v2621
  %3242 = vmatpush.bf16.msra.mxu0 %v2613
  %3243 = vmatpush.bf16.msra.mxu0 %v2605
  %3244 = vmatpush.bf16.msra.mxu0 %v2597
  %3245 = vmatpush.bf16.msra.mxu0 %v2589
  %3246 = vmatpush.bf16.msra.mxu0 %v2581
  %3247 = vmatpush.bf16.msra.mxu0 %v2573
  %3248 = vmatmul.bf16.gmra.mxu0 %v580
  %v3249 = vpop.f32.mrf.mxu0
  %v3250 = vadd.f32 %v3237, %v3249
  %v3251 = vpop.f32.mrf.mxu0
  %3252 = vdwg.mxu0
  %3253 = vmatpush.bf16.msra.mxu0 %v2182
  %3254 = vmatpush.bf16.msra.mxu0 %v2174
  %3255 = vmatpush.bf16.msra.mxu0 %v2166
  %3256 = vmatpush.bf16.msra.mxu0 %v2158
  %3257 = vmatpush.bf16.msra.mxu0 %v2150
  %3258 = vmatpush.bf16.msra.mxu0 %v2142
  %3259 = vmatpush.bf16.msra.mxu0 %v2134
  %3260 = vmatpush.bf16.msra.mxu0 %v2126
  %3261 = vmatmul.bf16.gmra.mxu0 %v573
  %v3262 = vpop.f32.mrf.mxu0
  %v3263 = vadd.f32 %v546, %v3262
  %v3264 = vpop.f32.mrf.mxu0
  %3265 = vdwg.mxu0
  %3266 = vmatpush.bf16.msra.mxu0 %v2246
  %3267 = vmatpush.bf16.msra.mxu0 %v2238
  %3268 = vmatpush.bf16.msra.mxu0 %v2230
  %3269 = vmatpush.bf16.msra.mxu0 %v2222
  %3270 = vmatpush.bf16.msra.mxu0 %v2214
  %3271 = vmatpush.bf16.msra.mxu0 %v2206
  %3272 = vmatpush.bf16.msra.mxu0 %v2198
  %3273 = vmatpush.bf16.msra.mxu0 %v2190
  %3274 = vmatmul.bf16.gmra.mxu0 %v574
  %v3275 = vpop.f32.mrf.mxu0
  %v3276 = vadd.f32 %v3263, %v3275
  %v3277 = vpop.f32.mrf.mxu0
  %3278 = vdwg.mxu0
  %3279 = vmatpush.bf16.msra.mxu0 %v2310
  %3280 = vmatpush.bf16.msra.mxu0 %v2302
  %3281 = vmatpush.bf16.msra.mxu0 %v2294
  %3282 = vmatpush.bf16.msra.mxu0 %v2286
  %3283 = vmatpush.bf16.msra.mxu0 %v2278
  %3284 = vmatpush.bf16.msra.mxu0 %v2270
  %3285 = vmatpush.bf16.msra.mxu0 %v2262
  %3286 = vmatpush.bf16.msra.mxu0 %v2254
  %3287 = vmatmul.bf16.gmra.mxu0 %v575
  %v3288 = vpop.f32.mrf.mxu0
  %v3289 = vadd.f32 %v3276, %v3288
  %v3290 = vpop.f32.mrf.mxu0
  %3291 = vdwg.mxu0
  %3292 = vmatpush.bf16.msra.mxu0 %v2374
  %3293 = vmatpush.bf16.msra.mxu0 %v2366
  %3294 = vmatpush.bf16.msra.mxu0 %v2358
  %3295 = vmatpush.bf16.msra.mxu0 %v2350
  %3296 = vmatpush.bf16.msra.mxu0 %v2342
  %3297 = vmatpush.bf16.msra.mxu0 %v2334
  %3298 = vmatpush.bf16.msra.mxu0 %v2326
  %3299 = vmatpush.bf16.msra.mxu0 %v2318
  %3300 = vmatmul.bf16.gmra.mxu0 %v576
  %v3301 = vpop.f32.mrf.mxu0
  %v3302 = vadd.f32 %v3289, %v3301
  %v3303 = vpop.f32.mrf.mxu0
  %3304 = vdwg.mxu0
  %3305 = vmatpush.bf16.msra.mxu0 %v2438
  %3306 = vmatpush.bf16.msra.mxu0 %v2430
  %3307 = vmatpush.bf16.msra.mxu0 %v2422
  %3308 = vmatpush.bf16.msra.mxu0 %v2414
  %3309 = vmatpush.bf16.msra.mxu0 %v2406
  %3310 = vmatpush.bf16.msra.mxu0 %v2398
  %3311 = vmatpush.bf16.msra.mxu0 %v2390
  %3312 = vmatpush.bf16.msra.mxu0 %v2382
  %3313 = vmatmul.bf16.gmra.mxu0 %v577
  %v3314 = vpop.f32.mrf.mxu0
  %v3315 = vadd.f32 %v3302, %v3314
  %v3316 = vpop.f32.mrf.mxu0
  %3317 = vdwg.mxu0
  %3318 = vmatpush.bf16.msra.mxu0 %v2502
  %3319 = vmatpush.bf16.msra.mxu0 %v2494
  %3320 = vmatpush.bf16.msra.mxu0 %v2486
  %3321 = vmatpush.bf16.msra.mxu0 %v2478
  %3322 = vmatpush.bf16.msra.mxu0 %v2470
  %3323 = vmatpush.bf16.msra.mxu0 %v2462
  %3324 = vmatpush.bf16.msra.mxu0 %v2454
  %3325 = vmatpush.bf16.msra.mxu0 %v2446
  %3326 = vmatmul.bf16.gmra.mxu0 %v578
  %v3327 = vpop.f32.mrf.mxu0
  %v3328 = vadd.f32 %v3315, %v3327
  %v3329 = vpop.f32.mrf.mxu0
  %3330 = vdwg.mxu0
  %3331 = vmatpush.bf16.msra.mxu0 %v2566
  %3332 = vmatpush.bf16.msra.mxu0 %v2558
  %3333 = vmatpush.bf16.msra.mxu0 %v2550
  %3334 = vmatpush.bf16.msra.mxu0 %v2542
  %3335 = vmatpush.bf16.msra.mxu0 %v2534
  %3336 = vmatpush.bf16.msra.mxu0 %v2526
  %3337 = vmatpush.bf16.msra.mxu0 %v2518
  %3338 = vmatpush.bf16.msra.mxu0 %v2510
  %3339 = vmatmul.bf16.gmra.mxu0 %v579
  %v3340 = vpop.f32.mrf.mxu0
  %v3341 = vadd.f32 %v3328, %v3340
  %v3342 = vpop.f32.mrf.mxu0
  %3343 = vdwg.mxu0
  %3344 = vmatpush.bf16.msra.mxu0 %v2630
  %3345 = vmatpush.bf16.msra.mxu0 %v2622
  %3346 = vmatpush.bf16.msra.mxu0 %v2614
  %3347 = vmatpush.bf16.msra.mxu0 %v2606
  %3348 = vmatpush.bf16.msra.mxu0 %v2598
  %3349 = vmatpush.bf16.msra.mxu0 %v2590
  %3350 = vmatpush.bf16.msra.mxu0 %v2582
  %3351 = vmatpush.bf16.msra.mxu0 %v2574
  %3352 = vmatmul.bf16.gmra.mxu0 %v580
  %v3353 = vpop.f32.mrf.mxu0
  %v3354 = vadd.f32 %v3341, %v3353
  %v3355 = vpop.f32.mrf.mxu0
  %3356 = vdwg.mxu0
  %3357 = vmatpush.bf16.msra.mxu0 %v2183
  %3358 = vmatpush.bf16.msra.mxu0 %v2175
  %3359 = vmatpush.bf16.msra.mxu0 %v2167
  %3360 = vmatpush.bf16.msra.mxu0 %v2159
  %3361 = vmatpush.bf16.msra.mxu0 %v2151
  %3362 = vmatpush.bf16.msra.mxu0 %v2143
  %3363 = vmatpush.bf16.msra.mxu0 %v2135
  %3364 = vmatpush.bf16.msra.mxu0 %v2127
  %3365 = vmatmul.bf16.gmra.mxu0 %v573
  %v3366 = vpop.f32.mrf.mxu0
  %v3367 = vadd.f32 %v547, %v3366
  %v3368 = vpop.f32.mrf.mxu0
  %3369 = vdwg.mxu0
  %3370 = vmatpush.bf16.msra.mxu0 %v2247
  %3371 = vmatpush.bf16.msra.mxu0 %v2239
  %3372 = vmatpush.bf16.msra.mxu0 %v2231
  %3373 = vmatpush.bf16.msra.mxu0 %v2223
  %3374 = vmatpush.bf16.msra.mxu0 %v2215
  %3375 = vmatpush.bf16.msra.mxu0 %v2207
  %3376 = vmatpush.bf16.msra.mxu0 %v2199
  %3377 = vmatpush.bf16.msra.mxu0 %v2191
  %3378 = vmatmul.bf16.gmra.mxu0 %v574
  %v3379 = vpop.f32.mrf.mxu0
  %v3380 = vadd.f32 %v3367, %v3379
  %v3381 = vpop.f32.mrf.mxu0
  %3382 = vdwg.mxu0
  %3383 = vmatpush.bf16.msra.mxu0 %v2311
  %3384 = vmatpush.bf16.msra.mxu0 %v2303
  %3385 = vmatpush.bf16.msra.mxu0 %v2295
  %3386 = vmatpush.bf16.msra.mxu0 %v2287
  %3387 = vmatpush.bf16.msra.mxu0 %v2279
  %3388 = vmatpush.bf16.msra.mxu0 %v2271
  %3389 = vmatpush.bf16.msra.mxu0 %v2263
  %3390 = vmatpush.bf16.msra.mxu0 %v2255
  %3391 = vmatmul.bf16.gmra.mxu0 %v575
  %v3392 = vpop.f32.mrf.mxu0
  %v3393 = vadd.f32 %v3380, %v3392
  %v3394 = vpop.f32.mrf.mxu0
  %3395 = vdwg.mxu0
  %3396 = vmatpush.bf16.msra.mxu0 %v2375
  %3397 = vmatpush.bf16.msra.mxu0 %v2367
  %3398 = vmatpush.bf16.msra.mxu0 %v2359
  %3399 = vmatpush.bf16.msra.mxu0 %v2351
  %3400 = vmatpush.bf16.msra.mxu0 %v2343
  %3401 = vmatpush.bf16.msra.mxu0 %v2335
  %3402 = vmatpush.bf16.msra.mxu0 %v2327
  %3403 = vmatpush.bf16.msra.mxu0 %v2319
  %3404 = vmatmul.bf16.gmra.mxu0 %v576
  %v3405 = vpop.f32.mrf.mxu0
  %v3406 = vadd.f32 %v3393, %v3405
  %v3407 = vpop.f32.mrf.mxu0
  %3408 = vdwg.mxu0
  %3409 = vmatpush.bf16.msra.mxu0 %v2439
  %3410 = vmatpush.bf16.msra.mxu0 %v2431
  %3411 = vmatpush.bf16.msra.mxu0 %v2423
  %3412 = vmatpush.bf16.msra.mxu0 %v2415
  %3413 = vmatpush.bf16.msra.mxu0 %v2407
  %3414 = vmatpush.bf16.msra.mxu0 %v2399
  %3415 = vmatpush.bf16.msra.mxu0 %v2391
  %3416 = vmatpush.bf16.msra.mxu0 %v2383
  %3417 = vmatmul.bf16.gmra.mxu0 %v577
  %v3418 = vpop.f32.mrf.mxu0
  %v3419 = vadd.f32 %v3406, %v3418
  %v3420 = vpop.f32.mrf.mxu0
  %3421 = vdwg.mxu0
  %3422 = vmatpush.bf16.msra.mxu0 %v2503
  %3423 = vmatpush.bf16.msra.mxu0 %v2495
  %3424 = vmatpush.bf16.msra.mxu0 %v2487
  %3425 = vmatpush.bf16.msra.mxu0 %v2479
  %3426 = vmatpush.bf16.msra.mxu0 %v2471
  %3427 = vmatpush.bf16.msra.mxu0 %v2463
  %3428 = vmatpush.bf16.msra.mxu0 %v2455
  %3429 = vmatpush.bf16.msra.mxu0 %v2447
  %3430 = vmatmul.bf16.gmra.mxu0 %v578
  %v3431 = vpop.f32.mrf.mxu0
  %v3432 = vadd.f32 %v3419, %v3431
  %v3433 = vpop.f32.mrf.mxu0
  %3434 = vdwg.mxu0
  %3435 = vmatpush.bf16.msra.mxu0 %v2567
  %3436 = vmatpush.bf16.msra.mxu0 %v2559
  %3437 = vmatpush.bf16.msra.mxu0 %v2551
  %3438 = vmatpush.bf16.msra.mxu0 %v2543
  %3439 = vmatpush.bf16.msra.mxu0 %v2535
  %3440 = vmatpush.bf16.msra.mxu0 %v2527
  %3441 = vmatpush.bf16.msra.mxu0 %v2519
  %3442 = vmatpush.bf16.msra.mxu0 %v2511
  %3443 = vmatmul.bf16.gmra.mxu0 %v579
  %v3444 = vpop.f32.mrf.mxu0
  %v3445 = vadd.f32 %v3432, %v3444
  %v3446 = vpop.f32.mrf.mxu0
  %3447 = vdwg.mxu0
  %3448 = vmatpush.bf16.msra.mxu0 %v2631
  %3449 = vmatpush.bf16.msra.mxu0 %v2623
  %3450 = vmatpush.bf16.msra.mxu0 %v2615
  %3451 = vmatpush.bf16.msra.mxu0 %v2607
  %3452 = vmatpush.bf16.msra.mxu0 %v2599
  %3453 = vmatpush.bf16.msra.mxu0 %v2591
  %3454 = vmatpush.bf16.msra.mxu0 %v2583
  %3455 = vmatpush.bf16.msra.mxu0 %v2575
  %3456 = vmatmul.bf16.gmra.mxu0 %v580
  %v3457 = vpop.f32.mrf.mxu0
  %v3458 = vadd.f32 %v3445, %v3457
  %v3459 = vpop.f32.mrf.mxu0
  %3460 = vdwg.mxu0
  %3461 = vmatpush.bf16.msra.mxu0 %v2184
  %3462 = vmatpush.bf16.msra.mxu0 %v2176
  %3463 = vmatpush.bf16.msra.mxu0 %v2168
  %3464 = vmatpush.bf16.msra.mxu0 %v2160
  %3465 = vmatpush.bf16.msra.mxu0 %v2152
  %3466 = vmatpush.bf16.msra.mxu0 %v2144
  %3467 = vmatpush.bf16.msra.mxu0 %v2136
  %3468 = vmatpush.bf16.msra.mxu0 %v2128
  %3469 = vmatmul.bf16.gmra.mxu0 %v573
  %v3470 = vpop.f32.mrf.mxu0
  %v3471 = vadd.f32 %v548, %v3470
  %v3472 = vpop.f32.mrf.mxu0
  %3473 = vdwg.mxu0
  %3474 = vmatpush.bf16.msra.mxu0 %v2248
  %3475 = vmatpush.bf16.msra.mxu0 %v2240
  %3476 = vmatpush.bf16.msra.mxu0 %v2232
  %3477 = vmatpush.bf16.msra.mxu0 %v2224
  %3478 = vmatpush.bf16.msra.mxu0 %v2216
  %3479 = vmatpush.bf16.msra.mxu0 %v2208
  %3480 = vmatpush.bf16.msra.mxu0 %v2200
  %3481 = vmatpush.bf16.msra.mxu0 %v2192
  %3482 = vmatmul.bf16.gmra.mxu0 %v574
  %v3483 = vpop.f32.mrf.mxu0
  %v3484 = vadd.f32 %v3471, %v3483
  %v3485 = vpop.f32.mrf.mxu0
  %3486 = vdwg.mxu0
  %3487 = vmatpush.bf16.msra.mxu0 %v2312
  %3488 = vmatpush.bf16.msra.mxu0 %v2304
  %3489 = vmatpush.bf16.msra.mxu0 %v2296
  %3490 = vmatpush.bf16.msra.mxu0 %v2288
  %3491 = vmatpush.bf16.msra.mxu0 %v2280
  %3492 = vmatpush.bf16.msra.mxu0 %v2272
  %3493 = vmatpush.bf16.msra.mxu0 %v2264
  %3494 = vmatpush.bf16.msra.mxu0 %v2256
  %3495 = vmatmul.bf16.gmra.mxu0 %v575
  %v3496 = vpop.f32.mrf.mxu0
  %v3497 = vadd.f32 %v3484, %v3496
  %v3498 = vpop.f32.mrf.mxu0
  %3499 = vdwg.mxu0
  %3500 = vmatpush.bf16.msra.mxu0 %v2376
  %3501 = vmatpush.bf16.msra.mxu0 %v2368
  %3502 = vmatpush.bf16.msra.mxu0 %v2360
  %3503 = vmatpush.bf16.msra.mxu0 %v2352
  %3504 = vmatpush.bf16.msra.mxu0 %v2344
  %3505 = vmatpush.bf16.msra.mxu0 %v2336
  %3506 = vmatpush.bf16.msra.mxu0 %v2328
  %3507 = vmatpush.bf16.msra.mxu0 %v2320
  %3508 = vmatmul.bf16.gmra.mxu0 %v576
  %v3509 = vpop.f32.mrf.mxu0
  %v3510 = vadd.f32 %v3497, %v3509
  %v3511 = vpop.f32.mrf.mxu0
  %3512 = vdwg.mxu0
  %3513 = vmatpush.bf16.msra.mxu0 %v2440
  %3514 = vmatpush.bf16.msra.mxu0 %v2432
  %3515 = vmatpush.bf16.msra.mxu0 %v2424
  %3516 = vmatpush.bf16.msra.mxu0 %v2416
  %3517 = vmatpush.bf16.msra.mxu0 %v2408
  %3518 = vmatpush.bf16.msra.mxu0 %v2400
  %3519 = vmatpush.bf16.msra.mxu0 %v2392
  %3520 = vmatpush.bf16.msra.mxu0 %v2384
  %3521 = vmatmul.bf16.gmra.mxu0 %v577
  %v3522 = vpop.f32.mrf.mxu0
  %v3523 = vadd.f32 %v3510, %v3522
  %v3524 = vpop.f32.mrf.mxu0
  %3525 = vdwg.mxu0
  %3526 = vmatpush.bf16.msra.mxu0 %v2504
  %3527 = vmatpush.bf16.msra.mxu0 %v2496
  %3528 = vmatpush.bf16.msra.mxu0 %v2488
  %3529 = vmatpush.bf16.msra.mxu0 %v2480
  %3530 = vmatpush.bf16.msra.mxu0 %v2472
  %3531 = vmatpush.bf16.msra.mxu0 %v2464
  %3532 = vmatpush.bf16.msra.mxu0 %v2456
  %3533 = vmatpush.bf16.msra.mxu0 %v2448
  %3534 = vmatmul.bf16.gmra.mxu0 %v578
  %v3535 = vpop.f32.mrf.mxu0
  %v3536 = vadd.f32 %v3523, %v3535
  %v3537 = vpop.f32.mrf.mxu0
  %3538 = vdwg.mxu0
  %3539 = vmatpush.bf16.msra.mxu0 %v2568
  %3540 = vmatpush.bf16.msra.mxu0 %v2560
  %3541 = vmatpush.bf16.msra.mxu0 %v2552
  %3542 = vmatpush.bf16.msra.mxu0 %v2544
  %3543 = vmatpush.bf16.msra.mxu0 %v2536
  %3544 = vmatpush.bf16.msra.mxu0 %v2528
  %3545 = vmatpush.bf16.msra.mxu0 %v2520
  %3546 = vmatpush.bf16.msra.mxu0 %v2512
  %3547 = vmatmul.bf16.gmra.mxu0 %v579
  %v3548 = vpop.f32.mrf.mxu0
  %v3549 = vadd.f32 %v3536, %v3548
  %v3550 = vpop.f32.mrf.mxu0
  %3551 = vdwg.mxu0
  %3552 = vmatpush.bf16.msra.mxu0 %v2632
  %3553 = vmatpush.bf16.msra.mxu0 %v2624
  %3554 = vmatpush.bf16.msra.mxu0 %v2616
  %3555 = vmatpush.bf16.msra.mxu0 %v2608
  %3556 = vmatpush.bf16.msra.mxu0 %v2600
  %3557 = vmatpush.bf16.msra.mxu0 %v2592
  %3558 = vmatpush.bf16.msra.mxu0 %v2584
  %3559 = vmatpush.bf16.msra.mxu0 %v2576
  %3560 = vmatmul.bf16.gmra.mxu0 %v580
  %v3561 = vpop.f32.mrf.mxu0
  %v3562 = vadd.f32 %v3549, %v3561
  %v3563 = vpop.f32.mrf.mxu0
  %3564 = vdwg.mxu0
  %3565 = vmatpush.bf16.msra.mxu0 %v2185
  %3566 = vmatpush.bf16.msra.mxu0 %v2177
  %3567 = vmatpush.bf16.msra.mxu0 %v2169
  %3568 = vmatpush.bf16.msra.mxu0 %v2161
  %3569 = vmatpush.bf16.msra.mxu0 %v2153
  %3570 = vmatpush.bf16.msra.mxu0 %v2145
  %3571 = vmatpush.bf16.msra.mxu0 %v2137
  %3572 = vmatpush.bf16.msra.mxu0 %v2129
  %3573 = vmatmul.bf16.gmra.mxu0 %v573
  %v3574 = vpop.f32.mrf.mxu0
  %v3575 = vadd.f32 %v549, %v3574
  %v3576 = vpop.f32.mrf.mxu0
  %3577 = vdwg.mxu0
  %3578 = vmatpush.bf16.msra.mxu0 %v2249
  %3579 = vmatpush.bf16.msra.mxu0 %v2241
  %3580 = vmatpush.bf16.msra.mxu0 %v2233
  %3581 = vmatpush.bf16.msra.mxu0 %v2225
  %3582 = vmatpush.bf16.msra.mxu0 %v2217
  %3583 = vmatpush.bf16.msra.mxu0 %v2209
  %3584 = vmatpush.bf16.msra.mxu0 %v2201
  %3585 = vmatpush.bf16.msra.mxu0 %v2193
  %3586 = vmatmul.bf16.gmra.mxu0 %v574
  %v3587 = vpop.f32.mrf.mxu0
  %v3588 = vadd.f32 %v3575, %v3587
  %v3589 = vpop.f32.mrf.mxu0
  %3590 = vdwg.mxu0
  %3591 = vmatpush.bf16.msra.mxu0 %v2313
  %3592 = vmatpush.bf16.msra.mxu0 %v2305
  %3593 = vmatpush.bf16.msra.mxu0 %v2297
  %3594 = vmatpush.bf16.msra.mxu0 %v2289
  %3595 = vmatpush.bf16.msra.mxu0 %v2281
  %3596 = vmatpush.bf16.msra.mxu0 %v2273
  %3597 = vmatpush.bf16.msra.mxu0 %v2265
  %3598 = vmatpush.bf16.msra.mxu0 %v2257
  %3599 = vmatmul.bf16.gmra.mxu0 %v575
  %v3600 = vpop.f32.mrf.mxu0
  %v3601 = vadd.f32 %v3588, %v3600
  %v3602 = vpop.f32.mrf.mxu0
  %3603 = vdwg.mxu0
  %3604 = vmatpush.bf16.msra.mxu0 %v2377
  %3605 = vmatpush.bf16.msra.mxu0 %v2369
  %3606 = vmatpush.bf16.msra.mxu0 %v2361
  %3607 = vmatpush.bf16.msra.mxu0 %v2353
  %3608 = vmatpush.bf16.msra.mxu0 %v2345
  %3609 = vmatpush.bf16.msra.mxu0 %v2337
  %3610 = vmatpush.bf16.msra.mxu0 %v2329
  %3611 = vmatpush.bf16.msra.mxu0 %v2321
  %3612 = vmatmul.bf16.gmra.mxu0 %v576
  %v3613 = vpop.f32.mrf.mxu0
  %v3614 = vadd.f32 %v3601, %v3613
  %v3615 = vpop.f32.mrf.mxu0
  %3616 = vdwg.mxu0
  %3617 = vmatpush.bf16.msra.mxu0 %v2441
  %3618 = vmatpush.bf16.msra.mxu0 %v2433
  %3619 = vmatpush.bf16.msra.mxu0 %v2425
  %3620 = vmatpush.bf16.msra.mxu0 %v2417
  %3621 = vmatpush.bf16.msra.mxu0 %v2409
  %3622 = vmatpush.bf16.msra.mxu0 %v2401
  %3623 = vmatpush.bf16.msra.mxu0 %v2393
  %3624 = vmatpush.bf16.msra.mxu0 %v2385
  %3625 = vmatmul.bf16.gmra.mxu0 %v577
  %v3626 = vpop.f32.mrf.mxu0
  %v3627 = vadd.f32 %v3614, %v3626
  %v3628 = vpop.f32.mrf.mxu0
  %3629 = vdwg.mxu0
  %3630 = vmatpush.bf16.msra.mxu0 %v2505
  %3631 = vmatpush.bf16.msra.mxu0 %v2497
  %3632 = vmatpush.bf16.msra.mxu0 %v2489
  %3633 = vmatpush.bf16.msra.mxu0 %v2481
  %3634 = vmatpush.bf16.msra.mxu0 %v2473
  %3635 = vmatpush.bf16.msra.mxu0 %v2465
  %3636 = vmatpush.bf16.msra.mxu0 %v2457
  %3637 = vmatpush.bf16.msra.mxu0 %v2449
  %3638 = vmatmul.bf16.gmra.mxu0 %v578
  %v3639 = vpop.f32.mrf.mxu0
  %v3640 = vadd.f32 %v3627, %v3639
  %v3641 = vpop.f32.mrf.mxu0
  %3642 = vdwg.mxu0
  %3643 = vmatpush.bf16.msra.mxu0 %v2569
  %3644 = vmatpush.bf16.msra.mxu0 %v2561
  %3645 = vmatpush.bf16.msra.mxu0 %v2553
  %3646 = vmatpush.bf16.msra.mxu0 %v2545
  %3647 = vmatpush.bf16.msra.mxu0 %v2537
  %3648 = vmatpush.bf16.msra.mxu0 %v2529
  %3649 = vmatpush.bf16.msra.mxu0 %v2521
  %3650 = vmatpush.bf16.msra.mxu0 %v2513
  %3651 = vmatmul.bf16.gmra.mxu0 %v579
  %v3652 = vpop.f32.mrf.mxu0
  %v3653 = vadd.f32 %v3640, %v3652
  %v3654 = vpop.f32.mrf.mxu0
  %3655 = vdwg.mxu0
  %3656 = vmatpush.bf16.msra.mxu0 %v2633
  %3657 = vmatpush.bf16.msra.mxu0 %v2625
  %3658 = vmatpush.bf16.msra.mxu0 %v2617
  %3659 = vmatpush.bf16.msra.mxu0 %v2609
  %3660 = vmatpush.bf16.msra.mxu0 %v2601
  %3661 = vmatpush.bf16.msra.mxu0 %v2593
  %3662 = vmatpush.bf16.msra.mxu0 %v2585
  %3663 = vmatpush.bf16.msra.mxu0 %v2577
  %3664 = vmatmul.bf16.gmra.mxu0 %v580
  %v3665 = vpop.f32.mrf.mxu0
  %v3666 = vadd.f32 %v3653, %v3665
  %v3667 = vpop.f32.mrf.mxu0
  %3668 = vdwg.mxu0
  %3669 = vmatpush.bf16.msra.mxu0 %v2186
  %3670 = vmatpush.bf16.msra.mxu0 %v2178
  %3671 = vmatpush.bf16.msra.mxu0 %v2170
  %3672 = vmatpush.bf16.msra.mxu0 %v2162
  %3673 = vmatpush.bf16.msra.mxu0 %v2154
  %3674 = vmatpush.bf16.msra.mxu0 %v2146
  %3675 = vmatpush.bf16.msra.mxu0 %v2138
  %3676 = vmatpush.bf16.msra.mxu0 %v2130
  %3677 = vmatmul.bf16.gmra.mxu0 %v573
  %v3678 = vpop.f32.mrf.mxu0
  %v3679 = vadd.f32 %v550, %v3678
  %v3680 = vpop.f32.mrf.mxu0
  %3681 = vdwg.mxu0
  %3682 = vmatpush.bf16.msra.mxu0 %v2250
  %3683 = vmatpush.bf16.msra.mxu0 %v2242
  %3684 = vmatpush.bf16.msra.mxu0 %v2234
  %3685 = vmatpush.bf16.msra.mxu0 %v2226
  %3686 = vmatpush.bf16.msra.mxu0 %v2218
  %3687 = vmatpush.bf16.msra.mxu0 %v2210
  %3688 = vmatpush.bf16.msra.mxu0 %v2202
  %3689 = vmatpush.bf16.msra.mxu0 %v2194
  %3690 = vmatmul.bf16.gmra.mxu0 %v574
  %v3691 = vpop.f32.mrf.mxu0
  %v3692 = vadd.f32 %v3679, %v3691
  %v3693 = vpop.f32.mrf.mxu0
  %3694 = vdwg.mxu0
  %3695 = vmatpush.bf16.msra.mxu0 %v2314
  %3696 = vmatpush.bf16.msra.mxu0 %v2306
  %3697 = vmatpush.bf16.msra.mxu0 %v2298
  %3698 = vmatpush.bf16.msra.mxu0 %v2290
  %3699 = vmatpush.bf16.msra.mxu0 %v2282
  %3700 = vmatpush.bf16.msra.mxu0 %v2274
  %3701 = vmatpush.bf16.msra.mxu0 %v2266
  %3702 = vmatpush.bf16.msra.mxu0 %v2258
  %3703 = vmatmul.bf16.gmra.mxu0 %v575
  %v3704 = vpop.f32.mrf.mxu0
  %v3705 = vadd.f32 %v3692, %v3704
  %v3706 = vpop.f32.mrf.mxu0
  %3707 = vdwg.mxu0
  %3708 = vmatpush.bf16.msra.mxu0 %v2378
  %3709 = vmatpush.bf16.msra.mxu0 %v2370
  %3710 = vmatpush.bf16.msra.mxu0 %v2362
  %3711 = vmatpush.bf16.msra.mxu0 %v2354
  %3712 = vmatpush.bf16.msra.mxu0 %v2346
  %3713 = vmatpush.bf16.msra.mxu0 %v2338
  %3714 = vmatpush.bf16.msra.mxu0 %v2330
  %3715 = vmatpush.bf16.msra.mxu0 %v2322
  %3716 = vmatmul.bf16.gmra.mxu0 %v576
  %v3717 = vpop.f32.mrf.mxu0
  %v3718 = vadd.f32 %v3705, %v3717
  %v3719 = vpop.f32.mrf.mxu0
  %3720 = vdwg.mxu0
  %3721 = vmatpush.bf16.msra.mxu0 %v2442
  %3722 = vmatpush.bf16.msra.mxu0 %v2434
  %3723 = vmatpush.bf16.msra.mxu0 %v2426
  %3724 = vmatpush.bf16.msra.mxu0 %v2418
  %3725 = vmatpush.bf16.msra.mxu0 %v2410
  %3726 = vmatpush.bf16.msra.mxu0 %v2402
  %3727 = vmatpush.bf16.msra.mxu0 %v2394
  %3728 = vmatpush.bf16.msra.mxu0 %v2386
  %3729 = vmatmul.bf16.gmra.mxu0 %v577
  %v3730 = vpop.f32.mrf.mxu0
  %v3731 = vadd.f32 %v3718, %v3730
  %v3732 = vpop.f32.mrf.mxu0
  %3733 = vdwg.mxu0
  %3734 = vmatpush.bf16.msra.mxu0 %v2506
  %3735 = vmatpush.bf16.msra.mxu0 %v2498
  %3736 = vmatpush.bf16.msra.mxu0 %v2490
  %3737 = vmatpush.bf16.msra.mxu0 %v2482
  %3738 = vmatpush.bf16.msra.mxu0 %v2474
  %3739 = vmatpush.bf16.msra.mxu0 %v2466
  %3740 = vmatpush.bf16.msra.mxu0 %v2458
  %3741 = vmatpush.bf16.msra.mxu0 %v2450
  %3742 = vmatmul.bf16.gmra.mxu0 %v578
  %v3743 = vpop.f32.mrf.mxu0
  %v3744 = vadd.f32 %v3731, %v3743
  %v3745 = vpop.f32.mrf.mxu0
  %3746 = vdwg.mxu0
  %3747 = vmatpush.bf16.msra.mxu0 %v2570
  %3748 = vmatpush.bf16.msra.mxu0 %v2562
  %3749 = vmatpush.bf16.msra.mxu0 %v2554
  %3750 = vmatpush.bf16.msra.mxu0 %v2546
  %3751 = vmatpush.bf16.msra.mxu0 %v2538
  %3752 = vmatpush.bf16.msra.mxu0 %v2530
  %3753 = vmatpush.bf16.msra.mxu0 %v2522
  %3754 = vmatpush.bf16.msra.mxu0 %v2514
  %3755 = vmatmul.bf16.gmra.mxu0 %v579
  %v3756 = vpop.f32.mrf.mxu0
  %v3757 = vadd.f32 %v3744, %v3756
  %v3758 = vpop.f32.mrf.mxu0
  %3759 = vdwg.mxu0
  %3760 = vmatpush.bf16.msra.mxu0 %v2634
  %3761 = vmatpush.bf16.msra.mxu0 %v2626
  %3762 = vmatpush.bf16.msra.mxu0 %v2618
  %3763 = vmatpush.bf16.msra.mxu0 %v2610
  %3764 = vmatpush.bf16.msra.mxu0 %v2602
  %3765 = vmatpush.bf16.msra.mxu0 %v2594
  %3766 = vmatpush.bf16.msra.mxu0 %v2586
  %3767 = vmatpush.bf16.msra.mxu0 %v2578
  %3768 = vmatmul.bf16.gmra.mxu0 %v580
  %v3769 = vpop.f32.mrf.mxu0
  %v3770 = vadd.f32 %v3757, %v3769
  %v3771 = vpop.f32.mrf.mxu0
  %3772 = vdwg.mxu0
  %3773 = vmatpush.bf16.msra.mxu0 %v2187
  %3774 = vmatpush.bf16.msra.mxu0 %v2179
  %3775 = vmatpush.bf16.msra.mxu0 %v2171
  %3776 = vmatpush.bf16.msra.mxu0 %v2163
  %3777 = vmatpush.bf16.msra.mxu0 %v2155
  %3778 = vmatpush.bf16.msra.mxu0 %v2147
  %3779 = vmatpush.bf16.msra.mxu0 %v2139
  %3780 = vmatpush.bf16.msra.mxu0 %v2131
  %3781 = vmatmul.bf16.gmra.mxu0 %v573
  %v3782 = vpop.f32.mrf.mxu0
  %v3783 = vadd.f32 %v551, %v3782
  %v3784 = vpop.f32.mrf.mxu0
  %3785 = vdwg.mxu0
  %3786 = vmatpush.bf16.msra.mxu0 %v2251
  %3787 = vmatpush.bf16.msra.mxu0 %v2243
  %3788 = vmatpush.bf16.msra.mxu0 %v2235
  %3789 = vmatpush.bf16.msra.mxu0 %v2227
  %3790 = vmatpush.bf16.msra.mxu0 %v2219
  %3791 = vmatpush.bf16.msra.mxu0 %v2211
  %3792 = vmatpush.bf16.msra.mxu0 %v2203
  %3793 = vmatpush.bf16.msra.mxu0 %v2195
  %3794 = vmatmul.bf16.gmra.mxu0 %v574
  %v3795 = vpop.f32.mrf.mxu0
  %v3796 = vadd.f32 %v3783, %v3795
  %v3797 = vpop.f32.mrf.mxu0
  %3798 = vdwg.mxu0
  %3799 = vmatpush.bf16.msra.mxu0 %v2315
  %3800 = vmatpush.bf16.msra.mxu0 %v2307
  %3801 = vmatpush.bf16.msra.mxu0 %v2299
  %3802 = vmatpush.bf16.msra.mxu0 %v2291
  %3803 = vmatpush.bf16.msra.mxu0 %v2283
  %3804 = vmatpush.bf16.msra.mxu0 %v2275
  %3805 = vmatpush.bf16.msra.mxu0 %v2267
  %3806 = vmatpush.bf16.msra.mxu0 %v2259
  %3807 = vmatmul.bf16.gmra.mxu0 %v575
  %v3808 = vpop.f32.mrf.mxu0
  %v3809 = vadd.f32 %v3796, %v3808
  %v3810 = vpop.f32.mrf.mxu0
  %3811 = vdwg.mxu0
  %3812 = vmatpush.bf16.msra.mxu0 %v2379
  %3813 = vmatpush.bf16.msra.mxu0 %v2371
  %3814 = vmatpush.bf16.msra.mxu0 %v2363
  %3815 = vmatpush.bf16.msra.mxu0 %v2355
  %3816 = vmatpush.bf16.msra.mxu0 %v2347
  %3817 = vmatpush.bf16.msra.mxu0 %v2339
  %3818 = vmatpush.bf16.msra.mxu0 %v2331
  %3819 = vmatpush.bf16.msra.mxu0 %v2323
  %3820 = vmatmul.bf16.gmra.mxu0 %v576
  %v3821 = vpop.f32.mrf.mxu0
  %v3822 = vadd.f32 %v3809, %v3821
  %v3823 = vpop.f32.mrf.mxu0
  %3824 = vdwg.mxu0
  %3825 = vmatpush.bf16.msra.mxu0 %v2443
  %3826 = vmatpush.bf16.msra.mxu0 %v2435
  %3827 = vmatpush.bf16.msra.mxu0 %v2427
  %3828 = vmatpush.bf16.msra.mxu0 %v2419
  %3829 = vmatpush.bf16.msra.mxu0 %v2411
  %3830 = vmatpush.bf16.msra.mxu0 %v2403
  %3831 = vmatpush.bf16.msra.mxu0 %v2395
  %3832 = vmatpush.bf16.msra.mxu0 %v2387
  %3833 = vmatmul.bf16.gmra.mxu0 %v577
  %v3834 = vpop.f32.mrf.mxu0
  %v3835 = vadd.f32 %v3822, %v3834
  %v3836 = vpop.f32.mrf.mxu0
  %3837 = vdwg.mxu0
  %3838 = vmatpush.bf16.msra.mxu0 %v2507
  %3839 = vmatpush.bf16.msra.mxu0 %v2499
  %3840 = vmatpush.bf16.msra.mxu0 %v2491
  %3841 = vmatpush.bf16.msra.mxu0 %v2483
  %3842 = vmatpush.bf16.msra.mxu0 %v2475
  %3843 = vmatpush.bf16.msra.mxu0 %v2467
  %3844 = vmatpush.bf16.msra.mxu0 %v2459
  %3845 = vmatpush.bf16.msra.mxu0 %v2451
  %3846 = vmatmul.bf16.gmra.mxu0 %v578
  %v3847 = vpop.f32.mrf.mxu0
  %v3848 = vadd.f32 %v3835, %v3847
  %v3849 = vpop.f32.mrf.mxu0
  %3850 = vdwg.mxu0
  %3851 = vmatpush.bf16.msra.mxu0 %v2571
  %3852 = vmatpush.bf16.msra.mxu0 %v2563
  %3853 = vmatpush.bf16.msra.mxu0 %v2555
  %3854 = vmatpush.bf16.msra.mxu0 %v2547
  %3855 = vmatpush.bf16.msra.mxu0 %v2539
  %3856 = vmatpush.bf16.msra.mxu0 %v2531
  %3857 = vmatpush.bf16.msra.mxu0 %v2523
  %3858 = vmatpush.bf16.msra.mxu0 %v2515
  %3859 = vmatmul.bf16.gmra.mxu0 %v579
  %v3860 = vpop.f32.mrf.mxu0
  %v3861 = vadd.f32 %v3848, %v3860
  %v3862 = vpop.f32.mrf.mxu0
  %3863 = vdwg.mxu0
  %3864 = vmatpush.bf16.msra.mxu0 %v2635
  %3865 = vmatpush.bf16.msra.mxu0 %v2627
  %3866 = vmatpush.bf16.msra.mxu0 %v2619
  %3867 = vmatpush.bf16.msra.mxu0 %v2611
  %3868 = vmatpush.bf16.msra.mxu0 %v2603
  %3869 = vmatpush.bf16.msra.mxu0 %v2595
  %3870 = vmatpush.bf16.msra.mxu0 %v2587
  %3871 = vmatpush.bf16.msra.mxu0 %v2579
  %3872 = vmatmul.bf16.gmra.mxu0 %v580
  %v3873 = vpop.f32.mrf.mxu0
  %v3874 = vadd.f32 %v3861, %v3873
  %v3875 = vpop.f32.mrf.mxu0
  %3876 = vdwg.mxu0
  %3877 = vmatpush.bf16.msra.mxu0 %v2188
  %3878 = vmatpush.bf16.msra.mxu0 %v2180
  %3879 = vmatpush.bf16.msra.mxu0 %v2172
  %3880 = vmatpush.bf16.msra.mxu0 %v2164
  %3881 = vmatpush.bf16.msra.mxu0 %v2156
  %3882 = vmatpush.bf16.msra.mxu0 %v2148
  %3883 = vmatpush.bf16.msra.mxu0 %v2140
  %3884 = vmatpush.bf16.msra.mxu0 %v2132
  %3885 = vmatmul.bf16.gmra.mxu0 %v573
  %v3886 = vpop.f32.mrf.mxu0
  %v3887 = vadd.f32 %v552, %v3886
  %v3888 = vpop.f32.mrf.mxu0
  %3889 = vdwg.mxu0
  %3890 = vmatpush.bf16.msra.mxu0 %v2252
  %3891 = vmatpush.bf16.msra.mxu0 %v2244
  %3892 = vmatpush.bf16.msra.mxu0 %v2236
  %3893 = vmatpush.bf16.msra.mxu0 %v2228
  %3894 = vmatpush.bf16.msra.mxu0 %v2220
  %3895 = vmatpush.bf16.msra.mxu0 %v2212
  %3896 = vmatpush.bf16.msra.mxu0 %v2204
  %3897 = vmatpush.bf16.msra.mxu0 %v2196
  %3898 = vmatmul.bf16.gmra.mxu0 %v574
  %v3899 = vpop.f32.mrf.mxu0
  %v3900 = vadd.f32 %v3887, %v3899
  %v3901 = vpop.f32.mrf.mxu0
  %3902 = vdwg.mxu0
  %3903 = vmatpush.bf16.msra.mxu0 %v2316
  %3904 = vmatpush.bf16.msra.mxu0 %v2308
  %3905 = vmatpush.bf16.msra.mxu0 %v2300
  %3906 = vmatpush.bf16.msra.mxu0 %v2292
  %3907 = vmatpush.bf16.msra.mxu0 %v2284
  %3908 = vmatpush.bf16.msra.mxu0 %v2276
  %3909 = vmatpush.bf16.msra.mxu0 %v2268
  %3910 = vmatpush.bf16.msra.mxu0 %v2260
  %3911 = vmatmul.bf16.gmra.mxu0 %v575
  %v3912 = vpop.f32.mrf.mxu0
  %v3913 = vadd.f32 %v3900, %v3912
  %v3914 = vpop.f32.mrf.mxu0
  %3915 = vdwg.mxu0
  %3916 = vmatpush.bf16.msra.mxu0 %v2380
  %3917 = vmatpush.bf16.msra.mxu0 %v2372
  %3918 = vmatpush.bf16.msra.mxu0 %v2364
  %3919 = vmatpush.bf16.msra.mxu0 %v2356
  %3920 = vmatpush.bf16.msra.mxu0 %v2348
  %3921 = vmatpush.bf16.msra.mxu0 %v2340
  %3922 = vmatpush.bf16.msra.mxu0 %v2332
  %3923 = vmatpush.bf16.msra.mxu0 %v2324
  %3924 = vmatmul.bf16.gmra.mxu0 %v576
  %v3925 = vpop.f32.mrf.mxu0
  %v3926 = vadd.f32 %v3913, %v3925
  %v3927 = vpop.f32.mrf.mxu0
  %3928 = vdwg.mxu0
  %3929 = vmatpush.bf16.msra.mxu0 %v2444
  %3930 = vmatpush.bf16.msra.mxu0 %v2436
  %3931 = vmatpush.bf16.msra.mxu0 %v2428
  %3932 = vmatpush.bf16.msra.mxu0 %v2420
  %3933 = vmatpush.bf16.msra.mxu0 %v2412
  %3934 = vmatpush.bf16.msra.mxu0 %v2404
  %3935 = vmatpush.bf16.msra.mxu0 %v2396
  %3936 = vmatpush.bf16.msra.mxu0 %v2388
  %3937 = vmatmul.bf16.gmra.mxu0 %v577
  %v3938 = vpop.f32.mrf.mxu0
  %v3939 = vadd.f32 %v3926, %v3938
  %v3940 = vpop.f32.mrf.mxu0
  %3941 = vdwg.mxu0
  %3942 = vmatpush.bf16.msra.mxu0 %v2508
  %3943 = vmatpush.bf16.msra.mxu0 %v2500
  %3944 = vmatpush.bf16.msra.mxu0 %v2492
  %3945 = vmatpush.bf16.msra.mxu0 %v2484
  %3946 = vmatpush.bf16.msra.mxu0 %v2476
  %3947 = vmatpush.bf16.msra.mxu0 %v2468
  %3948 = vmatpush.bf16.msra.mxu0 %v2460
  %3949 = vmatpush.bf16.msra.mxu0 %v2452
  %3950 = vmatmul.bf16.gmra.mxu0 %v578
  %v3951 = vpop.f32.mrf.mxu0
  %v3952 = vadd.f32 %v3939, %v3951
  %v3953 = vpop.f32.mrf.mxu0
  %3954 = vdwg.mxu0
  %3955 = vmatpush.bf16.msra.mxu0 %v2572
  %3956 = vmatpush.bf16.msra.mxu0 %v2564
  %3957 = vmatpush.bf16.msra.mxu0 %v2556
  %3958 = vmatpush.bf16.msra.mxu0 %v2548
  %3959 = vmatpush.bf16.msra.mxu0 %v2540
  %3960 = vmatpush.bf16.msra.mxu0 %v2532
  %3961 = vmatpush.bf16.msra.mxu0 %v2524
  %3962 = vmatpush.bf16.msra.mxu0 %v2516
  %3963 = vmatmul.bf16.gmra.mxu0 %v579
  %v3964 = vpop.f32.mrf.mxu0
  %v3965 = vadd.f32 %v3952, %v3964
  %v3966 = vpop.f32.mrf.mxu0
  %3967 = vdwg.mxu0
  %3968 = vmatpush.bf16.msra.mxu0 %v2636
  %3969 = vmatpush.bf16.msra.mxu0 %v2628
  %3970 = vmatpush.bf16.msra.mxu0 %v2620
  %3971 = vmatpush.bf16.msra.mxu0 %v2612
  %3972 = vmatpush.bf16.msra.mxu0 %v2604
  %3973 = vmatpush.bf16.msra.mxu0 %v2596
  %3974 = vmatpush.bf16.msra.mxu0 %v2588
  %3975 = vmatpush.bf16.msra.mxu0 %v2580
  %3976 = vmatmul.bf16.gmra.mxu0 %v580
  %v3977 = vpop.f32.mrf.mxu0
  %v3978 = vadd.f32 %v3965, %v3977
  %v3979 = vpop.f32.mrf.mxu0
  %3980 = vdwg.mxu0
  %v3981 = vpack.c.bf16 %v3354, %v3250
  %v3982 = vpack.c.bf16 %v3562, %v3458
  %v3983 = vpack.c.bf16 %v3770, %v3666
  %v3984 = vpack.c.bf16 %v3978, %v3874
  %v3985 = vld [vmem:[%s4] sm:$0xf]
  %v3986 = vld [vmem:[%s4 + $0x4] sm:$0xf]
  %v3987 = vld [vmem:[%s4 + $0x8] sm:$0xf]
  %v3988 = vld [vmem:[%s4 + $0xc] sm:$0xf]
  %v3989 = vld [vmem:[%s4 + $0x10] sm:$0xf]
  %v3990 = vld [vmem:[%s4 + $0x14] sm:$0xf]
  %v3991 = vld [vmem:[%s4 + $0x18] sm:$0xf]
  %v3992 = vld [vmem:[%s4 + $0x1c] sm:$0xf]
  %v3993 = vld [vmem:[%s4 + $0x20] sm:$0xf]
  %v3994 = vld [vmem:[%s4 + $0x24] sm:$0x7]
  %v3995 = vld [vmem:[%s5] sm:$0xf]
  %v3996 = vld [vmem:[%s5 + $0x4] sm:$0xf]
  %v3997 = vld [vmem:[%s5 + $0x8] sm:$0xf]
  %v3998 = vld [vmem:[%s5 + $0xc] sm:$0xf]
  %v3999 = vld [vmem:[%s5 + $0x10] sm:$0xf]
  %v4000 = vld [vmem:[%s5 + $0x14] sm:$0xf]
  %v4001 = vld [vmem:[%s5 + $0x18] sm:$0xf]
  %v4002 = vld [vmem:[%s5 + $0x1c] sm:$0xf]
  %v4003 = vld [vmem:[%s5 + $0x20] sm:$0xf]
  %v4004 = vld [vmem:[%s5 + $0x24] sm:$0x7]
  %v4005 = vld [vmem:[%s6] sm:$0xff]
  %v4006 = vld [vmem:[%s6 + $0x8] sm:$0xff]
  %v4007 = vld [vmem:[%s6 + $0x10] sm:$0xff]
  %v4008 = vld [vmem:[%s6 + $0x18] sm:$0xff]
  %v4009 = vld [vmem:[%s6 + $0x20] sm:$0xff]
  %v4010 = vld [vmem:[%s6 + $0x28] sm:$0xff]
  %v4011 = vld [vmem:[%s6 + $0x30] sm:$0xff]
  %v4012 = vld [vmem:[%s6 + $0x38] sm:$0xff]
  %v4013 = vld [vmem:[%s6 + $0x40] sm:$0xff]
  %v4014 = vld [vmem:[%s6 + $0x48] sm:$0x1f]
  %4016 = vset.pattern.permute.xlu0 0
  %4017 = vperm.xlu0 %4016, %v4005
  %v4018 = vpop.permute.xlu0 %4017
  %4021 = vset.pattern.permute.xlu0 0
  %4022 = vperm.xlu0 %4021, %v4006
  %v4023 = vpop.permute.xlu0 %4022
  %4026 = vset.pattern.permute.xlu0 0
  %4027 = vperm.xlu0 %4026, %v4007
  %v4028 = vpop.permute.xlu0 %4027
  %4031 = vset.pattern.permute.xlu0 0
  %4032 = vperm.xlu0 %4031, %v4008
  %v4033 = vpop.permute.xlu0 %4032
  %4036 = vset.pattern.permute.xlu0 0
  %4037 = vperm.xlu0 %4036, %v4009
  %v4038 = vpop.permute.xlu0 %4037
  %4041 = vset.pattern.permute.xlu0 0
  %4042 = vperm.xlu0 %4041, %v4010
  %v4043 = vpop.permute.xlu0 %4042
  %4046 = vset.pattern.permute.xlu0 0
  %4047 = vperm.xlu0 %4046, %v4011
  %v4048 = vpop.permute.xlu0 %4047
  %4051 = vset.pattern.permute.xlu0 0
  %4052 = vperm.xlu0 %4051, %v4012
  %v4053 = vpop.permute.xlu0 %4052
  %4056 = vset.pattern.permute.xlu0 0
  %4057 = vperm.xlu0 %4056, %v4013
  %v4058 = vpop.permute.xlu0 %4057
  %4061 = vset.pattern.permute.xlu0 0
  %4062 = vperm.xlu0 %4061, %v4014
  %v4063 = vpop.permute.xlu0 %4062
  %v4065 = vld [vmem:[%s0] sm:$0xff]
  %v4066 = vld [vmem:[%s0 + $0x8] sm:$0xff]
  %v4067 = vld [vmem:[%s0 + $0x10] sm:$0xff]
  %v4068 = vld [vmem:[%s0 + $0x18] sm:$0xff]
  %v4069 = vld [vmem:[%s0 + $0x20] sm:$0xff]
  %v4070 = vld [vmem:[%s0 + $0x28] sm:$0xff]
  %v4071 = vld [vmem:[%s0 + $0x30] sm:$0xff]
  %v4072 = vld [vmem:[%s0 + $0x38] sm:$0xff]
  %v4073 = vld [vmem:[%s0 + $0x40] sm:$0xff]
  %v4074 = vld [vmem:[%s0 + $0x48] sm:$0xff]
  %v4075 = vld [vmem:[%s0 + $0x50] sm:$0xff]
  %v4076 = vld [vmem:[%s0 + $0x58] sm:$0xff]
  %v4077 = vld [vmem:[%s0 + $0x60] sm:$0xff]
  %v4078 = vld [vmem:[%s0 + $0x68] sm:$0xff]
  %v4079 = vld [vmem:[%s0 + $0x70] sm:$0xff]
  %v4080 = vld [vmem:[%s0 + $0x78] sm:$0xff]
  %v4081 = vld [vmem:[%s0 + $0x80] sm:$0xff]
  %v4082 = vld [vmem:[%s0 + $0x88] sm:$0xff]
  %v4083 = vld [vmem:[%s0 + $0x90] sm:$0xff]
  %v4084 = vld [vmem:[%s0 + $0x98] sm:$0xff]
  %v4085 = vld [vmem:[%s0 + $0xa0] sm:$0xff]
  %v4086 = vld [vmem:[%s0 + $0xa8] sm:$0xff]
  %v4087 = vld [vmem:[%s0 + $0xb0] sm:$0xff]
  %v4088 = vld [vmem:[%s0 + $0xb8] sm:$0xff]
  %v4089 = vld [vmem:[%s0 + $0xc0] sm:$0xff]
  %v4090 = vld [vmem:[%s0 + $0xc8] sm:$0xff]
  %v4091 = vld [vmem:[%s0 + $0xd0] sm:$0xff]
  %v4092 = vld [vmem:[%s0 + $0xd8] sm:$0xff]
  %v4093 = vld [vmem:[%s0 + $0xe0] sm:$0xff]
  %v4094 = vld [vmem:[%s0 + $0xe8] sm:$0xff]
  %v4095 = vld [vmem:[%s0 + $0xf0] sm:$0xff]
  %v4096 = vld [vmem:[%s0 + $0xf8] sm:$0xff]
  %v4097 = vld [vmem:[%s0 + $0x100] sm:$0xff]
  %v4098 = vld [vmem:[%s0 + $0x108] sm:$0xff]
  %v4099 = vld [vmem:[%s0 + $0x110] sm:$0xff]
  %v4100 = vld [vmem:[%s0 + $0x118] sm:$0xff]
  %v4101 = vld [vmem:[%s0 + $0x120] sm:$0x77]
  %v4102 = vld [vmem:[%s0 + $0x128] sm:$0x77]
  %v4103 = vld [vmem:[%s0 + $0x130] sm:$0x77]
  %v4104 = vld [vmem:[%s0 + $0x138] sm:$0x77]
  %v4115 = vunpack.c.l.b16 %v3995
  %v4116 = vunpack.c.l.b16 %v3996
  %v4117 = vunpack.c.l.b16 %v3997
  %v4118 = vunpack.c.l.b16 %v3998
  %v4119 = vunpack.c.l.b16 %v3999
  %v4120 = vunpack.c.l.b16 %v4000
  %v4121 = vunpack.c.l.b16 %v4001
  %v4122 = vunpack.c.l.b16 %v4002
  %v4123 = vunpack.c.l.b16 %v4003
  %v4124 = vunpack.c.l.b16 %v4004
  %v4125 = vpack.c.b16 %v4116, %v4115
  %v4126 = vpack.c.b16 %v4118, %v4117
  %v4127 = vpack.c.b16 %v4120, %v4119
  %v4128 = vpack.c.b16 %v4122, %v4121
  %v4129 = vpack.c.b16 %v4124, %v4123
  %v4134 = vunpack.c.l.b16 %v3981
  %v4135 = vunpack.c.h.b16 %v3981
  %v4136 = vunpack.c.l.b16 %v3982
  %v4137 = vunpack.c.h.b16 %v3982
  %v4138 = vunpack.c.l.b16 %v3983
  %v4139 = vunpack.c.h.b16 %v3983
  %v4140 = vunpack.c.l.b16 %v3984
  %v4141 = vunpack.c.h.b16 %v3984
  %v4142 = vpack.c.b16 %v4134, %v4134
  %v4143 = vpack.c.b16 %v4135, %v4135
  %v4144 = vpack.c.b16 %v4136, %v4136
  %v4145 = vpack.c.b16 %v4137, %v4137
  %v4146 = vpack.c.b16 %v4138, %v4138
  %v4147 = vpack.c.b16 %v4139, %v4139
  %v4148 = vpack.c.b16 %v4140, %v4140
  %v4149 = vpack.c.b16 %v4141, %v4141
  %vm4150 = vcmask 31744
  %v4152 = vsel %vm4150, %v4125, 0
  %v4155 = vsel %vm4150, %v4126, 0
  %v4158 = vsel %vm4150, %v4127, 0
  %v4161 = vsel %vm4150, %v4128, 0
  %v4164 = vsel %vm4150, %v4129, 0
  %vm4166 = vcmask 1041408
  %v4168 = vsel %vm4166, %v4142, 0
  %v4171 = vsel %vm4166, %v4143, 0
  %v4174 = vsel %vm4166, %v4144, 0
  %v4177 = vsel %vm4166, %v4145, 0
  %v4180 = vsel %vm4166, %v4146, 0
  %v4183 = vsel %vm4166, %v4147, 0
  %v4186 = vsel %vm4166, %v4148, 0
  %v4189 = vsel %vm4166, %v4149, 0
  %4191 = vmatpush.bf16.msra.mxu0 0
  %4192 = vmatpush.bf16.msra.mxu0 0
  %4193 = vmatpush.bf16.msra.mxu0 0
  %4194 = vmatpush.bf16.msra.mxu0 0
  %4195 = vmatpush.bf16.msra.mxu0 0
  %4196 = vmatpush.bf16.msra.mxu0 0
  %4197 = vmatpush.bf16.msra.mxu0 0
  %4198 = vmatpush.bf16.msra.mxu0 %v4168
  %4199 = vmatmul.bf16.gmra.mxu0 %v4152
  %v4200 = vpop.f32.mrf.mxu0
  %v4201 = vadd.f32 0.0, %v4200
  %v4202 = vpop.f32.mrf.mxu0
  %v4203 = vadd.f32 0.0, %v4202
  %4204 = vmatmul.bf16.gmra.mxu0 %v4155
  %v4205 = vpop.f32.mrf.mxu0
  %v4206 = vadd.f32 0.0, %v4205
  %v4207 = vpop.f32.mrf.mxu0
  %v4208 = vadd.f32 0.0, %v4207
  %4209 = vmatmul.bf16.gmra.mxu0 %v4158
  %v4210 = vpop.f32.mrf.mxu0
  %v4211 = vadd.f32 0.0, %v4210
  %v4212 = vpop.f32.mrf.mxu0
  %v4213 = vadd.f32 0.0, %v4212
  %4214 = vmatmul.bf16.gmra.mxu0 %v4161
  %v4215 = vpop.f32.mrf.mxu0
  %v4216 = vadd.f32 0.0, %v4215
  %v4217 = vpop.f32.mrf.mxu0
  %v4218 = vadd.f32 0.0, %v4217
  %4219 = vmatmul.bf16.gmra.mxu0 %v4164
  %v4220 = vpop.f32.mrf.mxu0
  %v4221 = vadd.f32 0.0, %v4220
  %v4222 = vpop.f32.mrf.mxu0
  %v4223 = vadd.f32 0.0, %v4222
  %4224 = vdwg.mxu0
  %4225 = vmatpush.bf16.msra.mxu0 0
  %4226 = vmatpush.bf16.msra.mxu0 0
  %4227 = vmatpush.bf16.msra.mxu0 0
  %4228 = vmatpush.bf16.msra.mxu0 0
  %4229 = vmatpush.bf16.msra.mxu0 0
  %4230 = vmatpush.bf16.msra.mxu0 0
  %4231 = vmatpush.bf16.msra.mxu0 0
  %4232 = vmatpush.bf16.msra.mxu0 %v4171
  %4233 = vmatmul.bf16.gmra.mxu0 %v4152
  %v4234 = vpop.f32.mrf.mxu0
  %v4235 = vadd.f32 0.0, %v4234
  %v4236 = vpop.f32.mrf.mxu0
  %v4237 = vadd.f32 0.0, %v4236
  %4238 = vmatmul.bf16.gmra.mxu0 %v4155
  %v4239 = vpop.f32.mrf.mxu0
  %v4240 = vadd.f32 0.0, %v4239
  %v4241 = vpop.f32.mrf.mxu0
  %v4242 = vadd.f32 0.0, %v4241
  %4243 = vmatmul.bf16.gmra.mxu0 %v4158
  %v4244 = vpop.f32.mrf.mxu0
  %v4245 = vadd.f32 0.0, %v4244
  %v4246 = vpop.f32.mrf.mxu0
  %v4247 = vadd.f32 0.0, %v4246
  %4248 = vmatmul.bf16.gmra.mxu0 %v4161
  %v4249 = vpop.f32.mrf.mxu0
  %v4250 = vadd.f32 0.0, %v4249
  %v4251 = vpop.f32.mrf.mxu0
  %v4252 = vadd.f32 0.0, %v4251
  %4253 = vmatmul.bf16.gmra.mxu0 %v4164
  %v4254 = vpop.f32.mrf.mxu0
  %v4255 = vadd.f32 0.0, %v4254
  %v4256 = vpop.f32.mrf.mxu0
  %v4257 = vadd.f32 0.0, %v4256
  %4258 = vdwg.mxu0
  %4259 = vmatpush.bf16.msra.mxu0 0
  %4260 = vmatpush.bf16.msra.mxu0 0
  %4261 = vmatpush.bf16.msra.mxu0 0
  %4262 = vmatpush.bf16.msra.mxu0 0
  %4263 = vmatpush.bf16.msra.mxu0 0
  %4264 = vmatpush.bf16.msra.mxu0 0
  %4265 = vmatpush.bf16.msra.mxu0 0
  %4266 = vmatpush.bf16.msra.mxu0 %v4174
  %4267 = vmatmul.bf16.gmra.mxu0 %v4152
  %v4268 = vpop.f32.mrf.mxu0
  %v4269 = vadd.f32 0.0, %v4268
  %v4270 = vpop.f32.mrf.mxu0
  %v4271 = vadd.f32 0.0, %v4270
  %4272 = vmatmul.bf16.gmra.mxu0 %v4155
  %v4273 = vpop.f32.mrf.mxu0
  %v4274 = vadd.f32 0.0, %v4273
  %v4275 = vpop.f32.mrf.mxu0
  %v4276 = vadd.f32 0.0, %v4275
  %4277 = vmatmul.bf16.gmra.mxu0 %v4158
  %v4278 = vpop.f32.mrf.mxu0
  %v4279 = vadd.f32 0.0, %v4278
  %v4280 = vpop.f32.mrf.mxu0
  %v4281 = vadd.f32 0.0, %v4280
  %4282 = vmatmul.bf16.gmra.mxu0 %v4161
  %v4283 = vpop.f32.mrf.mxu0
  %v4284 = vadd.f32 0.0, %v4283
  %v4285 = vpop.f32.mrf.mxu0
  %v4286 = vadd.f32 0.0, %v4285
  %4287 = vmatmul.bf16.gmra.mxu0 %v4164
  %v4288 = vpop.f32.mrf.mxu0
  %v4289 = vadd.f32 0.0, %v4288
  %v4290 = vpop.f32.mrf.mxu0
  %v4291 = vadd.f32 0.0, %v4290
  %4292 = vdwg.mxu0
  %4293 = vmatpush.bf16.msra.mxu0 0
  %4294 = vmatpush.bf16.msra.mxu0 0
  %4295 = vmatpush.bf16.msra.mxu0 0
  %4296 = vmatpush.bf16.msra.mxu0 0
  %4297 = vmatpush.bf16.msra.mxu0 0
  %4298 = vmatpush.bf16.msra.mxu0 0
  %4299 = vmatpush.bf16.msra.mxu0 0
  %4300 = vmatpush.bf16.msra.mxu0 %v4177
  %4301 = vmatmul.bf16.gmra.mxu0 %v4152
  %v4302 = vpop.f32.mrf.mxu0
  %v4303 = vadd.f32 0.0, %v4302
  %v4304 = vpop.f32.mrf.mxu0
  %v4305 = vadd.f32 0.0, %v4304
  %4306 = vmatmul.bf16.gmra.mxu0 %v4155
  %v4307 = vpop.f32.mrf.mxu0
  %v4308 = vadd.f32 0.0, %v4307
  %v4309 = vpop.f32.mrf.mxu0
  %v4310 = vadd.f32 0.0, %v4309
  %4311 = vmatmul.bf16.gmra.mxu0 %v4158
  %v4312 = vpop.f32.mrf.mxu0
  %v4313 = vadd.f32 0.0, %v4312
  %v4314 = vpop.f32.mrf.mxu0
  %v4315 = vadd.f32 0.0, %v4314
  %4316 = vmatmul.bf16.gmra.mxu0 %v4161
  %v4317 = vpop.f32.mrf.mxu0
  %v4318 = vadd.f32 0.0, %v4317
  %v4319 = vpop.f32.mrf.mxu0
  %v4320 = vadd.f32 0.0, %v4319
  %4321 = vmatmul.bf16.gmra.mxu0 %v4164
  %v4322 = vpop.f32.mrf.mxu0
  %v4323 = vadd.f32 0.0, %v4322
  %v4324 = vpop.f32.mrf.mxu0
  %v4325 = vadd.f32 0.0, %v4324
  %4326 = vdwg.mxu0
  %4327 = vmatpush.bf16.msra.mxu0 0
  %4328 = vmatpush.bf16.msra.mxu0 0
  %4329 = vmatpush.bf16.msra.mxu0 0
  %4330 = vmatpush.bf16.msra.mxu0 0
  %4331 = vmatpush.bf16.msra.mxu0 0
  %4332 = vmatpush.bf16.msra.mxu0 0
  %4333 = vmatpush.bf16.msra.mxu0 0
  %4334 = vmatpush.bf16.msra.mxu0 %v4180
  %4335 = vmatmul.bf16.gmra.mxu0 %v4152
  %v4336 = vpop.f32.mrf.mxu0
  %v4337 = vadd.f32 0.0, %v4336
  %v4338 = vpop.f32.mrf.mxu0
  %v4339 = vadd.f32 0.0, %v4338
  %4340 = vmatmul.bf16.gmra.mxu0 %v4155
  %v4341 = vpop.f32.mrf.mxu0
  %v4342 = vadd.f32 0.0, %v4341
  %v4343 = vpop.f32.mrf.mxu0
  %v4344 = vadd.f32 0.0, %v4343
  %4345 = vmatmul.bf16.gmra.mxu0 %v4158
  %v4346 = vpop.f32.mrf.mxu0
  %v4347 = vadd.f32 0.0, %v4346
  %v4348 = vpop.f32.mrf.mxu0
  %v4349 = vadd.f32 0.0, %v4348
  %4350 = vmatmul.bf16.gmra.mxu0 %v4161
  %v4351 = vpop.f32.mrf.mxu0
  %v4352 = vadd.f32 0.0, %v4351
  %v4353 = vpop.f32.mrf.mxu0
  %v4354 = vadd.f32 0.0, %v4353
  %4355 = vmatmul.bf16.gmra.mxu0 %v4164
  %v4356 = vpop.f32.mrf.mxu0
  %v4357 = vadd.f32 0.0, %v4356
  %v4358 = vpop.f32.mrf.mxu0
  %v4359 = vadd.f32 0.0, %v4358
  %4360 = vdwg.mxu0
  %4361 = vmatpush.bf16.msra.mxu0 0
  %4362 = vmatpush.bf16.msra.mxu0 0
  %4363 = vmatpush.bf16.msra.mxu0 0
  %4364 = vmatpush.bf16.msra.mxu0 0
  %4365 = vmatpush.bf16.msra.mxu0 0
  %4366 = vmatpush.bf16.msra.mxu0 0
  %4367 = vmatpush.bf16.msra.mxu0 0
  %4368 = vmatpush.bf16.msra.mxu0 %v4183
  %4369 = vmatmul.bf16.gmra.mxu0 %v4152
  %v4370 = vpop.f32.mrf.mxu0
  %v4371 = vadd.f32 0.0, %v4370
  %v4372 = vpop.f32.mrf.mxu0
  %v4373 = vadd.f32 0.0, %v4372
  %4374 = vmatmul.bf16.gmra.mxu0 %v4155
  %v4375 = vpop.f32.mrf.mxu0
  %v4376 = vadd.f32 0.0, %v4375
  %v4377 = vpop.f32.mrf.mxu0
  %v4378 = vadd.f32 0.0, %v4377
  %4379 = vmatmul.bf16.gmra.mxu0 %v4158
  %v4380 = vpop.f32.mrf.mxu0
  %v4381 = vadd.f32 0.0, %v4380
  %v4382 = vpop.f32.mrf.mxu0
  %v4383 = vadd.f32 0.0, %v4382
  %4384 = vmatmul.bf16.gmra.mxu0 %v4161
  %v4385 = vpop.f32.mrf.mxu0
  %v4386 = vadd.f32 0.0, %v4385
  %v4387 = vpop.f32.mrf.mxu0
  %v4388 = vadd.f32 0.0, %v4387
  %4389 = vmatmul.bf16.gmra.mxu0 %v4164
  %v4390 = vpop.f32.mrf.mxu0
  %v4391 = vadd.f32 0.0, %v4390
  %v4392 = vpop.f32.mrf.mxu0
  %v4393 = vadd.f32 0.0, %v4392
  %4394 = vdwg.mxu0
  %4395 = vmatpush.bf16.msra.mxu0 0
  %4396 = vmatpush.bf16.msra.mxu0 0
  %4397 = vmatpush.bf16.msra.mxu0 0
  %4398 = vmatpush.bf16.msra.mxu0 0
  %4399 = vmatpush.bf16.msra.mxu0 0
  %4400 = vmatpush.bf16.msra.mxu0 0
  %4401 = vmatpush.bf16.msra.mxu0 0
  %4402 = vmatpush.bf16.msra.mxu0 %v4186
  %4403 = vmatmul.bf16.gmra.mxu0 %v4152
  %v4404 = vpop.f32.mrf.mxu0
  %v4405 = vadd.f32 0.0, %v4404
  %v4406 = vpop.f32.mrf.mxu0
  %v4407 = vadd.f32 0.0, %v4406
  %4408 = vmatmul.bf16.gmra.mxu0 %v4155
  %v4409 = vpop.f32.mrf.mxu0
  %v4410 = vadd.f32 0.0, %v4409
  %v4411 = vpop.f32.mrf.mxu0
  %v4412 = vadd.f32 0.0, %v4411
  %4413 = vmatmul.bf16.gmra.mxu0 %v4158
  %v4414 = vpop.f32.mrf.mxu0
  %v4415 = vadd.f32 0.0, %v4414
  %v4416 = vpop.f32.mrf.mxu0
  %v4417 = vadd.f32 0.0, %v4416
  %4418 = vmatmul.bf16.gmra.mxu0 %v4161
  %v4419 = vpop.f32.mrf.mxu0
  %v4420 = vadd.f32 0.0, %v4419
  %v4421 = vpop.f32.mrf.mxu0
  %v4422 = vadd.f32 0.0, %v4421
  %4423 = vmatmul.bf16.gmra.mxu0 %v4164
  %v4424 = vpop.f32.mrf.mxu0
  %v4425 = vadd.f32 0.0, %v4424
  %v4426 = vpop.f32.mrf.mxu0
  %v4427 = vadd.f32 0.0, %v4426
  %4428 = vdwg.mxu0
  %4429 = vmatpush.bf16.msra.mxu0 0
  %4430 = vmatpush.bf16.msra.mxu0 0
  %4431 = vmatpush.bf16.msra.mxu0 0
  %4432 = vmatpush.bf16.msra.mxu0 0
  %4433 = vmatpush.bf16.msra.mxu0 0
  %4434 = vmatpush.bf16.msra.mxu0 0
  %4435 = vmatpush.bf16.msra.mxu0 0
  %4436 = vmatpush.bf16.msra.mxu0 %v4189
  %4437 = vmatmul.bf16.gmra.mxu0 %v4152
  %v4438 = vpop.f32.mrf.mxu0
  %v4439 = vadd.f32 0.0, %v4438
  %v4440 = vpop.f32.mrf.mxu0
  %v4441 = vadd.f32 0.0, %v4440
  %4442 = vmatmul.bf16.gmra.mxu0 %v4155
  %v4443 = vpop.f32.mrf.mxu0
  %v4444 = vadd.f32 0.0, %v4443
  %v4445 = vpop.f32.mrf.mxu0
  %v4446 = vadd.f32 0.0, %v4445
  %4447 = vmatmul.bf16.gmra.mxu0 %v4158
  %v4448 = vpop.f32.mrf.mxu0
  %v4449 = vadd.f32 0.0, %v4448
  %v4450 = vpop.f32.mrf.mxu0
  %v4451 = vadd.f32 0.0, %v4450
  %4452 = vmatmul.bf16.gmra.mxu0 %v4161
  %v4453 = vpop.f32.mrf.mxu0
  %v4454 = vadd.f32 0.0, %v4453
  %v4455 = vpop.f32.mrf.mxu0
  %v4456 = vadd.f32 0.0, %v4455
  %4457 = vmatmul.bf16.gmra.mxu0 %v4164
  %v4458 = vpop.f32.mrf.mxu0
  %v4459 = vadd.f32 0.0, %v4458
  %v4460 = vpop.f32.mrf.mxu0
  %v4461 = vadd.f32 0.0, %v4460
  %4462 = vdwg.mxu0
  %v4473 = vunpack.c.l.b16 %v3985
  %v4474 = vunpack.c.l.b16 %v3986
  %v4475 = vunpack.c.l.b16 %v3987
  %v4476 = vunpack.c.l.b16 %v3988
  %v4477 = vunpack.c.l.b16 %v3989
  %v4478 = vunpack.c.l.b16 %v3990
  %v4479 = vunpack.c.l.b16 %v3991
  %v4480 = vunpack.c.l.b16 %v3992
  %v4481 = vunpack.c.l.b16 %v3993
  %v4482 = vunpack.c.l.b16 %v3994
  %v4483 = vpack.c.b16 %v4474, %v4473
  %v4484 = vpack.c.b16 %v4476, %v4475
  %v4485 = vpack.c.b16 %v4478, %v4477
  %v4486 = vpack.c.b16 %v4480, %v4479
  %v4487 = vpack.c.b16 %v4482, %v4481
  %v4528 = vunpack.c.l.b16 %v4065
  %v4529 = vunpack.c.h.b16 %v4065
  %v4530 = vunpack.c.l.b16 %v4066
  %v4531 = vunpack.c.h.b16 %v4066
  %v4532 = vunpack.c.l.b16 %v4067
  %v4533 = vunpack.c.h.b16 %v4067
  %v4534 = vunpack.c.l.b16 %v4068
  %v4535 = vunpack.c.h.b16 %v4068
  %v4536 = vunpack.c.l.b16 %v4069
  %v4537 = vunpack.c.h.b16 %v4069
  %v4538 = vunpack.c.l.b16 %v4070
  %v4539 = vunpack.c.h.b16 %v4070
  %v4540 = vunpack.c.l.b16 %v4071
  %v4541 = vunpack.c.h.b16 %v4071
  %v4542 = vunpack.c.l.b16 %v4072
  %v4543 = vunpack.c.h.b16 %v4072
  %v4544 = vunpack.c.l.b16 %v4073
  %v4545 = vunpack.c.h.b16 %v4073
  %v4546 = vunpack.c.l.b16 %v4074
  %v4547 = vunpack.c.h.b16 %v4074
  %v4548 = vunpack.c.l.b16 %v4075
  %v4549 = vunpack.c.h.b16 %v4075
  %v4550 = vunpack.c.l.b16 %v4076
  %v4551 = vunpack.c.h.b16 %v4076
  %v4552 = vunpack.c.l.b16 %v4077
  %v4553 = vunpack.c.h.b16 %v4077
  %v4554 = vunpack.c.l.b16 %v4078
  %v4555 = vunpack.c.h.b16 %v4078
  %v4556 = vunpack.c.l.b16 %v4079
  %v4557 = vunpack.c.h.b16 %v4079
  %v4558 = vunpack.c.l.b16 %v4080
  %v4559 = vunpack.c.h.b16 %v4080
  %v4560 = vunpack.c.l.b16 %v4081
  %v4561 = vunpack.c.h.b16 %v4081
  %v4562 = vunpack.c.l.b16 %v4082
  %v4563 = vunpack.c.h.b16 %v4082
  %v4564 = vunpack.c.l.b16 %v4083
  %v4565 = vunpack.c.h.b16 %v4083
  %v4566 = vunpack.c.l.b16 %v4084
  %v4567 = vunpack.c.h.b16 %v4084
  %v4568 = vunpack.c.l.b16 %v4085
  %v4569 = vunpack.c.h.b16 %v4085
  %v4570 = vunpack.c.l.b16 %v4086
  %v4571 = vunpack.c.h.b16 %v4086
  %v4572 = vunpack.c.l.b16 %v4087
  %v4573 = vunpack.c.h.b16 %v4087
  %v4574 = vunpack.c.l.b16 %v4088
  %v4575 = vunpack.c.h.b16 %v4088
  %v4576 = vunpack.c.l.b16 %v4089
  %v4577 = vunpack.c.h.b16 %v4089
  %v4578 = vunpack.c.l.b16 %v4090
  %v4579 = vunpack.c.h.b16 %v4090
  %v4580 = vunpack.c.l.b16 %v4091
  %v4581 = vunpack.c.h.b16 %v4091
  %v4582 = vunpack.c.l.b16 %v4092
  %v4583 = vunpack.c.h.b16 %v4092
  %v4584 = vunpack.c.l.b16 %v4093
  %v4585 = vunpack.c.h.b16 %v4093
  %v4586 = vunpack.c.l.b16 %v4094
  %v4587 = vunpack.c.h.b16 %v4094
  %v4588 = vunpack.c.l.b16 %v4095
  %v4589 = vunpack.c.h.b16 %v4095
  %v4590 = vunpack.c.l.b16 %v4096
  %v4591 = vunpack.c.h.b16 %v4096
  %v4592 = vunpack.c.l.b16 %v4097
  %v4593 = vunpack.c.h.b16 %v4097
  %v4594 = vunpack.c.l.b16 %v4098
  %v4595 = vunpack.c.h.b16 %v4098
  %v4596 = vunpack.c.l.b16 %v4099
  %v4597 = vunpack.c.h.b16 %v4099
  %v4598 = vunpack.c.l.b16 %v4100
  %v4599 = vunpack.c.h.b16 %v4100
  %v4600 = vunpack.c.l.b16 %v4101
  %v4601 = vunpack.c.h.b16 %v4101
  %v4602 = vunpack.c.l.b16 %v4102
  %v4603 = vunpack.c.h.b16 %v4102
  %v4604 = vunpack.c.l.b16 %v4103
  %v4605 = vunpack.c.h.b16 %v4103
  %v4606 = vunpack.c.l.b16 %v4104
  %v4607 = vunpack.c.h.b16 %v4104
  %v4608 = vpack.c.b16 %v4536, %v4528
  %v4609 = vpack.c.b16 %v4537, %v4529
  %v4610 = vpack.c.b16 %v4538, %v4530
  %v4611 = vpack.c.b16 %v4539, %v4531
  %v4612 = vpack.c.b16 %v4540, %v4532
  %v4613 = vpack.c.b16 %v4541, %v4533
  %v4614 = vpack.c.b16 %v4542, %v4534
  %v4615 = vpack.c.b16 %v4543, %v4535
  %v4616 = vpack.c.b16 %v4552, %v4544
  %v4617 = vpack.c.b16 %v4553, %v4545
  %v4618 = vpack.c.b16 %v4554, %v4546
  %v4619 = vpack.c.b16 %v4555, %v4547
  %v4620 = vpack.c.b16 %v4556, %v4548
  %v4621 = vpack.c.b16 %v4557, %v4549
  %v4622 = vpack.c.b16 %v4558, %v4550
  %v4623 = vpack.c.b16 %v4559, %v4551
  %v4624 = vpack.c.b16 %v4568, %v4560
  %v4625 = vpack.c.b16 %v4569, %v4561
  %v4626 = vpack.c.b16 %v4570, %v4562
  %v4627 = vpack.c.b16 %v4571, %v4563
  %v4628 = vpack.c.b16 %v4572, %v4564
  %v4629 = vpack.c.b16 %v4573, %v4565
  %v4630 = vpack.c.b16 %v4574, %v4566
  %v4631 = vpack.c.b16 %v4575, %v4567
  %v4632 = vpack.c.b16 %v4584, %v4576
  %v4633 = vpack.c.b16 %v4585, %v4577
  %v4634 = vpack.c.b16 %v4586, %v4578
  %v4635 = vpack.c.b16 %v4587, %v4579
  %v4636 = vpack.c.b16 %v4588, %v4580
  %v4637 = vpack.c.b16 %v4589, %v4581
  %v4638 = vpack.c.b16 %v4590, %v4582
  %v4639 = vpack.c.b16 %v4591, %v4583
  %v4640 = vpack.c.b16 %v4600, %v4592
  %v4641 = vpack.c.b16 %v4601, %v4593
  %v4642 = vpack.c.b16 %v4602, %v4594
  %v4643 = vpack.c.b16 %v4603, %v4595
  %v4644 = vpack.c.b16 %v4604, %v4596
  %v4645 = vpack.c.b16 %v4605, %v4597
  %v4646 = vpack.c.b16 %v4606, %v4598
  %v4647 = vpack.c.b16 %v4607, %v4599
  %vm4680 = vcmask 629760
  %v4682 = vsel %vm4680, %v4483, 0
  %v4685 = vsel %vm4680, %v4484, 0
  %v4688 = vsel %vm4680, %v4485, 0
  %v4691 = vsel %vm4680, %v4486, 0
  %v4694 = vsel %vm4680, %v4487, 0
  %vm4696 = vcmask 1045504
  %vm4697 = vcmask 1046528
  %v4698 = vsel %vm4696, 4294967295, 65535
  %v4699 = vsel %vm4697, %v4698, 0
  %v4701 = vand.u32 %v4640, %v4699
  %v4704 = vand.u32 %v4641, %v4699
  %v4707 = vand.u32 %v4642, %v4699
  %v4710 = vand.u32 %v4643, %v4699
  %v4713 = vand.u32 %v4644, %v4699
  %v4716 = vand.u32 %v4645, %v4699
  %v4719 = vand.u32 %v4646, %v4699
  %v4722 = vand.u32 %v4647, %v4699
  %4724 = vmatpush.bf16.msra.mxu0 0
  %4725 = vmatpush.bf16.msra.mxu0 0
  %4726 = vmatpush.bf16.msra.mxu0 0
  %4727 = vmatpush.bf16.msra.mxu0 %v4701
  %4728 = vmatpush.bf16.msra.mxu0 %v4632
  %4729 = vmatpush.bf16.msra.mxu0 %v4624
  %4730 = vmatpush.bf16.msra.mxu0 %v4616
  %4731 = vmatpush.bf16.msra.mxu0 %v4608
  %4732 = vmatmul.bf16.gmra.mxu0 %v4682
  %v4733 = vpop.f32.mrf.mxu0
  %v4734 = vadd.f32 %v4201, %v4733
  %v4735 = vpop.f32.mrf.mxu0
  %v4736 = vadd.f32 %v4203, %v4735
  %4737 = vmatmul.bf16.gmra.mxu0 %v4685
  %v4738 = vpop.f32.mrf.mxu0
  %v4739 = vadd.f32 %v4206, %v4738
  %v4740 = vpop.f32.mrf.mxu0
  %v4741 = vadd.f32 %v4208, %v4740
  %4742 = vmatmul.bf16.gmra.mxu0 %v4688
  %v4743 = vpop.f32.mrf.mxu0
  %v4744 = vadd.f32 %v4211, %v4743
  %v4745 = vpop.f32.mrf.mxu0
  %v4746 = vadd.f32 %v4213, %v4745
  %4747 = vmatmul.bf16.gmra.mxu0 %v4691
  %v4748 = vpop.f32.mrf.mxu0
  %v4749 = vadd.f32 %v4216, %v4748
  %v4750 = vpop.f32.mrf.mxu0
  %v4751 = vadd.f32 %v4218, %v4750
  %4752 = vmatmul.bf16.gmra.mxu0 %v4694
  %v4753 = vpop.f32.mrf.mxu0
  %v4754 = vadd.f32 %v4221, %v4753
  %v4755 = vpop.f32.mrf.mxu0
  %v4756 = vadd.f32 %v4223, %v4755
  %4757 = vdwg.mxu0
  %4758 = vmatpush.bf16.msra.mxu0 0
  %4759 = vmatpush.bf16.msra.mxu0 0
  %4760 = vmatpush.bf16.msra.mxu0 0
  %4761 = vmatpush.bf16.msra.mxu0 %v4704
  %4762 = vmatpush.bf16.msra.mxu0 %v4633
  %4763 = vmatpush.bf16.msra.mxu0 %v4625
  %4764 = vmatpush.bf16.msra.mxu0 %v4617
  %4765 = vmatpush.bf16.msra.mxu0 %v4609
  %4766 = vmatmul.bf16.gmra.mxu0 %v4682
  %v4767 = vpop.f32.mrf.mxu0
  %v4768 = vadd.f32 %v4235, %v4767
  %v4769 = vpop.f32.mrf.mxu0
  %v4770 = vadd.f32 %v4237, %v4769
  %4771 = vmatmul.bf16.gmra.mxu0 %v4685
  %v4772 = vpop.f32.mrf.mxu0
  %v4773 = vadd.f32 %v4240, %v4772
  %v4774 = vpop.f32.mrf.mxu0
  %v4775 = vadd.f32 %v4242, %v4774
  %4776 = vmatmul.bf16.gmra.mxu0 %v4688
  %v4777 = vpop.f32.mrf.mxu0
  %v4778 = vadd.f32 %v4245, %v4777
  %v4779 = vpop.f32.mrf.mxu0
  %v4780 = vadd.f32 %v4247, %v4779
  %4781 = vmatmul.bf16.gmra.mxu0 %v4691
  %v4782 = vpop.f32.mrf.mxu0
  %v4783 = vadd.f32 %v4250, %v4782
  %v4784 = vpop.f32.mrf.mxu0
  %v4785 = vadd.f32 %v4252, %v4784
  %4786 = vmatmul.bf16.gmra.mxu0 %v4694
  %v4787 = vpop.f32.mrf.mxu0
  %v4788 = vadd.f32 %v4255, %v4787
  %v4789 = vpop.f32.mrf.mxu0
  %v4790 = vadd.f32 %v4257, %v4789
  %4791 = vdwg.mxu0
  %4792 = vmatpush.bf16.msra.mxu0 0
  %4793 = vmatpush.bf16.msra.mxu0 0
  %4794 = vmatpush.bf16.msra.mxu0 0
  %4795 = vmatpush.bf16.msra.mxu0 %v4707
  %4796 = vmatpush.bf16.msra.mxu0 %v4634
  %4797 = vmatpush.bf16.msra.mxu0 %v4626
  %4798 = vmatpush.bf16.msra.mxu0 %v4618
  %4799 = vmatpush.bf16.msra.mxu0 %v4610
  %4800 = vmatmul.bf16.gmra.mxu0 %v4682
  %v4801 = vpop.f32.mrf.mxu0
  %v4802 = vadd.f32 %v4269, %v4801
  %v4803 = vpop.f32.mrf.mxu0
  %v4804 = vadd.f32 %v4271, %v4803
  %4805 = vmatmul.bf16.gmra.mxu0 %v4685
  %v4806 = vpop.f32.mrf.mxu0
  %v4807 = vadd.f32 %v4274, %v4806
  %v4808 = vpop.f32.mrf.mxu0
  %v4809 = vadd.f32 %v4276, %v4808
  %4810 = vmatmul.bf16.gmra.mxu0 %v4688
  %v4811 = vpop.f32.mrf.mxu0
  %v4812 = vadd.f32 %v4279, %v4811
  %v4813 = vpop.f32.mrf.mxu0
  %v4814 = vadd.f32 %v4281, %v4813
  %4815 = vmatmul.bf16.gmra.mxu0 %v4691
  %v4816 = vpop.f32.mrf.mxu0
  %v4817 = vadd.f32 %v4284, %v4816
  %v4818 = vpop.f32.mrf.mxu0
  %v4819 = vadd.f32 %v4286, %v4818
  %4820 = vmatmul.bf16.gmra.mxu0 %v4694
  %v4821 = vpop.f32.mrf.mxu0
  %v4822 = vadd.f32 %v4289, %v4821
  %v4823 = vpop.f32.mrf.mxu0
  %v4824 = vadd.f32 %v4291, %v4823
  %4825 = vdwg.mxu0
  %4826 = vmatpush.bf16.msra.mxu0 0
  %4827 = vmatpush.bf16.msra.mxu0 0
  %4828 = vmatpush.bf16.msra.mxu0 0
  %4829 = vmatpush.bf16.msra.mxu0 %v4710
  %4830 = vmatpush.bf16.msra.mxu0 %v4635
  %4831 = vmatpush.bf16.msra.mxu0 %v4627
  %4832 = vmatpush.bf16.msra.mxu0 %v4619
  %4833 = vmatpush.bf16.msra.mxu0 %v4611
  %4834 = vmatmul.bf16.gmra.mxu0 %v4682
  %v4835 = vpop.f32.mrf.mxu0
  %v4836 = vadd.f32 %v4303, %v4835
  %v4837 = vpop.f32.mrf.mxu0
  %v4838 = vadd.f32 %v4305, %v4837
  %4839 = vmatmul.bf16.gmra.mxu0 %v4685
  %v4840 = vpop.f32.mrf.mxu0
  %v4841 = vadd.f32 %v4308, %v4840
  %v4842 = vpop.f32.mrf.mxu0
  %v4843 = vadd.f32 %v4310, %v4842
  %4844 = vmatmul.bf16.gmra.mxu0 %v4688
  %v4845 = vpop.f32.mrf.mxu0
  %v4846 = vadd.f32 %v4313, %v4845
  %v4847 = vpop.f32.mrf.mxu0
  %v4848 = vadd.f32 %v4315, %v4847
  %4849 = vmatmul.bf16.gmra.mxu0 %v4691
  %v4850 = vpop.f32.mrf.mxu0
  %v4851 = vadd.f32 %v4318, %v4850
  %v4852 = vpop.f32.mrf.mxu0
  %v4853 = vadd.f32 %v4320, %v4852
  %4854 = vmatmul.bf16.gmra.mxu0 %v4694
  %v4855 = vpop.f32.mrf.mxu0
  %v4856 = vadd.f32 %v4323, %v4855
  %v4857 = vpop.f32.mrf.mxu0
  %v4858 = vadd.f32 %v4325, %v4857
  %4859 = vdwg.mxu0
  %4860 = vmatpush.bf16.msra.mxu0 0
  %4861 = vmatpush.bf16.msra.mxu0 0
  %4862 = vmatpush.bf16.msra.mxu0 0
  %4863 = vmatpush.bf16.msra.mxu0 %v4713
  %4864 = vmatpush.bf16.msra.mxu0 %v4636
  %4865 = vmatpush.bf16.msra.mxu0 %v4628
  %4866 = vmatpush.bf16.msra.mxu0 %v4620
  %4867 = vmatpush.bf16.msra.mxu0 %v4612
  %4868 = vmatmul.bf16.gmra.mxu0 %v4682
  %v4869 = vpop.f32.mrf.mxu0
  %v4870 = vadd.f32 %v4337, %v4869
  %v4871 = vpop.f32.mrf.mxu0
  %v4872 = vadd.f32 %v4339, %v4871
  %4873 = vmatmul.bf16.gmra.mxu0 %v4685
  %v4874 = vpop.f32.mrf.mxu0
  %v4875 = vadd.f32 %v4342, %v4874
  %v4876 = vpop.f32.mrf.mxu0
  %v4877 = vadd.f32 %v4344, %v4876
  %4878 = vmatmul.bf16.gmra.mxu0 %v4688
  %v4879 = vpop.f32.mrf.mxu0
  %v4880 = vadd.f32 %v4347, %v4879
  %v4881 = vpop.f32.mrf.mxu0
  %v4882 = vadd.f32 %v4349, %v4881
  %4883 = vmatmul.bf16.gmra.mxu0 %v4691
  %v4884 = vpop.f32.mrf.mxu0
  %v4885 = vadd.f32 %v4352, %v4884
  %v4886 = vpop.f32.mrf.mxu0
  %v4887 = vadd.f32 %v4354, %v4886
  %4888 = vmatmul.bf16.gmra.mxu0 %v4694
  %v4889 = vpop.f32.mrf.mxu0
  %v4890 = vadd.f32 %v4357, %v4889
  %v4891 = vpop.f32.mrf.mxu0
  %v4892 = vadd.f32 %v4359, %v4891
  %4893 = vdwg.mxu0
  %4894 = vmatpush.bf16.msra.mxu0 0
  %4895 = vmatpush.bf16.msra.mxu0 0
  %4896 = vmatpush.bf16.msra.mxu0 0
  %4897 = vmatpush.bf16.msra.mxu0 %v4716
  %4898 = vmatpush.bf16.msra.mxu0 %v4637
  %4899 = vmatpush.bf16.msra.mxu0 %v4629
  %4900 = vmatpush.bf16.msra.mxu0 %v4621
  %4901 = vmatpush.bf16.msra.mxu0 %v4613
  %4902 = vmatmul.bf16.gmra.mxu0 %v4682
  %v4903 = vpop.f32.mrf.mxu0
  %v4904 = vadd.f32 %v4371, %v4903
  %v4905 = vpop.f32.mrf.mxu0
  %v4906 = vadd.f32 %v4373, %v4905
  %4907 = vmatmul.bf16.gmra.mxu0 %v4685
  %v4908 = vpop.f32.mrf.mxu0
  %v4909 = vadd.f32 %v4376, %v4908
  %v4910 = vpop.f32.mrf.mxu0
  %v4911 = vadd.f32 %v4378, %v4910
  %4912 = vmatmul.bf16.gmra.mxu0 %v4688
  %v4913 = vpop.f32.mrf.mxu0
  %v4914 = vadd.f32 %v4381, %v4913
  %v4915 = vpop.f32.mrf.mxu0
  %v4916 = vadd.f32 %v4383, %v4915
  %4917 = vmatmul.bf16.gmra.mxu0 %v4691
  %v4918 = vpop.f32.mrf.mxu0
  %v4919 = vadd.f32 %v4386, %v4918
  %v4920 = vpop.f32.mrf.mxu0
  %v4921 = vadd.f32 %v4388, %v4920
  %4922 = vmatmul.bf16.gmra.mxu0 %v4694
  %v4923 = vpop.f32.mrf.mxu0
  %v4924 = vadd.f32 %v4391, %v4923
  %v4925 = vpop.f32.mrf.mxu0
  %v4926 = vadd.f32 %v4393, %v4925
  %4927 = vdwg.mxu0
  %4928 = vmatpush.bf16.msra.mxu0 0
  %4929 = vmatpush.bf16.msra.mxu0 0
  %4930 = vmatpush.bf16.msra.mxu0 0
  %4931 = vmatpush.bf16.msra.mxu0 %v4719
  %4932 = vmatpush.bf16.msra.mxu0 %v4638
  %4933 = vmatpush.bf16.msra.mxu0 %v4630
  %4934 = vmatpush.bf16.msra.mxu0 %v4622
  %4935 = vmatpush.bf16.msra.mxu0 %v4614
  %4936 = vmatmul.bf16.gmra.mxu0 %v4682
  %v4937 = vpop.f32.mrf.mxu0
  %v4938 = vadd.f32 %v4405, %v4937
  %v4939 = vpop.f32.mrf.mxu0
  %v4940 = vadd.f32 %v4407, %v4939
  %4941 = vmatmul.bf16.gmra.mxu0 %v4685
  %v4942 = vpop.f32.mrf.mxu0
  %v4943 = vadd.f32 %v4410, %v4942
  %v4944 = vpop.f32.mrf.mxu0
  %v4945 = vadd.f32 %v4412, %v4944
  %4946 = vmatmul.bf16.gmra.mxu0 %v4688
  %v4947 = vpop.f32.mrf.mxu0
  %v4948 = vadd.f32 %v4415, %v4947
  %v4949 = vpop.f32.mrf.mxu0
  %v4950 = vadd.f32 %v4417, %v4949
  %4951 = vmatmul.bf16.gmra.mxu0 %v4691
  %v4952 = vpop.f32.mrf.mxu0
  %v4953 = vadd.f32 %v4420, %v4952
  %v4954 = vpop.f32.mrf.mxu0
  %v4955 = vadd.f32 %v4422, %v4954
  %4956 = vmatmul.bf16.gmra.mxu0 %v4694
  %v4957 = vpop.f32.mrf.mxu0
  %v4958 = vadd.f32 %v4425, %v4957
  %v4959 = vpop.f32.mrf.mxu0
  %v4960 = vadd.f32 %v4427, %v4959
  %4961 = vdwg.mxu0
  %4962 = vmatpush.bf16.msra.mxu0 0
  %4963 = vmatpush.bf16.msra.mxu0 0
  %4964 = vmatpush.bf16.msra.mxu0 0
  %4965 = vmatpush.bf16.msra.mxu0 %v4722
  %4966 = vmatpush.bf16.msra.mxu0 %v4639
  %4967 = vmatpush.bf16.msra.mxu0 %v4631
  %4968 = vmatpush.bf16.msra.mxu0 %v4623
  %4969 = vmatpush.bf16.msra.mxu0 %v4615
  %4970 = vmatmul.bf16.gmra.mxu0 %v4682
  %v4971 = vpop.f32.mrf.mxu0
  %v4972 = vadd.f32 %v4439, %v4971
  %v4973 = vpop.f32.mrf.mxu0
  %v4974 = vadd.f32 %v4441, %v4973
  %4975 = vmatmul.bf16.gmra.mxu0 %v4685
  %v4976 = vpop.f32.mrf.mxu0
  %v4977 = vadd.f32 %v4444, %v4976
  %v4978 = vpop.f32.mrf.mxu0
  %v4979 = vadd.f32 %v4446, %v4978
  %4980 = vmatmul.bf16.gmra.mxu0 %v4688
  %v4981 = vpop.f32.mrf.mxu0
  %v4982 = vadd.f32 %v4449, %v4981
  %v4983 = vpop.f32.mrf.mxu0
  %v4984 = vadd.f32 %v4451, %v4983
  %4985 = vmatmul.bf16.gmra.mxu0 %v4691
  %v4986 = vpop.f32.mrf.mxu0
  %v4987 = vadd.f32 %v4454, %v4986
  %v4988 = vpop.f32.mrf.mxu0
  %v4989 = vadd.f32 %v4456, %v4988
  %4990 = vmatmul.bf16.gmra.mxu0 %v4694
  %v4991 = vpop.f32.mrf.mxu0
  %v4992 = vadd.f32 %v4459, %v4991
  %v4993 = vpop.f32.mrf.mxu0
  %v4994 = vadd.f32 %v4461, %v4993
  %4995 = vdwg.mxu0
  %v4996 = vadd.f32 %v4734, %v4018
  %v4997 = vadd.f32 %v4768, %v4018
  %v4998 = vadd.f32 %v4802, %v4018
  %v4999 = vadd.f32 %v4836, %v4018
  %v5000 = vadd.f32 %v4870, %v4018
  %v5001 = vadd.f32 %v4904, %v4018
  %v5002 = vadd.f32 %v4938, %v4018
  %v5003 = vadd.f32 %v4972, %v4018
  %v5004 = vadd.f32 %v4736, %v4023
  %v5005 = vadd.f32 %v4770, %v4023
  %v5006 = vadd.f32 %v4804, %v4023
  %v5007 = vadd.f32 %v4838, %v4023
  %v5008 = vadd.f32 %v4872, %v4023
  %v5009 = vadd.f32 %v4906, %v4023
  %v5010 = vadd.f32 %v4940, %v4023
  %v5011 = vadd.f32 %v4974, %v4023
  %v5012 = vadd.f32 %v4739, %v4028
  %v5013 = vadd.f32 %v4773, %v4028
  %v5014 = vadd.f32 %v4807, %v4028
  %v5015 = vadd.f32 %v4841, %v4028
  %v5016 = vadd.f32 %v4875, %v4028
  %v5017 = vadd.f32 %v4909, %v4028
  %v5018 = vadd.f32 %v4943, %v4028
  %v5019 = vadd.f32 %v4977, %v4028
  %v5020 = vadd.f32 %v4741, %v4033
  %v5021 = vadd.f32 %v4775, %v4033
  %v5022 = vadd.f32 %v4809, %v4033
  %v5023 = vadd.f32 %v4843, %v4033
  %v5024 = vadd.f32 %v4877, %v4033
  %v5025 = vadd.f32 %v4911, %v4033
  %v5026 = vadd.f32 %v4945, %v4033
  %v5027 = vadd.f32 %v4979, %v4033
  %v5028 = vadd.f32 %v4744, %v4038
  %v5029 = vadd.f32 %v4778, %v4038
  %v5030 = vadd.f32 %v4812, %v4038
  %v5031 = vadd.f32 %v4846, %v4038
  %v5032 = vadd.f32 %v4880, %v4038
  %v5033 = vadd.f32 %v4914, %v4038
  %v5034 = vadd.f32 %v4948, %v4038
  %v5035 = vadd.f32 %v4982, %v4038
  %v5036 = vadd.f32 %v4746, %v4043
  %v5037 = vadd.f32 %v4780, %v4043
  %v5038 = vadd.f32 %v4814, %v4043
  %v5039 = vadd.f32 %v4848, %v4043
  %v5040 = vadd.f32 %v4882, %v4043
  %v5041 = vadd.f32 %v4916, %v4043
  %v5042 = vadd.f32 %v4950, %v4043
  %v5043 = vadd.f32 %v4984, %v4043
  %v5044 = vadd.f32 %v4749, %v4048
  %v5045 = vadd.f32 %v4783, %v4048
  %v5046 = vadd.f32 %v4817, %v4048
  %v5047 = vadd.f32 %v4851, %v4048
  %v5048 = vadd.f32 %v4885, %v4048
  %v5049 = vadd.f32 %v4919, %v4048
  %v5050 = vadd.f32 %v4953, %v4048
  %v5051 = vadd.f32 %v4987, %v4048
  %v5052 = vadd.f32 %v4751, %v4053
  %v5053 = vadd.f32 %v4785, %v4053
  %v5054 = vadd.f32 %v4819, %v4053
  %v5055 = vadd.f32 %v4853, %v4053
  %v5056 = vadd.f32 %v4887, %v4053
  %v5057 = vadd.f32 %v4921, %v4053
  %v5058 = vadd.f32 %v4955, %v4053
  %v5059 = vadd.f32 %v4989, %v4053
  %v5060 = vadd.f32 %v4754, %v4058
  %v5061 = vadd.f32 %v4788, %v4058
  %v5062 = vadd.f32 %v4822, %v4058
  %v5063 = vadd.f32 %v4856, %v4058
  %v5064 = vadd.f32 %v4890, %v4058
  %v5065 = vadd.f32 %v4924, %v4058
  %v5066 = vadd.f32 %v4958, %v4058
  %v5067 = vadd.f32 %v4992, %v4058
  %v5068 = vadd.f32 %v4756, %v4063
  %v5069 = vadd.f32 %v4790, %v4063
  %v5070 = vadd.f32 %v4824, %v4063
  %v5071 = vadd.f32 %v4858, %v4063
  %v5072 = vadd.f32 %v4892, %v4063
  %v5073 = vadd.f32 %v4926, %v4063
  %v5074 = vadd.f32 %v4960, %v4063
  %v5075 = vadd.f32 %v4994, %v4063
  %5076 = vst [vmem:[%s7] sm:$0xff] %v4996
  %5077 = vst [vmem:[%s7 + $0x8] sm:$0xff] %v4997
  %5078 = vst [vmem:[%s7 + $0x10] sm:$0xff] %v4998
  %5079 = vst [vmem:[%s7 + $0x18] sm:$0xff] %v4999
  %5080 = vst [vmem:[%s7 + $0x20] sm:$0xff] %v5000
  %5081 = vst [vmem:[%s7 + $0x28] sm:$0xff] %v5001
  %5082 = vst [vmem:[%s7 + $0x30] sm:$0xff] %v5002
  %5083 = vst [vmem:[%s7 + $0x38] sm:$0xff] %v5003
  %5084 = vst [vmem:[%s7 + $0x40] sm:$0xff] %v5004
  %5085 = vst [vmem:[%s7 + $0x48] sm:$0xff] %v5005
  %5086 = vst [vmem:[%s7 + $0x50] sm:$0xff] %v5006
  %5087 = vst [vmem:[%s7 + $0x58] sm:$0xff] %v5007
  %5088 = vst [vmem:[%s7 + $0x60] sm:$0xff] %v5008
  %5089 = vst [vmem:[%s7 + $0x68] sm:$0xff] %v5009
  %5090 = vst [vmem:[%s7 + $0x70] sm:$0xff] %v5010
  %5091 = vst [vmem:[%s7 + $0x78] sm:$0xff] %v5011
  %5092 = vst [vmem:[%s7 + $0x80] sm:$0xff] %v5012
  %5093 = vst [vmem:[%s7 + $0x88] sm:$0xff] %v5013
  %5094 = vst [vmem:[%s7 + $0x90] sm:$0xff] %v5014
  %5095 = vst [vmem:[%s7 + $0x98] sm:$0xff] %v5015
  %5096 = vst [vmem:[%s7 + $0xa0] sm:$0xff] %v5016
  %5097 = vst [vmem:[%s7 + $0xa8] sm:$0xff] %v5017
  %5098 = vst [vmem:[%s7 + $0xb0] sm:$0xff] %v5018
  %5099 = vst [vmem:[%s7 + $0xb8] sm:$0xff] %v5019
  %5100 = vst [vmem:[%s7 + $0xc0] sm:$0xff] %v5020
  %5101 = vst [vmem:[%s7 + $0xc8] sm:$0xff] %v5021
  %5102 = vst [vmem:[%s7 + $0xd0] sm:$0xff] %v5022
  %5103 = vst [vmem:[%s7 + $0xd8] sm:$0xff] %v5023
  %5104 = vst [vmem:[%s7 + $0xe0] sm:$0xff] %v5024
  %5105 = vst [vmem:[%s7 + $0xe8] sm:$0xff] %v5025
  %5106 = vst [vmem:[%s7 + $0xf0] sm:$0xff] %v5026
  %5107 = vst [vmem:[%s7 + $0xf8] sm:$0xff] %v5027
  %5108 = vst [vmem:[%s7 + $0x100] sm:$0xff] %v5028
  %5109 = vst [vmem:[%s7 + $0x108] sm:$0xff] %v5029
  %5110 = vst [vmem:[%s7 + $0x110] sm:$0xff] %v5030
  %5111 = vst [vmem:[%s7 + $0x118] sm:$0xff] %v5031
  %5112 = vst [vmem:[%s7 + $0x120] sm:$0xff] %v5032
  %5113 = vst [vmem:[%s7 + $0x128] sm:$0xff] %v5033
  %5114 = vst [vmem:[%s7 + $0x130] sm:$0xff] %v5034
  %5115 = vst [vmem:[%s7 + $0x138] sm:$0xff] %v5035
  %5116 = vst [vmem:[%s7 + $0x140] sm:$0xff] %v5036
  %5117 = vst [vmem:[%s7 + $0x148] sm:$0xff] %v5037
  %5118 = vst [vmem:[%s7 + $0x150] sm:$0xff] %v5038
  %5119 = vst [vmem:[%s7 + $0x158] sm:$0xff] %v5039
  %5120 = vst [vmem:[%s7 + $0x160] sm:$0xff] %v5040
  %5121 = vst [vmem:[%s7 + $0x168] sm:$0xff] %v5041
  %5122 = vst [vmem:[%s7 + $0x170] sm:$0xff] %v5042
  %5123 = vst [vmem:[%s7 + $0x178] sm:$0xff] %v5043
  %5124 = vst [vmem:[%s7 + $0x180] sm:$0xff] %v5044
  %5125 = vst [vmem:[%s7 + $0x188] sm:$0xff] %v5045
  %5126 = vst [vmem:[%s7 + $0x190] sm:$0xff] %v5046
  %5127 = vst [vmem:[%s7 + $0x198] sm:$0xff] %v5047
  %5128 = vst [vmem:[%s7 + $0x1a0] sm:$0xff] %v5048
  %5129 = vst [vmem:[%s7 + $0x1a8] sm:$0xff] %v5049
  %5130 = vst [vmem:[%s7 + $0x1b0] sm:$0xff] %v5050
  %5131 = vst [vmem:[%s7 + $0x1b8] sm:$0xff] %v5051
  %5132 = vst [vmem:[%s7 + $0x1c0] sm:$0xff] %v5052
  %5133 = vst [vmem:[%s7 + $0x1c8] sm:$0xff] %v5053
  %5134 = vst [vmem:[%s7 + $0x1d0] sm:$0xff] %v5054
  %5135 = vst [vmem:[%s7 + $0x1d8] sm:$0xff] %v5055
  %5136 = vst [vmem:[%s7 + $0x1e0] sm:$0xff] %v5056
  %5137 = vst [vmem:[%s7 + $0x1e8] sm:$0xff] %v5057
  %5138 = vst [vmem:[%s7 + $0x1f0] sm:$0xff] %v5058
  %5139 = vst [vmem:[%s7 + $0x1f8] sm:$0xff] %v5059
  %5140 = vst [vmem:[%s7 + $0x200] sm:$0xff] %v5060
  %5141 = vst [vmem:[%s7 + $0x208] sm:$0xff] %v5061
  %5142 = vst [vmem:[%s7 + $0x210] sm:$0xff] %v5062
  %5143 = vst [vmem:[%s7 + $0x218] sm:$0xff] %v5063
  %5144 = vst [vmem:[%s7 + $0x220] sm:$0xff] %v5064
  %5145 = vst [vmem:[%s7 + $0x228] sm:$0xff] %v5065
  %5146 = vst [vmem:[%s7 + $0x230] sm:$0xff] %v5066
  %5147 = vst [vmem:[%s7 + $0x238] sm:$0xff] %v5067
  %5148 = vst [vmem:[%s7 + $0x240] sm:$0x1f] %v5068
  %5149 = vst [vmem:[%s7 + $0x248] sm:$0x1f] %v5069
  %5150 = vst [vmem:[%s7 + $0x250] sm:$0x1f] %v5070
  %5151 = vst [vmem:[%s7 + $0x258] sm:$0x1f] %v5071
  %5152 = vst [vmem:[%s7 + $0x260] sm:$0x1f] %v5072
  %5153 = vst [vmem:[%s7 + $0x268] sm:$0x1f] %v5073
  %5154 = vst [vmem:[%s7 + $0x270] sm:$0x1f] %v5074
  %5155 = vst [vmem:[%s7 + $0x278] sm:$0x1f] %v5075
  %s5156 = scalar_lea.vmem %s0, 320
  %v5157 = vld [vmem:[%s5156] sm:$0xff]
  %v5158 = vld [vmem:[%s5156 + $0x8] sm:$0xff]
  %v5159 = vld [vmem:[%s5156 + $0x10] sm:$0xff]
  %v5160 = vld [vmem:[%s5156 + $0x18] sm:$0xff]
  %v5161 = vld [vmem:[%s5156 + $0x20] sm:$0xff]
  %v5162 = vld [vmem:[%s5156 + $0x28] sm:$0xff]
  %v5163 = vld [vmem:[%s5156 + $0x30] sm:$0xff]
  %v5164 = vld [vmem:[%s5156 + $0x38] sm:$0xff]
  %v5165 = vld [vmem:[%s5156 + $0x40] sm:$0xff]
  %v5166 = vld [vmem:[%s5156 + $0x48] sm:$0xff]
  %v5167 = vld [vmem:[%s5156 + $0x50] sm:$0xff]
  %v5168 = vld [vmem:[%s5156 + $0x58] sm:$0xff]
  %v5169 = vld [vmem:[%s5156 + $0x60] sm:$0xff]
  %v5170 = vld [vmem:[%s5156 + $0x68] sm:$0xff]
  %v5171 = vld [vmem:[%s5156 + $0x70] sm:$0xff]
  %v5172 = vld [vmem:[%s5156 + $0x78] sm:$0xff]
  %v5173 = vld [vmem:[%s5156 + $0x80] sm:$0xff]
  %v5174 = vld [vmem:[%s5156 + $0x88] sm:$0xff]
  %v5175 = vld [vmem:[%s5156 + $0x90] sm:$0xff]
  %v5176 = vld [vmem:[%s5156 + $0x98] sm:$0xff]
  %v5177 = vld [vmem:[%s5156 + $0xa0] sm:$0xff]
  %v5178 = vld [vmem:[%s5156 + $0xa8] sm:$0xff]
  %v5179 = vld [vmem:[%s5156 + $0xb0] sm:$0xff]
  %v5180 = vld [vmem:[%s5156 + $0xb8] sm:$0xff]
  %v5181 = vld [vmem:[%s5156 + $0xc0] sm:$0xff]
  %v5182 = vld [vmem:[%s5156 + $0xc8] sm:$0xff]
  %v5183 = vld [vmem:[%s5156 + $0xd0] sm:$0xff]
  %v5184 = vld [vmem:[%s5156 + $0xd8] sm:$0xff]
  %v5185 = vld [vmem:[%s5156 + $0xe0] sm:$0xff]
  %v5186 = vld [vmem:[%s5156 + $0xe8] sm:$0xff]
  %v5187 = vld [vmem:[%s5156 + $0xf0] sm:$0xff]
  %v5188 = vld [vmem:[%s5156 + $0xf8] sm:$0xff]
  %v5189 = vld [vmem:[%s5156 + $0x100] sm:$0xff]
  %v5190 = vld [vmem:[%s5156 + $0x108] sm:$0xff]
  %v5191 = vld [vmem:[%s5156 + $0x110] sm:$0xff]
  %v5192 = vld [vmem:[%s5156 + $0x118] sm:$0xff]
  %v5193 = vld [vmem:[%s5156 + $0x120] sm:$0x77]
  %v5194 = vld [vmem:[%s5156 + $0x128] sm:$0x77]
  %v5195 = vld [vmem:[%s5156 + $0x130] sm:$0x77]
  %v5196 = vld [vmem:[%s5156 + $0x138] sm:$0x77]
  %v5197 = vrot.slane %v4142, 2
  %v5198 = vrot.slane %v4143, 2
  %v5199 = vrot.slane %v4144, 2
  %v5200 = vrot.slane %v4145, 2
  %v5201 = vrot.slane %v4146, 2
  %v5202 = vrot.slane %v4147, 2
  %v5203 = vrot.slane %v4148, 2
  %v5204 = vrot.slane %v4149, 2
  %v5206 = vsel %vm4166, %v5197, 0
  %v5209 = vsel %vm4166, %v5198, 0
  %v5212 = vsel %vm4166, %v5199, 0
  %v5215 = vsel %vm4166, %v5200, 0
  %v5218 = vsel %vm4166, %v5201, 0
  %v5221 = vsel %vm4166, %v5202, 0
  %v5224 = vsel %vm4166, %v5203, 0
  %v5227 = vsel %vm4166, %v5204, 0
  %5229 = vmatpush.bf16.msra.mxu0 0
  %5230 = vmatpush.bf16.msra.mxu0 0
  %5231 = vmatpush.bf16.msra.mxu0 0
  %5232 = vmatpush.bf16.msra.mxu0 0
  %5233 = vmatpush.bf16.msra.mxu0 0
  %5234 = vmatpush.bf16.msra.mxu0 0
  %5235 = vmatpush.bf16.msra.mxu0 0
  %5236 = vmatpush.bf16.msra.mxu0 %v5206
  %5237 = vmatmul.bf16.gmra.mxu0 %v4152
  %v5238 = vpop.f32.mrf.mxu0
  %v5239 = vadd.f32 0.0, %v5238
  %v5240 = vpop.f32.mrf.mxu0
  %v5241 = vadd.f32 0.0, %v5240
  %5242 = vmatmul.bf16.gmra.mxu0 %v4155
  %v5243 = vpop.f32.mrf.mxu0
  %v5244 = vadd.f32 0.0, %v5243
  %v5245 = vpop.f32.mrf.mxu0
  %v5246 = vadd.f32 0.0, %v5245
  %5247 = vmatmul.bf16.gmra.mxu0 %v4158
  %v5248 = vpop.f32.mrf.mxu0
  %v5249 = vadd.f32 0.0, %v5248
  %v5250 = vpop.f32.mrf.mxu0
  %v5251 = vadd.f32 0.0, %v5250
  %5252 = vmatmul.bf16.gmra.mxu0 %v4161
  %v5253 = vpop.f32.mrf.mxu0
  %v5254 = vadd.f32 0.0, %v5253
  %v5255 = vpop.f32.mrf.mxu0
  %v5256 = vadd.f32 0.0, %v5255
  %5257 = vmatmul.bf16.gmra.mxu0 %v4164
  %v5258 = vpop.f32.mrf.mxu0
  %v5259 = vadd.f32 0.0, %v5258
  %v5260 = vpop.f32.mrf.mxu0
  %v5261 = vadd.f32 0.0, %v5260
  %5262 = vdwg.mxu0
  %5263 = vmatpush.bf16.msra.mxu0 0
  %5264 = vmatpush.bf16.msra.mxu0 0
  %5265 = vmatpush.bf16.msra.mxu0 0
  %5266 = vmatpush.bf16.msra.mxu0 0
  %5267 = vmatpush.bf16.msra.mxu0 0
  %5268 = vmatpush.bf16.msra.mxu0 0
  %5269 = vmatpush.bf16.msra.mxu0 0
  %5270 = vmatpush.bf16.msra.mxu0 %v5209
  %5271 = vmatmul.bf16.gmra.mxu0 %v4152
  %v5272 = vpop.f32.mrf.mxu0
  %v5273 = vadd.f32 0.0, %v5272
  %v5274 = vpop.f32.mrf.mxu0
  %v5275 = vadd.f32 0.0, %v5274
  %5276 = vmatmul.bf16.gmra.mxu0 %v4155
  %v5277 = vpop.f32.mrf.mxu0
  %v5278 = vadd.f32 0.0, %v5277
  %v5279 = vpop.f32.mrf.mxu0
  %v5280 = vadd.f32 0.0, %v5279
  %5281 = vmatmul.bf16.gmra.mxu0 %v4158
  %v5282 = vpop.f32.mrf.mxu0
  %v5283 = vadd.f32 0.0, %v5282
  %v5284 = vpop.f32.mrf.mxu0
  %v5285 = vadd.f32 0.0, %v5284
  %5286 = vmatmul.bf16.gmra.mxu0 %v4161
  %v5287 = vpop.f32.mrf.mxu0
  %v5288 = vadd.f32 0.0, %v5287
  %v5289 = vpop.f32.mrf.mxu0
  %v5290 = vadd.f32 0.0, %v5289
  %5291 = vmatmul.bf16.gmra.mxu0 %v4164
  %v5292 = vpop.f32.mrf.mxu0
  %v5293 = vadd.f32 0.0, %v5292
  %v5294 = vpop.f32.mrf.mxu0
  %v5295 = vadd.f32 0.0, %v5294
  %5296 = vdwg.mxu0
  %5297 = vmatpush.bf16.msra.mxu0 0
  %5298 = vmatpush.bf16.msra.mxu0 0
  %5299 = vmatpush.bf16.msra.mxu0 0
  %5300 = vmatpush.bf16.msra.mxu0 0
  %5301 = vmatpush.bf16.msra.mxu0 0
  %5302 = vmatpush.bf16.msra.mxu0 0
  %5303 = vmatpush.bf16.msra.mxu0 0
  %5304 = vmatpush.bf16.msra.mxu0 %v5212
  %5305 = vmatmul.bf16.gmra.mxu0 %v4152
  %v5306 = vpop.f32.mrf.mxu0
  %v5307 = vadd.f32 0.0, %v5306
  %v5308 = vpop.f32.mrf.mxu0
  %v5309 = vadd.f32 0.0, %v5308
  %5310 = vmatmul.bf16.gmra.mxu0 %v4155
  %v5311 = vpop.f32.mrf.mxu0
  %v5312 = vadd.f32 0.0, %v5311
  %v5313 = vpop.f32.mrf.mxu0
  %v5314 = vadd.f32 0.0, %v5313
  %5315 = vmatmul.bf16.gmra.mxu0 %v4158
  %v5316 = vpop.f32.mrf.mxu0
  %v5317 = vadd.f32 0.0, %v5316
  %v5318 = vpop.f32.mrf.mxu0
  %v5319 = vadd.f32 0.0, %v5318
  %5320 = vmatmul.bf16.gmra.mxu0 %v4161
  %v5321 = vpop.f32.mrf.mxu0
  %v5322 = vadd.f32 0.0, %v5321
  %v5323 = vpop.f32.mrf.mxu0
  %v5324 = vadd.f32 0.0, %v5323
  %5325 = vmatmul.bf16.gmra.mxu0 %v4164
  %v5326 = vpop.f32.mrf.mxu0
  %v5327 = vadd.f32 0.0, %v5326
  %v5328 = vpop.f32.mrf.mxu0
  %v5329 = vadd.f32 0.0, %v5328
  %5330 = vdwg.mxu0
  %5331 = vmatpush.bf16.msra.mxu0 0
  %5332 = vmatpush.bf16.msra.mxu0 0
  %5333 = vmatpush.bf16.msra.mxu0 0
  %5334 = vmatpush.bf16.msra.mxu0 0
  %5335 = vmatpush.bf16.msra.mxu0 0
  %5336 = vmatpush.bf16.msra.mxu0 0
  %5337 = vmatpush.bf16.msra.mxu0 0
  %5338 = vmatpush.bf16.msra.mxu0 %v5215
  %5339 = vmatmul.bf16.gmra.mxu0 %v4152
  %v5340 = vpop.f32.mrf.mxu0
  %v5341 = vadd.f32 0.0, %v5340
  %v5342 = vpop.f32.mrf.mxu0
  %v5343 = vadd.f32 0.0, %v5342
  %5344 = vmatmul.bf16.gmra.mxu0 %v4155
  %v5345 = vpop.f32.mrf.mxu0
  %v5346 = vadd.f32 0.0, %v5345
  %v5347 = vpop.f32.mrf.mxu0
  %v5348 = vadd.f32 0.0, %v5347
  %5349 = vmatmul.bf16.gmra.mxu0 %v4158
  %v5350 = vpop.f32.mrf.mxu0
  %v5351 = vadd.f32 0.0, %v5350
  %v5352 = vpop.f32.mrf.mxu0
  %v5353 = vadd.f32 0.0, %v5352
  %5354 = vmatmul.bf16.gmra.mxu0 %v4161
  %v5355 = vpop.f32.mrf.mxu0
  %v5356 = vadd.f32 0.0, %v5355
  %v5357 = vpop.f32.mrf.mxu0
  %v5358 = vadd.f32 0.0, %v5357
  %5359 = vmatmul.bf16.gmra.mxu0 %v4164
  %v5360 = vpop.f32.mrf.mxu0
  %v5361 = vadd.f32 0.0, %v5360
  %v5362 = vpop.f32.mrf.mxu0
  %v5363 = vadd.f32 0.0, %v5362
  %5364 = vdwg.mxu0
  %5365 = vmatpush.bf16.msra.mxu0 0
  %5366 = vmatpush.bf16.msra.mxu0 0
  %5367 = vmatpush.bf16.msra.mxu0 0
  %5368 = vmatpush.bf16.msra.mxu0 0
  %5369 = vmatpush.bf16.msra.mxu0 0
  %5370 = vmatpush.bf16.msra.mxu0 0
  %5371 = vmatpush.bf16.msra.mxu0 0
  %5372 = vmatpush.bf16.msra.mxu0 %v5218
  %5373 = vmatmul.bf16.gmra.mxu0 %v4152
  %v5374 = vpop.f32.mrf.mxu0
  %v5375 = vadd.f32 0.0, %v5374
  %v5376 = vpop.f32.mrf.mxu0
  %v5377 = vadd.f32 0.0, %v5376
  %5378 = vmatmul.bf16.gmra.mxu0 %v4155
  %v5379 = vpop.f32.mrf.mxu0
  %v5380 = vadd.f32 0.0, %v5379
  %v5381 = vpop.f32.mrf.mxu0
  %v5382 = vadd.f32 0.0, %v5381
  %5383 = vmatmul.bf16.gmra.mxu0 %v4158
  %v5384 = vpop.f32.mrf.mxu0
  %v5385 = vadd.f32 0.0, %v5384
  %v5386 = vpop.f32.mrf.mxu0
  %v5387 = vadd.f32 0.0, %v5386
  %5388 = vmatmul.bf16.gmra.mxu0 %v4161
  %v5389 = vpop.f32.mrf.mxu0
  %v5390 = vadd.f32 0.0, %v5389
  %v5391 = vpop.f32.mrf.mxu0
  %v5392 = vadd.f32 0.0, %v5391
  %5393 = vmatmul.bf16.gmra.mxu0 %v4164
  %v5394 = vpop.f32.mrf.mxu0
  %v5395 = vadd.f32 0.0, %v5394
  %v5396 = vpop.f32.mrf.mxu0
  %v5397 = vadd.f32 0.0, %v5396
  %5398 = vdwg.mxu0
  %5399 = vmatpush.bf16.msra.mxu0 0
  %5400 = vmatpush.bf16.msra.mxu0 0
  %5401 = vmatpush.bf16.msra.mxu0 0
  %5402 = vmatpush.bf16.msra.mxu0 0
  %5403 = vmatpush.bf16.msra.mxu0 0
  %5404 = vmatpush.bf16.msra.mxu0 0
  %5405 = vmatpush.bf16.msra.mxu0 0
  %5406 = vmatpush.bf16.msra.mxu0 %v5221
  %5407 = vmatmul.bf16.gmra.mxu0 %v4152
  %v5408 = vpop.f32.mrf.mxu0
  %v5409 = vadd.f32 0.0, %v5408
  %v5410 = vpop.f32.mrf.mxu0
  %v5411 = vadd.f32 0.0, %v5410
  %5412 = vmatmul.bf16.gmra.mxu0 %v4155
  %v5413 = vpop.f32.mrf.mxu0
  %v5414 = vadd.f32 0.0, %v5413
  %v5415 = vpop.f32.mrf.mxu0
  %v5416 = vadd.f32 0.0, %v5415
  %5417 = vmatmul.bf16.gmra.mxu0 %v4158
  %v5418 = vpop.f32.mrf.mxu0
  %v5419 = vadd.f32 0.0, %v5418
  %v5420 = vpop.f32.mrf.mxu0
  %v5421 = vadd.f32 0.0, %v5420
  %5422 = vmatmul.bf16.gmra.mxu0 %v4161
  %v5423 = vpop.f32.mrf.mxu0
  %v5424 = vadd.f32 0.0, %v5423
  %v5425 = vpop.f32.mrf.mxu0
  %v5426 = vadd.f32 0.0, %v5425
  %5427 = vmatmul.bf16.gmra.mxu0 %v4164
  %v5428 = vpop.f32.mrf.mxu0
  %v5429 = vadd.f32 0.0, %v5428
  %v5430 = vpop.f32.mrf.mxu0
  %v5431 = vadd.f32 0.0, %v5430
  %5432 = vdwg.mxu0
  %5433 = vmatpush.bf16.msra.mxu0 0
  %5434 = vmatpush.bf16.msra.mxu0 0
  %5435 = vmatpush.bf16.msra.mxu0 0
  %5436 = vmatpush.bf16.msra.mxu0 0
  %5437 = vmatpush.bf16.msra.mxu0 0
  %5438 = vmatpush.bf16.msra.mxu0 0
  %5439 = vmatpush.bf16.msra.mxu0 0
  %5440 = vmatpush.bf16.msra.mxu0 %v5224
  %5441 = vmatmul.bf16.gmra.mxu0 %v4152
  %v5442 = vpop.f32.mrf.mxu0
  %v5443 = vadd.f32 0.0, %v5442
  %v5444 = vpop.f32.mrf.mxu0
  %v5445 = vadd.f32 0.0, %v5444
  %5446 = vmatmul.bf16.gmra.mxu0 %v4155
  %v5447 = vpop.f32.mrf.mxu0
  %v5448 = vadd.f32 0.0, %v5447
  %v5449 = vpop.f32.mrf.mxu0
  %v5450 = vadd.f32 0.0, %v5449
  %5451 = vmatmul.bf16.gmra.mxu0 %v4158
  %v5452 = vpop.f32.mrf.mxu0
  %v5453 = vadd.f32 0.0, %v5452
  %v5454 = vpop.f32.mrf.mxu0
  %v5455 = vadd.f32 0.0, %v5454
  %5456 = vmatmul.bf16.gmra.mxu0 %v4161
  %v5457 = vpop.f32.mrf.mxu0
  %v5458 = vadd.f32 0.0, %v5457
  %v5459 = vpop.f32.mrf.mxu0
  %v5460 = vadd.f32 0.0, %v5459
  %5461 = vmatmul.bf16.gmra.mxu0 %v4164
  %v5462 = vpop.f32.mrf.mxu0
  %v5463 = vadd.f32 0.0, %v5462
  %v5464 = vpop.f32.mrf.mxu0
  %v5465 = vadd.f32 0.0, %v5464
  %5466 = vdwg.mxu0
  %5467 = vmatpush.bf16.msra.mxu0 0
  %5468 = vmatpush.bf16.msra.mxu0 0
  %5469 = vmatpush.bf16.msra.mxu0 0
  %5470 = vmatpush.bf16.msra.mxu0 0
  %5471 = vmatpush.bf16.msra.mxu0 0
  %5472 = vmatpush.bf16.msra.mxu0 0
  %5473 = vmatpush.bf16.msra.mxu0 0
  %5474 = vmatpush.bf16.msra.mxu0 %v5227
  %5475 = vmatmul.bf16.gmra.mxu0 %v4152
  %v5476 = vpop.f32.mrf.mxu0
  %v5477 = vadd.f32 0.0, %v5476
  %v5478 = vpop.f32.mrf.mxu0
  %v5479 = vadd.f32 0.0, %v5478
  %5480 = vmatmul.bf16.gmra.mxu0 %v4155
  %v5481 = vpop.f32.mrf.mxu0
  %v5482 = vadd.f32 0.0, %v5481
  %v5483 = vpop.f32.mrf.mxu0
  %v5484 = vadd.f32 0.0, %v5483
  %5485 = vmatmul.bf16.gmra.mxu0 %v4158
  %v5486 = vpop.f32.mrf.mxu0
  %v5487 = vadd.f32 0.0, %v5486
  %v5488 = vpop.f32.mrf.mxu0
  %v5489 = vadd.f32 0.0, %v5488
  %5490 = vmatmul.bf16.gmra.mxu0 %v4161
  %v5491 = vpop.f32.mrf.mxu0
  %v5492 = vadd.f32 0.0, %v5491
  %v5493 = vpop.f32.mrf.mxu0
  %v5494 = vadd.f32 0.0, %v5493
  %5495 = vmatmul.bf16.gmra.mxu0 %v4164
  %v5496 = vpop.f32.mrf.mxu0
  %v5497 = vadd.f32 0.0, %v5496
  %v5498 = vpop.f32.mrf.mxu0
  %v5499 = vadd.f32 0.0, %v5498
  %5500 = vdwg.mxu0
  %v5541 = vunpack.c.l.b16 %v5157
  %v5542 = vunpack.c.h.b16 %v5157
  %v5543 = vunpack.c.l.b16 %v5158
  %v5544 = vunpack.c.h.b16 %v5158
  %v5545 = vunpack.c.l.b16 %v5159
  %v5546 = vunpack.c.h.b16 %v5159
  %v5547 = vunpack.c.l.b16 %v5160
  %v5548 = vunpack.c.h.b16 %v5160
  %v5549 = vunpack.c.l.b16 %v5161
  %v5550 = vunpack.c.h.b16 %v5161
  %v5551 = vunpack.c.l.b16 %v5162
  %v5552 = vunpack.c.h.b16 %v5162
  %v5553 = vunpack.c.l.b16 %v5163
  %v5554 = vunpack.c.h.b16 %v5163
  %v5555 = vunpack.c.l.b16 %v5164
  %v5556 = vunpack.c.h.b16 %v5164
  %v5557 = vunpack.c.l.b16 %v5165
  %v5558 = vunpack.c.h.b16 %v5165
  %v5559 = vunpack.c.l.b16 %v5166
  %v5560 = vunpack.c.h.b16 %v5166
  %v5561 = vunpack.c.l.b16 %v5167
  %v5562 = vunpack.c.h.b16 %v5167
  %v5563 = vunpack.c.l.b16 %v5168
  %v5564 = vunpack.c.h.b16 %v5168
  %v5565 = vunpack.c.l.b16 %v5169
  %v5566 = vunpack.c.h.b16 %v5169
  %v5567 = vunpack.c.l.b16 %v5170
  %v5568 = vunpack.c.h.b16 %v5170
  %v5569 = vunpack.c.l.b16 %v5171
  %v5570 = vunpack.c.h.b16 %v5171
  %v5571 = vunpack.c.l.b16 %v5172
  %v5572 = vunpack.c.h.b16 %v5172
  %v5573 = vunpack.c.l.b16 %v5173
  %v5574 = vunpack.c.h.b16 %v5173
  %v5575 = vunpack.c.l.b16 %v5174
  %v5576 = vunpack.c.h.b16 %v5174
  %v5577 = vunpack.c.l.b16 %v5175
  %v5578 = vunpack.c.h.b16 %v5175
  %v5579 = vunpack.c.l.b16 %v5176
  %v5580 = vunpack.c.h.b16 %v5176
  %v5581 = vunpack.c.l.b16 %v5177
  %v5582 = vunpack.c.h.b16 %v5177
  %v5583 = vunpack.c.l.b16 %v5178
  %v5584 = vunpack.c.h.b16 %v5178
  %v5585 = vunpack.c.l.b16 %v5179
  %v5586 = vunpack.c.h.b16 %v5179
  %v5587 = vunpack.c.l.b16 %v5180
  %v5588 = vunpack.c.h.b16 %v5180
  %v5589 = vunpack.c.l.b16 %v5181
  %v5590 = vunpack.c.h.b16 %v5181
  %v5591 = vunpack.c.l.b16 %v5182
  %v5592 = vunpack.c.h.b16 %v5182
  %v5593 = vunpack.c.l.b16 %v5183
  %v5594 = vunpack.c.h.b16 %v5183
  %v5595 = vunpack.c.l.b16 %v5184
  %v5596 = vunpack.c.h.b16 %v5184
  %v5597 = vunpack.c.l.b16 %v5185
  %v5598 = vunpack.c.h.b16 %v5185
  %v5599 = vunpack.c.l.b16 %v5186
  %v5600 = vunpack.c.h.b16 %v5186
  %v5601 = vunpack.c.l.b16 %v5187
  %v5602 = vunpack.c.h.b16 %v5187
  %v5603 = vunpack.c.l.b16 %v5188
  %v5604 = vunpack.c.h.b16 %v5188
  %v5605 = vunpack.c.l.b16 %v5189
  %v5606 = vunpack.c.h.b16 %v5189
  %v5607 = vunpack.c.l.b16 %v5190
  %v5608 = vunpack.c.h.b16 %v5190
  %v5609 = vunpack.c.l.b16 %v5191
  %v5610 = vunpack.c.h.b16 %v5191
  %v5611 = vunpack.c.l.b16 %v5192
  %v5612 = vunpack.c.h.b16 %v5192
  %v5613 = vunpack.c.l.b16 %v5193
  %v5614 = vunpack.c.h.b16 %v5193
  %v5615 = vunpack.c.l.b16 %v5194
  %v5616 = vunpack.c.h.b16 %v5194
  %v5617 = vunpack.c.l.b16 %v5195
  %v5618 = vunpack.c.h.b16 %v5195
  %v5619 = vunpack.c.l.b16 %v5196
  %v5620 = vunpack.c.h.b16 %v5196
  %v5621 = vpack.c.b16 %v5549, %v5541
  %v5622 = vpack.c.b16 %v5550, %v5542
  %v5623 = vpack.c.b16 %v5551, %v5543
  %v5624 = vpack.c.b16 %v5552, %v5544
  %v5625 = vpack.c.b16 %v5553, %v5545
  %v5626 = vpack.c.b16 %v5554, %v5546
  %v5627 = vpack.c.b16 %v5555, %v5547
  %v5628 = vpack.c.b16 %v5556, %v5548
  %v5629 = vpack.c.b16 %v5565, %v5557
  %v5630 = vpack.c.b16 %v5566, %v5558
  %v5631 = vpack.c.b16 %v5567, %v5559
  %v5632 = vpack.c.b16 %v5568, %v5560
  %v5633 = vpack.c.b16 %v5569, %v5561
  %v5634 = vpack.c.b16 %v5570, %v5562
  %v5635 = vpack.c.b16 %v5571, %v5563
  %v5636 = vpack.c.b16 %v5572, %v5564
  %v5637 = vpack.c.b16 %v5581, %v5573
  %v5638 = vpack.c.b16 %v5582, %v5574
  %v5639 = vpack.c.b16 %v5583, %v5575
  %v5640 = vpack.c.b16 %v5584, %v5576
  %v5641 = vpack.c.b16 %v5585, %v5577
  %v5642 = vpack.c.b16 %v5586, %v5578
  %v5643 = vpack.c.b16 %v5587, %v5579
  %v5644 = vpack.c.b16 %v5588, %v5580
  %v5645 = vpack.c.b16 %v5597, %v5589
  %v5646 = vpack.c.b16 %v5598, %v5590
  %v5647 = vpack.c.b16 %v5599, %v5591
  %v5648 = vpack.c.b16 %v5600, %v5592
  %v5649 = vpack.c.b16 %v5601, %v5593
  %v5650 = vpack.c.b16 %v5602, %v5594
  %v5651 = vpack.c.b16 %v5603, %v5595
  %v5652 = vpack.c.b16 %v5604, %v5596
  %v5653 = vpack.c.b16 %v5613, %v5605
  %v5654 = vpack.c.b16 %v5614, %v5606
  %v5655 = vpack.c.b16 %v5615, %v5607
  %v5656 = vpack.c.b16 %v5616, %v5608
  %v5657 = vpack.c.b16 %v5617, %v5609
  %v5658 = vpack.c.b16 %v5618, %v5610
  %v5659 = vpack.c.b16 %v5619, %v5611
  %v5660 = vpack.c.b16 %v5620, %v5612
  %v5694 = vand.u32 %v5653, %v4699
  %v5697 = vand.u32 %v5654, %v4699
  %v5700 = vand.u32 %v5655, %v4699
  %v5703 = vand.u32 %v5656, %v4699
  %v5706 = vand.u32 %v5657, %v4699
  %v5709 = vand.u32 %v5658, %v4699
  %v5712 = vand.u32 %v5659, %v4699
  %v5715 = vand.u32 %v5660, %v4699
  %5717 = vmatpush.bf16.msra.mxu0 0
  %5718 = vmatpush.bf16.msra.mxu0 0
  %5719 = vmatpush.bf16.msra.mxu0 0
  %5720 = vmatpush.bf16.msra.mxu0 %v5694
  %5721 = vmatpush.bf16.msra.mxu0 %v5645
  %5722 = vmatpush.bf16.msra.mxu0 %v5637
  %5723 = vmatpush.bf16.msra.mxu0 %v5629
  %5724 = vmatpush.bf16.msra.mxu0 %v5621
  %5725 = vmatmul.bf16.gmra.mxu0 %v4682
  %v5726 = vpop.f32.mrf.mxu0
  %v5727 = vadd.f32 %v5239, %v5726
  %v5728 = vpop.f32.mrf.mxu0
  %v5729 = vadd.f32 %v5241, %v5728
  %5730 = vmatmul.bf16.gmra.mxu0 %v4685
  %v5731 = vpop.f32.mrf.mxu0
  %v5732 = vadd.f32 %v5244, %v5731
  %v5733 = vpop.f32.mrf.mxu0
  %v5734 = vadd.f32 %v5246, %v5733
  %5735 = vmatmul.bf16.gmra.mxu0 %v4688
  %v5736 = vpop.f32.mrf.mxu0
  %v5737 = vadd.f32 %v5249, %v5736
  %v5738 = vpop.f32.mrf.mxu0
  %v5739 = vadd.f32 %v5251, %v5738
  %5740 = vmatmul.bf16.gmra.mxu0 %v4691
  %v5741 = vpop.f32.mrf.mxu0
  %v5742 = vadd.f32 %v5254, %v5741
  %v5743 = vpop.f32.mrf.mxu0
  %v5744 = vadd.f32 %v5256, %v5743
  %5745 = vmatmul.bf16.gmra.mxu0 %v4694
  %v5746 = vpop.f32.mrf.mxu0
  %v5747 = vadd.f32 %v5259, %v5746
  %v5748 = vpop.f32.mrf.mxu0
  %v5749 = vadd.f32 %v5261, %v5748
  %5750 = vdwg.mxu0
  %5751 = vmatpush.bf16.msra.mxu0 0
  %5752 = vmatpush.bf16.msra.mxu0 0
  %5753 = vmatpush.bf16.msra.mxu0 0
  %5754 = vmatpush.bf16.msra.mxu0 %v5697
  %5755 = vmatpush.bf16.msra.mxu0 %v5646
  %5756 = vmatpush.bf16.msra.mxu0 %v5638
  %5757 = vmatpush.bf16.msra.mxu0 %v5630
  %5758 = vmatpush.bf16.msra.mxu0 %v5622
  %5759 = vmatmul.bf16.gmra.mxu0 %v4682
  %v5760 = vpop.f32.mrf.mxu0
  %v5761 = vadd.f32 %v5273, %v5760
  %v5762 = vpop.f32.mrf.mxu0
  %v5763 = vadd.f32 %v5275, %v5762
  %5764 = vmatmul.bf16.gmra.mxu0 %v4685
  %v5765 = vpop.f32.mrf.mxu0
  %v5766 = vadd.f32 %v5278, %v5765
  %v5767 = vpop.f32.mrf.mxu0
  %v5768 = vadd.f32 %v5280, %v5767
  %5769 = vmatmul.bf16.gmra.mxu0 %v4688
  %v5770 = vpop.f32.mrf.mxu0
  %v5771 = vadd.f32 %v5283, %v5770
  %v5772 = vpop.f32.mrf.mxu0
  %v5773 = vadd.f32 %v5285, %v5772
  %5774 = vmatmul.bf16.gmra.mxu0 %v4691
  %v5775 = vpop.f32.mrf.mxu0
  %v5776 = vadd.f32 %v5288, %v5775
  %v5777 = vpop.f32.mrf.mxu0
  %v5778 = vadd.f32 %v5290, %v5777
  %5779 = vmatmul.bf16.gmra.mxu0 %v4694
  %v5780 = vpop.f32.mrf.mxu0
  %v5781 = vadd.f32 %v5293, %v5780
  %v5782 = vpop.f32.mrf.mxu0
  %v5783 = vadd.f32 %v5295, %v5782
  %5784 = vdwg.mxu0
  %5785 = vmatpush.bf16.msra.mxu0 0
  %5786 = vmatpush.bf16.msra.mxu0 0
  %5787 = vmatpush.bf16.msra.mxu0 0
  %5788 = vmatpush.bf16.msra.mxu0 %v5700
  %5789 = vmatpush.bf16.msra.mxu0 %v5647
  %5790 = vmatpush.bf16.msra.mxu0 %v5639
  %5791 = vmatpush.bf16.msra.mxu0 %v5631
  %5792 = vmatpush.bf16.msra.mxu0 %v5623
  %5793 = vmatmul.bf16.gmra.mxu0 %v4682
  %v5794 = vpop.f32.mrf.mxu0
  %v5795 = vadd.f32 %v5307, %v5794
  %v5796 = vpop.f32.mrf.mxu0
  %v5797 = vadd.f32 %v5309, %v5796
  %5798 = vmatmul.bf16.gmra.mxu0 %v4685
  %v5799 = vpop.f32.mrf.mxu0
  %v5800 = vadd.f32 %v5312, %v5799
  %v5801 = vpop.f32.mrf.mxu0
  %v5802 = vadd.f32 %v5314, %v5801
  %5803 = vmatmul.bf16.gmra.mxu0 %v4688
  %v5804 = vpop.f32.mrf.mxu0
  %v5805 = vadd.f32 %v5317, %v5804
  %v5806 = vpop.f32.mrf.mxu0
  %v5807 = vadd.f32 %v5319, %v5806
  %5808 = vmatmul.bf16.gmra.mxu0 %v4691
  %v5809 = vpop.f32.mrf.mxu0
  %v5810 = vadd.f32 %v5322, %v5809
  %v5811 = vpop.f32.mrf.mxu0
  %v5812 = vadd.f32 %v5324, %v5811
  %5813 = vmatmul.bf16.gmra.mxu0 %v4694
  %v5814 = vpop.f32.mrf.mxu0
  %v5815 = vadd.f32 %v5327, %v5814
  %v5816 = vpop.f32.mrf.mxu0
  %v5817 = vadd.f32 %v5329, %v5816
  %5818 = vdwg.mxu0
  %5819 = vmatpush.bf16.msra.mxu0 0
  %5820 = vmatpush.bf16.msra.mxu0 0
  %5821 = vmatpush.bf16.msra.mxu0 0
  %5822 = vmatpush.bf16.msra.mxu0 %v5703
  %5823 = vmatpush.bf16.msra.mxu0 %v5648
  %5824 = vmatpush.bf16.msra.mxu0 %v5640
  %5825 = vmatpush.bf16.msra.mxu0 %v5632
  %5826 = vmatpush.bf16.msra.mxu0 %v5624
  %5827 = vmatmul.bf16.gmra.mxu0 %v4682
  %v5828 = vpop.f32.mrf.mxu0
  %v5829 = vadd.f32 %v5341, %v5828
  %v5830 = vpop.f32.mrf.mxu0
  %v5831 = vadd.f32 %v5343, %v5830
  %5832 = vmatmul.bf16.gmra.mxu0 %v4685
  %v5833 = vpop.f32.mrf.mxu0
  %v5834 = vadd.f32 %v5346, %v5833
  %v5835 = vpop.f32.mrf.mxu0
  %v5836 = vadd.f32 %v5348, %v5835
  %5837 = vmatmul.bf16.gmra.mxu0 %v4688
  %v5838 = vpop.f32.mrf.mxu0
  %v5839 = vadd.f32 %v5351, %v5838
  %v5840 = vpop.f32.mrf.mxu0
  %v5841 = vadd.f32 %v5353, %v5840
  %5842 = vmatmul.bf16.gmra.mxu0 %v4691
  %v5843 = vpop.f32.mrf.mxu0
  %v5844 = vadd.f32 %v5356, %v5843
  %v5845 = vpop.f32.mrf.mxu0
  %v5846 = vadd.f32 %v5358, %v5845
  %5847 = vmatmul.bf16.gmra.mxu0 %v4694
  %v5848 = vpop.f32.mrf.mxu0
  %v5849 = vadd.f32 %v5361, %v5848
  %v5850 = vpop.f32.mrf.mxu0
  %v5851 = vadd.f32 %v5363, %v5850
  %5852 = vdwg.mxu0
  %5853 = vmatpush.bf16.msra.mxu0 0
  %5854 = vmatpush.bf16.msra.mxu0 0
  %5855 = vmatpush.bf16.msra.mxu0 0
  %5856 = vmatpush.bf16.msra.mxu0 %v5706
  %5857 = vmatpush.bf16.msra.mxu0 %v5649
  %5858 = vmatpush.bf16.msra.mxu0 %v5641
  %5859 = vmatpush.bf16.msra.mxu0 %v5633
  %5860 = vmatpush.bf16.msra.mxu0 %v5625
  %5861 = vmatmul.bf16.gmra.mxu0 %v4682
  %v5862 = vpop.f32.mrf.mxu0
  %v5863 = vadd.f32 %v5375, %v5862
  %v5864 = vpop.f32.mrf.mxu0
  %v5865 = vadd.f32 %v5377, %v5864
  %5866 = vmatmul.bf16.gmra.mxu0 %v4685
  %v5867 = vpop.f32.mrf.mxu0
  %v5868 = vadd.f32 %v5380, %v5867
  %v5869 = vpop.f32.mrf.mxu0
  %v5870 = vadd.f32 %v5382, %v5869
  %5871 = vmatmul.bf16.gmra.mxu0 %v4688
  %v5872 = vpop.f32.mrf.mxu0
  %v5873 = vadd.f32 %v5385, %v5872
  %v5874 = vpop.f32.mrf.mxu0
  %v5875 = vadd.f32 %v5387, %v5874
  %5876 = vmatmul.bf16.gmra.mxu0 %v4691
  %v5877 = vpop.f32.mrf.mxu0
  %v5878 = vadd.f32 %v5390, %v5877
  %v5879 = vpop.f32.mrf.mxu0
  %v5880 = vadd.f32 %v5392, %v5879
  %5881 = vmatmul.bf16.gmra.mxu0 %v4694
  %v5882 = vpop.f32.mrf.mxu0
  %v5883 = vadd.f32 %v5395, %v5882
  %v5884 = vpop.f32.mrf.mxu0
  %v5885 = vadd.f32 %v5397, %v5884
  %5886 = vdwg.mxu0
  %5887 = vmatpush.bf16.msra.mxu0 0
  %5888 = vmatpush.bf16.msra.mxu0 0
  %5889 = vmatpush.bf16.msra.mxu0 0
  %5890 = vmatpush.bf16.msra.mxu0 %v5709
  %5891 = vmatpush.bf16.msra.mxu0 %v5650
  %5892 = vmatpush.bf16.msra.mxu0 %v5642
  %5893 = vmatpush.bf16.msra.mxu0 %v5634
  %5894 = vmatpush.bf16.msra.mxu0 %v5626
  %5895 = vmatmul.bf16.gmra.mxu0 %v4682
  %v5896 = vpop.f32.mrf.mxu0
  %v5897 = vadd.f32 %v5409, %v5896
  %v5898 = vpop.f32.mrf.mxu0
  %v5899 = vadd.f32 %v5411, %v5898
  %5900 = vmatmul.bf16.gmra.mxu0 %v4685
  %v5901 = vpop.f32.mrf.mxu0
  %v5902 = vadd.f32 %v5414, %v5901
  %v5903 = vpop.f32.mrf.mxu0
  %v5904 = vadd.f32 %v5416, %v5903
  %5905 = vmatmul.bf16.gmra.mxu0 %v4688
  %v5906 = vpop.f32.mrf.mxu0
  %v5907 = vadd.f32 %v5419, %v5906
  %v5908 = vpop.f32.mrf.mxu0
  %v5909 = vadd.f32 %v5421, %v5908
  %5910 = vmatmul.bf16.gmra.mxu0 %v4691
  %v5911 = vpop.f32.mrf.mxu0
  %v5912 = vadd.f32 %v5424, %v5911
  %v5913 = vpop.f32.mrf.mxu0
  %v5914 = vadd.f32 %v5426, %v5913
  %5915 = vmatmul.bf16.gmra.mxu0 %v4694
  %v5916 = vpop.f32.mrf.mxu0
  %v5917 = vadd.f32 %v5429, %v5916
  %v5918 = vpop.f32.mrf.mxu0
  %v5919 = vadd.f32 %v5431, %v5918
  %5920 = vdwg.mxu0
  %5921 = vmatpush.bf16.msra.mxu0 0
  %5922 = vmatpush.bf16.msra.mxu0 0
  %5923 = vmatpush.bf16.msra.mxu0 0
  %5924 = vmatpush.bf16.msra.mxu0 %v5712
  %5925 = vmatpush.bf16.msra.mxu0 %v5651
  %5926 = vmatpush.bf16.msra.mxu0 %v5643
  %5927 = vmatpush.bf16.msra.mxu0 %v5635
  %5928 = vmatpush.bf16.msra.mxu0 %v5627
  %5929 = vmatmul.bf16.gmra.mxu0 %v4682
  %v5930 = vpop.f32.mrf.mxu0
  %v5931 = vadd.f32 %v5443, %v5930
  %v5932 = vpop.f32.mrf.mxu0
  %v5933 = vadd.f32 %v5445, %v5932
  %5934 = vmatmul.bf16.gmra.mxu0 %v4685
  %v5935 = vpop.f32.mrf.mxu0
  %v5936 = vadd.f32 %v5448, %v5935
  %v5937 = vpop.f32.mrf.mxu0
  %v5938 = vadd.f32 %v5450, %v5937
  %5939 = vmatmul.bf16.gmra.mxu0 %v4688
  %v5940 = vpop.f32.mrf.mxu0
  %v5941 = vadd.f32 %v5453, %v5940
  %v5942 = vpop.f32.mrf.mxu0
  %v5943 = vadd.f32 %v5455, %v5942
  %5944 = vmatmul.bf16.gmra.mxu0 %v4691
  %v5945 = vpop.f32.mrf.mxu0
  %v5946 = vadd.f32 %v5458, %v5945
  %v5947 = vpop.f32.mrf.mxu0
  %v5948 = vadd.f32 %v5460, %v5947
  %5949 = vmatmul.bf16.gmra.mxu0 %v4694
  %v5950 = vpop.f32.mrf.mxu0
  %v5951 = vadd.f32 %v5463, %v5950
  %v5952 = vpop.f32.mrf.mxu0
  %v5953 = vadd.f32 %v5465, %v5952
  %5954 = vdwg.mxu0
  %5955 = vmatpush.bf16.msra.mxu0 0
  %5956 = vmatpush.bf16.msra.mxu0 0
  %5957 = vmatpush.bf16.msra.mxu0 0
  %5958 = vmatpush.bf16.msra.mxu0 %v5715
  %5959 = vmatpush.bf16.msra.mxu0 %v5652
  %5960 = vmatpush.bf16.msra.mxu0 %v5644
  %5961 = vmatpush.bf16.msra.mxu0 %v5636
  %5962 = vmatpush.bf16.msra.mxu0 %v5628
  %5963 = vmatmul.bf16.gmra.mxu0 %v4682
  %v5964 = vpop.f32.mrf.mxu0
  %v5965 = vadd.f32 %v5477, %v5964
  %v5966 = vpop.f32.mrf.mxu0
  %v5967 = vadd.f32 %v5479, %v5966
  %5968 = vmatmul.bf16.gmra.mxu0 %v4685
  %v5969 = vpop.f32.mrf.mxu0
  %v5970 = vadd.f32 %v5482, %v5969
  %v5971 = vpop.f32.mrf.mxu0
  %v5972 = vadd.f32 %v5484, %v5971
  %5973 = vmatmul.bf16.gmra.mxu0 %v4688
  %v5974 = vpop.f32.mrf.mxu0
  %v5975 = vadd.f32 %v5487, %v5974
  %v5976 = vpop.f32.mrf.mxu0
  %v5977 = vadd.f32 %v5489, %v5976
  %5978 = vmatmul.bf16.gmra.mxu0 %v4691
  %v5979 = vpop.f32.mrf.mxu0
  %v5980 = vadd.f32 %v5492, %v5979
  %v5981 = vpop.f32.mrf.mxu0
  %v5982 = vadd.f32 %v5494, %v5981
  %5983 = vmatmul.bf16.gmra.mxu0 %v4694
  %v5984 = vpop.f32.mrf.mxu0
  %v5985 = vadd.f32 %v5497, %v5984
  %v5986 = vpop.f32.mrf.mxu0
  %v5987 = vadd.f32 %v5499, %v5986
  %5988 = vdwg.mxu0
  %v5989 = vadd.f32 %v5727, %v4018
  %v5990 = vadd.f32 %v5761, %v4018
  %v5991 = vadd.f32 %v5795, %v4018
  %v5992 = vadd.f32 %v5829, %v4018
  %v5993 = vadd.f32 %v5863, %v4018
  %v5994 = vadd.f32 %v5897, %v4018
  %v5995 = vadd.f32 %v5931, %v4018
  %v5996 = vadd.f32 %v5965, %v4018
  %v5997 = vadd.f32 %v5729, %v4023
  %v5998 = vadd.f32 %v5763, %v4023
  %v5999 = vadd.f32 %v5797, %v4023
  %v6000 = vadd.f32 %v5831, %v4023
  %v6001 = vadd.f32 %v5865, %v4023
  %v6002 = vadd.f32 %v5899, %v4023
  %v6003 = vadd.f32 %v5933, %v4023
  %v6004 = vadd.f32 %v5967, %v4023
  %v6005 = vadd.f32 %v5732, %v4028
  %v6006 = vadd.f32 %v5766, %v4028
  %v6007 = vadd.f32 %v5800, %v4028
  %v6008 = vadd.f32 %v5834, %v4028
  %v6009 = vadd.f32 %v5868, %v4028
  %v6010 = vadd.f32 %v5902, %v4028
  %v6011 = vadd.f32 %v5936, %v4028
  %v6012 = vadd.f32 %v5970, %v4028
  %v6013 = vadd.f32 %v5734, %v4033
  %v6014 = vadd.f32 %v5768, %v4033
  %v6015 = vadd.f32 %v5802, %v4033
  %v6016 = vadd.f32 %v5836, %v4033
  %v6017 = vadd.f32 %v5870, %v4033
  %v6018 = vadd.f32 %v5904, %v4033
  %v6019 = vadd.f32 %v5938, %v4033
  %v6020 = vadd.f32 %v5972, %v4033
  %v6021 = vadd.f32 %v5737, %v4038
  %v6022 = vadd.f32 %v5771, %v4038
  %v6023 = vadd.f32 %v5805, %v4038
  %v6024 = vadd.f32 %v5839, %v4038
  %v6025 = vadd.f32 %v5873, %v4038
  %v6026 = vadd.f32 %v5907, %v4038
  %v6027 = vadd.f32 %v5941, %v4038
  %v6028 = vadd.f32 %v5975, %v4038
  %v6029 = vadd.f32 %v5739, %v4043
  %v6030 = vadd.f32 %v5773, %v4043
  %v6031 = vadd.f32 %v5807, %v4043
  %v6032 = vadd.f32 %v5841, %v4043
  %v6033 = vadd.f32 %v5875, %v4043
  %v6034 = vadd.f32 %v5909, %v4043
  %v6035 = vadd.f32 %v5943, %v4043
  %v6036 = vadd.f32 %v5977, %v4043
  %v6037 = vadd.f32 %v5742, %v4048
  %v6038 = vadd.f32 %v5776, %v4048
  %v6039 = vadd.f32 %v5810, %v4048
  %v6040 = vadd.f32 %v5844, %v4048
  %v6041 = vadd.f32 %v5878, %v4048
  %v6042 = vadd.f32 %v5912, %v4048
  %v6043 = vadd.f32 %v5946, %v4048
  %v6044 = vadd.f32 %v5980, %v4048
  %v6045 = vadd.f32 %v5744, %v4053
  %v6046 = vadd.f32 %v5778, %v4053
  %v6047 = vadd.f32 %v5812, %v4053
  %v6048 = vadd.f32 %v5846, %v4053
  %v6049 = vadd.f32 %v5880, %v4053
  %v6050 = vadd.f32 %v5914, %v4053
  %v6051 = vadd.f32 %v5948, %v4053
  %v6052 = vadd.f32 %v5982, %v4053
  %v6053 = vadd.f32 %v5747, %v4058
  %v6054 = vadd.f32 %v5781, %v4058
  %v6055 = vadd.f32 %v5815, %v4058
  %v6056 = vadd.f32 %v5849, %v4058
  %v6057 = vadd.f32 %v5883, %v4058
  %v6058 = vadd.f32 %v5917, %v4058
  %v6059 = vadd.f32 %v5951, %v4058
  %v6060 = vadd.f32 %v5985, %v4058
  %v6061 = vadd.f32 %v5749, %v4063
  %v6062 = vadd.f32 %v5783, %v4063
  %v6063 = vadd.f32 %v5817, %v4063
  %v6064 = vadd.f32 %v5851, %v4063
  %v6065 = vadd.f32 %v5885, %v4063
  %v6066 = vadd.f32 %v5919, %v4063
  %v6067 = vadd.f32 %v5953, %v4063
  %v6068 = vadd.f32 %v5987, %v4063
  %s6069 = scalar_lea.vmem %s7, 640
  %6070 = vst [vmem:[%s6069] sm:$0xff] %v5989
  %6071 = vst [vmem:[%s6069 + $0x8] sm:$0xff] %v5990
  %6072 = vst [vmem:[%s6069 + $0x10] sm:$0xff] %v5991
  %6073 = vst [vmem:[%s6069 + $0x18] sm:$0xff] %v5992
  %6074 = vst [vmem:[%s6069 + $0x20] sm:$0xff] %v5993
  %6075 = vst [vmem:[%s6069 + $0x28] sm:$0xff] %v5994
  %6076 = vst [vmem:[%s6069 + $0x30] sm:$0xff] %v5995
  %6077 = vst [vmem:[%s6069 + $0x38] sm:$0xff] %v5996
  %6078 = vst [vmem:[%s6069 + $0x40] sm:$0xff] %v5997
  %6079 = vst [vmem:[%s6069 + $0x48] sm:$0xff] %v5998
  %6080 = vst [vmem:[%s6069 + $0x50] sm:$0xff] %v5999
  %6081 = vst [vmem:[%s6069 + $0x58] sm:$0xff] %v6000
  %6082 = vst [vmem:[%s6069 + $0x60] sm:$0xff] %v6001
  %6083 = vst [vmem:[%s6069 + $0x68] sm:$0xff] %v6002
  %6084 = vst [vmem:[%s6069 + $0x70] sm:$0xff] %v6003
  %6085 = vst [vmem:[%s6069 + $0x78] sm:$0xff] %v6004
  %6086 = vst [vmem:[%s6069 + $0x80] sm:$0xff] %v6005
  %6087 = vst [vmem:[%s6069 + $0x88] sm:$0xff] %v6006
  %6088 = vst [vmem:[%s6069 + $0x90] sm:$0xff] %v6007
  %6089 = vst [vmem:[%s6069 + $0x98] sm:$0xff] %v6008
  %6090 = vst [vmem:[%s6069 + $0xa0] sm:$0xff] %v6009
  %6091 = vst [vmem:[%s6069 + $0xa8] sm:$0xff] %v6010
  %6092 = vst [vmem:[%s6069 + $0xb0] sm:$0xff] %v6011
  %6093 = vst [vmem:[%s6069 + $0xb8] sm:$0xff] %v6012
  %6094 = vst [vmem:[%s6069 + $0xc0] sm:$0xff] %v6013
  %6095 = vst [vmem:[%s6069 + $0xc8] sm:$0xff] %v6014
  %6096 = vst [vmem:[%s6069 + $0xd0] sm:$0xff] %v6015
  %6097 = vst [vmem:[%s6069 + $0xd8] sm:$0xff] %v6016
  %6098 = vst [vmem:[%s6069 + $0xe0] sm:$0xff] %v6017
  %6099 = vst [vmem:[%s6069 + $0xe8] sm:$0xff] %v6018
  %6100 = vst [vmem:[%s6069 + $0xf0] sm:$0xff] %v6019
  %6101 = vst [vmem:[%s6069 + $0xf8] sm:$0xff] %v6020
  %6102 = vst [vmem:[%s6069 + $0x100] sm:$0xff] %v6021
  %6103 = vst [vmem:[%s6069 + $0x108] sm:$0xff] %v6022
  %6104 = vst [vmem:[%s6069 + $0x110] sm:$0xff] %v6023
  %6105 = vst [vmem:[%s6069 + $0x118] sm:$0xff] %v6024
  %6106 = vst [vmem:[%s6069 + $0x120] sm:$0xff] %v6025
  %6107 = vst [vmem:[%s6069 + $0x128] sm:$0xff] %v6026
  %6108 = vst [vmem:[%s6069 + $0x130] sm:$0xff] %v6027
  %6109 = vst [vmem:[%s6069 + $0x138] sm:$0xff] %v6028
  %6110 = vst [vmem:[%s6069 + $0x140] sm:$0xff] %v6029
  %6111 = vst [vmem:[%s6069 + $0x148] sm:$0xff] %v6030
  %6112 = vst [vmem:[%s6069 + $0x150] sm:$0xff] %v6031
  %6113 = vst [vmem:[%s6069 + $0x158] sm:$0xff] %v6032
  %6114 = vst [vmem:[%s6069 + $0x160] sm:$0xff] %v6033
  %6115 = vst [vmem:[%s6069 + $0x168] sm:$0xff] %v6034
  %6116 = vst [vmem:[%s6069 + $0x170] sm:$0xff] %v6035
  %6117 = vst [vmem:[%s6069 + $0x178] sm:$0xff] %v6036
  %6118 = vst [vmem:[%s6069 + $0x180] sm:$0xff] %v6037
  %6119 = vst [vmem:[%s6069 + $0x188] sm:$0xff] %v6038
  %6120 = vst [vmem:[%s6069 + $0x190] sm:$0xff] %v6039
  %6121 = vst [vmem:[%s6069 + $0x198] sm:$0xff] %v6040
  %6122 = vst [vmem:[%s6069 + $0x1a0] sm:$0xff] %v6041
  %6123 = vst [vmem:[%s6069 + $0x1a8] sm:$0xff] %v6042
  %6124 = vst [vmem:[%s6069 + $0x1b0] sm:$0xff] %v6043
  %6125 = vst [vmem:[%s6069 + $0x1b8] sm:$0xff] %v6044
  %6126 = vst [vmem:[%s6069 + $0x1c0] sm:$0xff] %v6045
  %6127 = vst [vmem:[%s6069 + $0x1c8] sm:$0xff] %v6046
  %6128 = vst [vmem:[%s6069 + $0x1d0] sm:$0xff] %v6047
  %6129 = vst [vmem:[%s6069 + $0x1d8] sm:$0xff] %v6048
  %6130 = vst [vmem:[%s6069 + $0x1e0] sm:$0xff] %v6049
  %6131 = vst [vmem:[%s6069 + $0x1e8] sm:$0xff] %v6050
  %6132 = vst [vmem:[%s6069 + $0x1f0] sm:$0xff] %v6051
  %6133 = vst [vmem:[%s6069 + $0x1f8] sm:$0xff] %v6052
  %6134 = vst [vmem:[%s6069 + $0x200] sm:$0xff] %v6053
  %6135 = vst [vmem:[%s6069 + $0x208] sm:$0xff] %v6054
  %6136 = vst [vmem:[%s6069 + $0x210] sm:$0xff] %v6055
  %6137 = vst [vmem:[%s6069 + $0x218] sm:$0xff] %v6056
  %6138 = vst [vmem:[%s6069 + $0x220] sm:$0xff] %v6057
  %6139 = vst [vmem:[%s6069 + $0x228] sm:$0xff] %v6058
  %6140 = vst [vmem:[%s6069 + $0x230] sm:$0xff] %v6059
  %6141 = vst [vmem:[%s6069 + $0x238] sm:$0xff] %v6060
  %6142 = vst [vmem:[%s6069 + $0x240] sm:$0x1f] %v6061
  %6143 = vst [vmem:[%s6069 + $0x248] sm:$0x1f] %v6062
  %6144 = vst [vmem:[%s6069 + $0x250] sm:$0x1f] %v6063
  %6145 = vst [vmem:[%s6069 + $0x258] sm:$0x1f] %v6064
  %6146 = vst [vmem:[%s6069 + $0x260] sm:$0x1f] %v6065
  %6147 = vst [vmem:[%s6069 + $0x268] sm:$0x1f] %v6066
  %6148 = vst [vmem:[%s6069 + $0x270] sm:$0x1f] %v6067
  %6149 = vst [vmem:[%s6069 + $0x278] sm:$0x1f] %v6068
  // Predicated region
  $region30: #{dream_pose_adapter.1} parent=0 // pred_check
    _
  $region31: #{dream_pose_adapter.1} parent=0 // pred_check_branch
    %6151 = sbr.rel (0) target = $region33
  $region32: #{dream_pose_adapter.1} parent=0 // pred_region
    _
  $region33: #{dream_pose_adapter.1} parent=0 // pred_fallthru
    _
  // Predicated region
  $region34: #{dream_pose_adapter.1} parent=0 // pred_check
    _
  $region35: #{dream_pose_adapter.1} parent=0 // pred_check_branch
    %6153 = sbr.rel (0) target = $region37
  $region36: #{dream_pose_adapter.1} parent=0 // pred_region
    _
  $region37: #{dream_pose_adapter.1} parent=0 // pred_fallthru
    _

</llo_original>
